<compile_context>
chip_gen: v6e
topology: v6e:2x2x1
jax: 0.10.0
libtpu: 0.0.40
codegen_flags: <defaults>
</compile_context>

<pallas_src>
import math
import functools

import numpy as np
import jax
import jax.numpy as jnp
from jax.experimental import pallas as pl
from jax.experimental.pallas import tpu as pltpu


def _i32(x):
    """Python int (possibly >= 2**31) -> int32 constant with the same bits."""
    x &= 0xFFFFFFFF
    if x >= 2 ** 31:
        x -= 2 ** 32
    return jnp.int32(x)


def _triangle_crelu_kernel(d_ref, o_ref, *, k, w):
    # d_ref / o_ref: (Bb, n) float32 tiles; one grid step per Bb samples.
    d = d_ref[...]                                     # (Bb, N) f32
    bb = d.shape[0]

    # Order-preserving map of float order onto *signed* int32 order:
    #   x >= +0.0 : key = bits                (nonnegative, already ordered)
    #   x <  0.0  : key = bits ^ 0x7FFFFFFF   (stays negative, order reversed)
    # NOTE: NaN inputs would order differently than torch.topk (benign here).
    bits = pltpu.bitcast(d, jnp.int32)
    key = jnp.where(bits < 0, bits ^ _i32(0x7FFFFFFF), bits)

    k_i = jnp.int32(k)
    # Invariant: the k-th smallest key lies in [lo, lo + 2^(bits remaining)).
    lo = jnp.full((bb, 1), _i32(0x80000000), jnp.int32)   # INT32_MIN

    RADIX_BITS = 2                       # radix-4: 16 digit steps
    NBOUND = (1 << RADIX_BITS) - 1       # 3 boundaries per step
    for step in range(32 // RADIX_BITS):
        shift = 32 - RADIX_BITS * (step + 1)
        # cnt_v = #(key < lo + (v+1)*2^shift)   (absolute counts; rank k never
        # needs updating).  Wide work per bucket: broadcast + compare + cast,
        # plus one lane reduction -> (Bb, 1).
        d_sel = jnp.zeros((bb, 1), jnp.int32)
        for v in range(NBOUND):
            b_v = lo + _i32((v + 1) << shift)          # (Bb, 1), wraps safely
            cnt_v = jnp.sum((key < b_v).astype(jnp.int32),
                            axis=1, keepdims=True)      # (Bb, 1)
            d_sel = d_sel + (cnt_v < k_i).astype(jnp.int32)
        lo = lo + (d_sel << shift)

    # lo is now the exact signed key of the k-th smallest element; invert the
    # key transform to recover its float bit pattern directly.
    thr_bits = jnp.where(lo < 0, lo ^ _i32(0x7FFFFFFF), lo)
    thr = jnp.minimum(pltpu.bitcast(thr_bits, jnp.float32),
                      jnp.float32(w))                   # (Bb, 1)

    # out = 1 - where(d > thr, w, d)/w  ==  where(d > thr, 0, 1 - d*(1/w))
    inv_w = jnp.float32(1.0 / float(w))
    o_ref[...] = jnp.where(d > thr, jnp.float32(0.0),
                           jnp.float32(1.0) - d * inv_w)


def triangle_crelu(d, w=1.0, percent=0.4):
    """Pallas implementation of triangle_cReLU.forward for NCHW input d."""
    d = d.astype(jnp.float32)
    B = d.shape[0]
    n = int(np.prod(d.shape[1:]))
    k = math.ceil(float(percent) * n)                   # static, like torch
    assert 0 < k <= n, "need 0 < ceil(percent * n) <= n"

    d_flat = d.reshape(B, n)                            # contiguity-preserving

    # Chip heuristic: 2 TensorCores per chip (v7x-class) vs 1 (v5e / v6e).
    two_tc = False
    try:
        kind = jax.devices()[0].device_kind.lower()
        two_tc = ("v7" in kind) or ("7x" in kind)
    except Exception:
        pass

    # Block sizing: kernel is strongly VALU-bound (~100+ ops/element vs 8
    # bytes/element of HBM), so keep one (Bb, n) f32 block around ~1-2 MiB.
    row_bytes = max(n * 4, 1)
    cap_rows = max(8, min(256, ((2 << 20) // row_bytes) // 8 * 8))
    # TODO(synk): for very large n (min block (8, n) of several MiB) add an
    # N-chunked two-pass path so v7x's 64 MiB VMEM is never exceeded.

    if B <= cap_rows and not (two_tc and B > 8):
        # Single block equal to the full array: no batch padding, no slice.
        Bb, B_pad = B, B
    else:
        B8 = ((B + 7) // 8) * 8
        Bb = min(cap_rows, B8)
        steps = -(-B8 // Bb)
        if two_tc and steps % 2 == 1 and B8 > 8:
            # Prefer an even grid-step count so both TensorCores stay busy.
            for cand in range(Bb, 7, -8):
                if (-(-B8 // cand)) % 2 == 0:
                    Bb = cand
                    break
        B_pad = -(-B8 // Bb) * Bb
    if B_pad != B:
        d_flat = jnp.pad(d_flat, ((0, B_pad - B), (0, 0)))   # dummy rows (0.0)

    kernel = functools.partial(_triangle_crelu_kernel, k=k, w=float(w))

    # ~3 wide ops/elem/bucket * 3 buckets * 16 steps, plus epilogue.
    cost = pl.CostEstimate(flops=(3 * 3 * 16 + 4) * B_pad * n,
                           transcendentals=0,
                           bytes_accessed=2 * B_pad * n * 4)

    out = pl.pallas_call(
        kernel,
        out_shape=jax.ShapeDtypeStruct((B_pad, n), jnp.float32),
        grid=(B_pad // Bb,),
        in_specs=[pl.BlockSpec((Bb, n), lambda b: (b, 0))],
        out_specs=pl.BlockSpec((Bb, n), lambda b: (b, 0)),
        compiler_params=pltpu.CompilerParams(
            dimension_semantics=("parallel",),
            vmem_limit_bytes=32 * 1024 * 1024),
        cost_estimate=cost,
    )(d_flat)

    if B_pad != B:
        out = out[:B]
    return out.reshape(d.shape)


if __name__ == "__main__":
    # Deterministic "parameters" (the module __init__ takes scalars w, percent).
    w_param = 1.0
    percent = 0.4

    B, C, H, W = 2, 4, 16, 16
    rng = jax.random.PRNGKey(0)
    x = jax.random.uniform(rng, (B, C, H, W), dtype=jnp.float32,
                           minval=0.0, maxval=2.0)

    out = triangle_crelu(x, w=w_param, percent=percent)
    out = jax.block_until_ready(out)

    # Pure-JAX reference of the PyTorch forward.
    n = C * H * W
    k = math.ceil(percent * n)
    x_flat = x.reshape(B, -1)
    thr = jnp.sort(x_flat, axis=1)[:, k - 1]
    thr = jnp.minimum(thr, w_param).reshape(B, 1, 1, 1)
    x_clip = jnp.where(x > thr, w_param, x)
    ref = 1.0 - x_clip / w_param

    assert out.shape == x.shape and out.dtype == jnp.float32
    assert jnp.allclose(out, ref, atol=1e-6), float(jnp.max(jnp.abs(out - ref)))
    print("KERNEL_OK")
</pallas_src>

<mosaic_0001>
module attributes {stable_mosaic.version = 11 : i64} {
  func.func @_triangle_crelu_kernel(%arg0: i32, %arg1: memref<2x1024xf32, #tpu.memory_space<vmem>>, %arg2: memref<2x1024xf32, #tpu.memory_space<vmem>>) attributes {dimension_semantics = [#tpu.dimension_semantics<parallel>], iteration_bounds = array<i64: 1>, scalar_prefetch = 0 : i64, scratch_operands = 0 : i64, tpu.core_type = #tpu.core_type<tc>, window_params = [{transform_indices = @transform_0, window_bounds = array<i64: 2, 1024>}, {transform_indices = @transform_1, window_bounds = array<i64: 2, 1024>}]} {
    %c0 = arith.constant 0 : index
    %c0_0 = arith.constant 0 : index
    %0 = vector.load %arg1[%c0, %c0_0] : memref<2x1024xf32, #tpu.memory_space<vmem>>, vector<2x1024xf32>
    %1 = tpu.bitcast %0 : vector<2x1024xf32> -> vector<2x1024xi32>
    %c0_i32 = arith.constant 0 : i32
    %2 = vector.broadcast %c0_i32 : i32 to vector<2x1024xi32>
    %3 = arith.cmpi slt, %1, %2 : vector<2x1024xi32>
    %c2147483647_i32 = arith.constant 2147483647 : i32
    %4 = vector.broadcast %c2147483647_i32 : i32 to vector<2x1024xi32>
    %5 = arith.xori %1, %4 : vector<2x1024xi32>
    %6 = arith.select %3, %5, %1 : vector<2x1024xi1>, vector<2x1024xi32>
    %c-2147483648_i32 = arith.constant -2147483648 : i32
    %7 = vector.broadcast %c-2147483648_i32 : i32 to vector<2x1xi32>
    %c0_i32_1 = arith.constant 0 : i32
    %8 = vector.broadcast %c0_i32_1 : i32 to vector<2x1xi32>
    %c1073741824_i32 = arith.constant 1073741824 : i32
    %9 = vector.broadcast %c1073741824_i32 : i32 to vector<2x1xi32>
    %10 = arith.addi %7, %9 : vector<2x1xi32>
    %11 = vector.broadcast %10 : vector<2x1xi32> to vector<2x1024xi32>
    %12 = arith.cmpi slt, %6, %11 : vector<2x1024xi32>
    %13 = arith.extui %12 : vector<2x1024xi1> to vector<2x1024xi32>
    %cst = arith.constant dense<0> : vector<2xi32>
    %14 = vector.multi_reduction <add>, %13, %cst [1] : vector<2x1024xi32> to vector<2xi32>
    %15 = vector.shape_cast %14 : vector<2xi32> to vector<2x1xi32>
    %c410_i32 = arith.constant 410 : i32
    %16 = vector.broadcast %c410_i32 : i32 to vector<2x1xi32>
    %17 = arith.cmpi slt, %15, %16 : vector<2x1xi32>
    %18 = arith.extui %17 : vector<2x1xi1> to vector<2x1xi32>
    %19 = arith.addi %8, %18 : vector<2x1xi32>
    %c-2147483648_i32_2 = arith.constant -2147483648 : i32
    %20 = vector.broadcast %c-2147483648_i32_2 : i32 to vector<2x1xi32>
    %21 = arith.addi %7, %20 : vector<2x1xi32>
    %22 = vector.broadcast %21 : vector<2x1xi32> to vector<2x1024xi32>
    %23 = arith.cmpi slt, %6, %22 : vector<2x1024xi32>
    %24 = arith.extui %23 : vector<2x1024xi1> to vector<2x1024xi32>
    %cst_3 = arith.constant dense<0> : vector<2xi32>
    %25 = vector.multi_reduction <add>, %24, %cst_3 [1] : vector<2x1024xi32> to vector<2xi32>
    %26 = vector.shape_cast %25 : vector<2xi32> to vector<2x1xi32>
    %c410_i32_4 = arith.constant 410 : i32
    %27 = vector.broadcast %c410_i32_4 : i32 to vector<2x1xi32>
    %28 = arith.cmpi slt, %26, %27 : vector<2x1xi32>
    %29 = arith.extui %28 : vector<2x1xi1> to vector<2x1xi32>
    %30 = arith.addi %19, %29 : vector<2x1xi32>
    %c-1073741824_i32 = arith.constant -1073741824 : i32
    %31 = vector.broadcast %c-1073741824_i32 : i32 to vector<2x1xi32>
    %32 = arith.addi %7, %31 : vector<2x1xi32>
    %33 = vector.broadcast %32 : vector<2x1xi32> to vector<2x1024xi32>
    %34 = arith.cmpi slt, %6, %33 : vector<2x1024xi32>
    %35 = arith.extui %34 : vector<2x1024xi1> to vector<2x1024xi32>
    %cst_5 = arith.constant dense<0> : vector<2xi32>
    %36 = vector.multi_reduction <add>, %35, %cst_5 [1] : vector<2x1024xi32> to vector<2xi32>
    %37 = vector.shape_cast %36 : vector<2xi32> to vector<2x1xi32>
    %c410_i32_6 = arith.constant 410 : i32
    %38 = vector.broadcast %c410_i32_6 : i32 to vector<2x1xi32>
    %39 = arith.cmpi slt, %37, %38 : vector<2x1xi32>
    %40 = arith.extui %39 : vector<2x1xi1> to vector<2x1xi32>
    %41 = arith.addi %30, %40 : vector<2x1xi32>
    %c30_i32 = arith.constant 30 : i32
    %42 = vector.broadcast %c30_i32 : i32 to vector<2x1xi32>
    %43 = arith.shli %41, %42 : vector<2x1xi32>
    %44 = arith.addi %7, %43 : vector<2x1xi32>
    %c0_i32_7 = arith.constant 0 : i32
    %45 = vector.broadcast %c0_i32_7 : i32 to vector<2x1xi32>
    %c268435456_i32 = arith.constant 268435456 : i32
    %46 = vector.broadcast %c268435456_i32 : i32 to vector<2x1xi32>
    %47 = arith.addi %44, %46 : vector<2x1xi32>
    %48 = vector.broadcast %47 : vector<2x1xi32> to vector<2x1024xi32>
    %49 = arith.cmpi slt, %6, %48 : vector<2x1024xi32>
    %50 = arith.extui %49 : vector<2x1024xi1> to vector<2x1024xi32>
    %cst_8 = arith.constant dense<0> : vector<2xi32>
    %51 = vector.multi_reduction <add>, %50, %cst_8 [1] : vector<2x1024xi32> to vector<2xi32>
    %52 = vector.shape_cast %51 : vector<2xi32> to vector<2x1xi32>
    %c410_i32_9 = arith.constant 410 : i32
    %53 = vector.broadcast %c410_i32_9 : i32 to vector<2x1xi32>
    %54 = arith.cmpi slt, %52, %53 : vector<2x1xi32>
    %55 = arith.extui %54 : vector<2x1xi1> to vector<2x1xi32>
    %56 = arith.addi %45, %55 : vector<2x1xi32>
    %c536870912_i32 = arith.constant 536870912 : i32
    %57 = vector.broadcast %c536870912_i32 : i32 to vector<2x1xi32>
    %58 = arith.addi %44, %57 : vector<2x1xi32>
    %59 = vector.broadcast %58 : vector<2x1xi32> to vector<2x1024xi32>
    %60 = arith.cmpi slt, %6, %59 : vector<2x1024xi32>
    %61 = arith.extui %60 : vector<2x1024xi1> to vector<2x1024xi32>
    %cst_10 = arith.constant dense<0> : vector<2xi32>
    %62 = vector.multi_reduction <add>, %61, %cst_10 [1] : vector<2x1024xi32> to vector<2xi32>
    %63 = vector.shape_cast %62 : vector<2xi32> to vector<2x1xi32>
    %c410_i32_11 = arith.constant 410 : i32
    %64 = vector.broadcast %c410_i32_11 : i32 to vector<2x1xi32>
    %65 = arith.cmpi slt, %63, %64 : vector<2x1xi32>
    %66 = arith.extui %65 : vector<2x1xi1> to vector<2x1xi32>
    %67 = arith.addi %56, %66 : vector<2x1xi32>
    %c805306368_i32 = arith.constant 805306368 : i32
    %68 = vector.broadcast %c805306368_i32 : i32 to vector<2x1xi32>
    %69 = arith.addi %44, %68 : vector<2x1xi32>
    %70 = vector.broadcast %69 : vector<2x1xi32> to vector<2x1024xi32>
    %71 = arith.cmpi slt, %6, %70 : vector<2x1024xi32>
    %72 = arith.extui %71 : vector<2x1024xi1> to vector<2x1024xi32>
    %cst_12 = arith.constant dense<0> : vector<2xi32>
    %73 = vector.multi_reduction <add>, %72, %cst_12 [1] : vector<2x1024xi32> to vector<2xi32>
    %74 = vector.shape_cast %73 : vector<2xi32> to vector<2x1xi32>
    %c410_i32_13 = arith.constant 410 : i32
    %75 = vector.broadcast %c410_i32_13 : i32 to vector<2x1xi32>
    %76 = arith.cmpi slt, %74, %75 : vector<2x1xi32>
    %77 = arith.extui %76 : vector<2x1xi1> to vector<2x1xi32>
    %78 = arith.addi %67, %77 : vector<2x1xi32>
    %c28_i32 = arith.constant 28 : i32
    %79 = vector.broadcast %c28_i32 : i32 to vector<2x1xi32>
    %80 = arith.shli %78, %79 : vector<2x1xi32>
    %81 = arith.addi %44, %80 : vector<2x1xi32>
    %c0_i32_14 = arith.constant 0 : i32
    %82 = vector.broadcast %c0_i32_14 : i32 to vector<2x1xi32>
    %c67108864_i32 = arith.constant 67108864 : i32
    %83 = vector.broadcast %c67108864_i32 : i32 to vector<2x1xi32>
    %84 = arith.addi %81, %83 : vector<2x1xi32>
    %85 = vector.broadcast %84 : vector<2x1xi32> to vector<2x1024xi32>
    %86 = arith.cmpi slt, %6, %85 : vector<2x1024xi32>
    %87 = arith.extui %86 : vector<2x1024xi1> to vector<2x1024xi32>
    %cst_15 = arith.constant dense<0> : vector<2xi32>
    %88 = vector.multi_reduction <add>, %87, %cst_15 [1] : vector<2x1024xi32> to vector<2xi32>
    %89 = vector.shape_cast %88 : vector<2xi32> to vector<2x1xi32>
    %c410_i32_16 = arith.constant 410 : i32
    %90 = vector.broadcast %c410_i32_16 : i32 to vector<2x1xi32>
    %91 = arith.cmpi slt, %89, %90 : vector<2x1xi32>
    %92 = arith.extui %91 : vector<2x1xi1> to vector<2x1xi32>
    %93 = arith.addi %82, %92 : vector<2x1xi32>
    %c134217728_i32 = arith.constant 134217728 : i32
    %94 = vector.broadcast %c134217728_i32 : i32 to vector<2x1xi32>
    %95 = arith.addi %81, %94 : vector<2x1xi32>
    %96 = vector.broadcast %95 : vector<2x1xi32> to vector<2x1024xi32>
    %97 = arith.cmpi slt, %6, %96 : vector<2x1024xi32>
    %98 = arith.extui %97 : vector<2x1024xi1> to vector<2x1024xi32>
    %cst_17 = arith.constant dense<0> : vector<2xi32>
    %99 = vector.multi_reduction <add>, %98, %cst_17 [1] : vector<2x1024xi32> to vector<2xi32>
    %100 = vector.shape_cast %99 : vector<2xi32> to vector<2x1xi32>
    %c410_i32_18 = arith.constant 410 : i32
    %101 = vector.broadcast %c410_i32_18 : i32 to vector<2x1xi32>
    %102 = arith.cmpi slt, %100, %101 : vector<2x1xi32>
    %103 = arith.extui %102 : vector<2x1xi1> to vector<2x1xi32>
    %104 = arith.addi %93, %103 : vector<2x1xi32>
    %c201326592_i32 = arith.constant 201326592 : i32
    %105 = vector.broadcast %c201326592_i32 : i32 to vector<2x1xi32>
    %106 = arith.addi %81, %105 : vector<2x1xi32>
    %107 = vector.broadcast %106 : vector<2x1xi32> to vector<2x1024xi32>
    %108 = arith.cmpi slt, %6, %107 : vector<2x1024xi32>
    %109 = arith.extui %108 : vector<2x1024xi1> to vector<2x1024xi32>
    %cst_19 = arith.constant dense<0> : vector<2xi32>
    %110 = vector.multi_reduction <add>, %109, %cst_19 [1] : vector<2x1024xi32> to vector<2xi32>
    %111 = vector.shape_cast %110 : vector<2xi32> to vector<2x1xi32>
    %c410_i32_20 = arith.constant 410 : i32
    %112 = vector.broadcast %c410_i32_20 : i32 to vector<2x1xi32>
    %113 = arith.cmpi slt, %111, %112 : vector<2x1xi32>
    %114 = arith.extui %113 : vector<2x1xi1> to vector<2x1xi32>
    %115 = arith.addi %104, %114 : vector<2x1xi32>
    %c26_i32 = arith.constant 26 : i32
    %116 = vector.broadcast %c26_i32 : i32 to vector<2x1xi32>
    %117 = arith.shli %115, %116 : vector<2x1xi32>
    %118 = arith.addi %81, %117 : vector<2x1xi32>
    %c0_i32_21 = arith.constant 0 : i32
    %119 = vector.broadcast %c0_i32_21 : i32 to vector<2x1xi32>
    %c16777216_i32 = arith.constant 16777216 : i32
    %120 = vector.broadcast %c16777216_i32 : i32 to vector<2x1xi32>
    %121 = arith.addi %118, %120 : vector<2x1xi32>
    %122 = vector.broadcast %121 : vector<2x1xi32> to vector<2x1024xi32>
    %123 = arith.cmpi slt, %6, %122 : vector<2x1024xi32>
    %124 = arith.extui %123 : vector<2x1024xi1> to vector<2x1024xi32>
    %cst_22 = arith.constant dense<0> : vector<2xi32>
    %125 = vector.multi_reduction <add>, %124, %cst_22 [1] : vector<2x1024xi32> to vector<2xi32>
    %126 = vector.shape_cast %125 : vector<2xi32> to vector<2x1xi32>
    %c410_i32_23 = arith.constant 410 : i32
    %127 = vector.broadcast %c410_i32_23 : i32 to vector<2x1xi32>
    %128 = arith.cmpi slt, %126, %127 : vector<2x1xi32>
    %129 = arith.extui %128 : vector<2x1xi1> to vector<2x1xi32>
    %130 = arith.addi %119, %129 : vector<2x1xi32>
    %c33554432_i32 = arith.constant 33554432 : i32
    %131 = vector.broadcast %c33554432_i32 : i32 to vector<2x1xi32>
    %132 = arith.addi %118, %131 : vector<2x1xi32>
    %133 = vector.broadcast %132 : vector<2x1xi32> to vector<2x1024xi32>
    %134 = arith.cmpi slt, %6, %133 : vector<2x1024xi32>
    %135 = arith.extui %134 : vector<2x1024xi1> to vector<2x1024xi32>
    %cst_24 = arith.constant dense<0> : vector<2xi32>
    %136 = vector.multi_reduction <add>, %135, %cst_24 [1] : vector<2x1024xi32> to vector<2xi32>
    %137 = vector.shape_cast %136 : vector<2xi32> to vector<2x1xi32>
    %c410_i32_25 = arith.constant 410 : i32
    %138 = vector.broadcast %c410_i32_25 : i32 to vector<2x1xi32>
    %139 = arith.cmpi slt, %137, %138 : vector<2x1xi32>
    %140 = arith.extui %139 : vector<2x1xi1> to vector<2x1xi32>
    %141 = arith.addi %130, %140 : vector<2x1xi32>
    %c50331648_i32 = arith.constant 50331648 : i32
    %142 = vector.broadcast %c50331648_i32 : i32 to vector<2x1xi32>
    %143 = arith.addi %118, %142 : vector<2x1xi32>
    %144 = vector.broadcast %143 : vector<2x1xi32> to vector<2x1024xi32>
    %145 = arith.cmpi slt, %6, %144 : vector<2x1024xi32>
    %146 = arith.extui %145 : vector<2x1024xi1> to vector<2x1024xi32>
    %cst_26 = arith.constant dense<0> : vector<2xi32>
    %147 = vector.multi_reduction <add>, %146, %cst_26 [1] : vector<2x1024xi32> to vector<2xi32>
    %148 = vector.shape_cast %147 : vector<2xi32> to vector<2x1xi32>
    %c410_i32_27 = arith.constant 410 : i32
    %149 = vector.broadcast %c410_i32_27 : i32 to vector<2x1xi32>
    %150 = arith.cmpi slt, %148, %149 : vector<2x1xi32>
    %151 = arith.extui %150 : vector<2x1xi1> to vector<2x1xi32>
    %152 = arith.addi %141, %151 : vector<2x1xi32>
    %c24_i32 = arith.constant 24 : i32
    %153 = vector.broadcast %c24_i32 : i32 to vector<2x1xi32>
    %154 = arith.shli %152, %153 : vector<2x1xi32>
    %155 = arith.addi %118, %154 : vector<2x1xi32>
    %c0_i32_28 = arith.constant 0 : i32
    %156 = vector.broadcast %c0_i32_28 : i32 to vector<2x1xi32>
    %c4194304_i32 = arith.constant 4194304 : i32
    %157 = vector.broadcast %c4194304_i32 : i32 to vector<2x1xi32>
    %158 = arith.addi %155, %157 : vector<2x1xi32>
    %159 = vector.broadcast %158 : vector<2x1xi32> to vector<2x1024xi32>
    %160 = arith.cmpi slt, %6, %159 : vector<2x1024xi32>
    %161 = arith.extui %160 : vector<2x1024xi1> to vector<2x1024xi32>
    %cst_29 = arith.constant dense<0> : vector<2xi32>
    %162 = vector.multi_reduction <add>, %161, %cst_29 [1] : vector<2x1024xi32> to vector<2xi32>
    %163 = vector.shape_cast %162 : vector<2xi32> to vector<2x1xi32>
    %c410_i32_30 = arith.constant 410 : i32
    %164 = vector.broadcast %c410_i32_30 : i32 to vector<2x1xi32>
    %165 = arith.cmpi slt, %163, %164 : vector<2x1xi32>
    %166 = arith.extui %165 : vector<2x1xi1> to vector<2x1xi32>
    %167 = arith.addi %156, %166 : vector<2x1xi32>
    %c8388608_i32 = arith.constant 8388608 : i32
    %168 = vector.broadcast %c8388608_i32 : i32 to vector<2x1xi32>
    %169 = arith.addi %155, %168 : vector<2x1xi32>
    %170 = vector.broadcast %169 : vector<2x1xi32> to vector<2x1024xi32>
    %171 = arith.cmpi slt, %6, %170 : vector<2x1024xi32>
    %172 = arith.extui %171 : vector<2x1024xi1> to vector<2x1024xi32>
    %cst_31 = arith.constant dense<0> : vector<2xi32>
    %173 = vector.multi_reduction <add>, %172, %cst_31 [1] : vector<2x1024xi32> to vector<2xi32>
    %174 = vector.shape_cast %173 : vector<2xi32> to vector<2x1xi32>
    %c410_i32_32 = arith.constant 410 : i32
    %175 = vector.broadcast %c410_i32_32 : i32 to vector<2x1xi32>
    %176 = arith.cmpi slt, %174, %175 : vector<2x1xi32>
    %177 = arith.extui %176 : vector<2x1xi1> to vector<2x1xi32>
    %178 = arith.addi %167, %177 : vector<2x1xi32>
    %c12582912_i32 = arith.constant 12582912 : i32
    %179 = vector.broadcast %c12582912_i32 : i32 to vector<2x1xi32>
    %180 = arith.addi %155, %179 : vector<2x1xi32>
    %181 = vector.broadcast %180 : vector<2x1xi32> to vector<2x1024xi32>
    %182 = arith.cmpi slt, %6, %181 : vector<2x1024xi32>
    %183 = arith.extui %182 : vector<2x1024xi1> to vector<2x1024xi32>
    %cst_33 = arith.constant dense<0> : vector<2xi32>
    %184 = vector.multi_reduction <add>, %183, %cst_33 [1] : vector<2x1024xi32> to vector<2xi32>
    %185 = vector.shape_cast %184 : vector<2xi32> to vector<2x1xi32>
    %c410_i32_34 = arith.constant 410 : i32
    %186 = vector.broadcast %c410_i32_34 : i32 to vector<2x1xi32>
    %187 = arith.cmpi slt, %185, %186 : vector<2x1xi32>
    %188 = arith.extui %187 : vector<2x1xi1> to vector<2x1xi32>
    %189 = arith.addi %178, %188 : vector<2x1xi32>
    %c22_i32 = arith.constant 22 : i32
    %190 = vector.broadcast %c22_i32 : i32 to vector<2x1xi32>
    %191 = arith.shli %189, %190 : vector<2x1xi32>
    %192 = arith.addi %155, %191 : vector<2x1xi32>
    %c0_i32_35 = arith.constant 0 : i32
    %193 = vector.broadcast %c0_i32_35 : i32 to vector<2x1xi32>
    %c1048576_i32 = arith.constant 1048576 : i32
    %194 = vector.broadcast %c1048576_i32 : i32 to vector<2x1xi32>
    %195 = arith.addi %192, %194 : vector<2x1xi32>
    %196 = vector.broadcast %195 : vector<2x1xi32> to vector<2x1024xi32>
    %197 = arith.cmpi slt, %6, %196 : vector<2x1024xi32>
    %198 = arith.extui %197 : vector<2x1024xi1> to vector<2x1024xi32>
    %cst_36 = arith.constant dense<0> : vector<2xi32>
    %199 = vector.multi_reduction <add>, %198, %cst_36 [1] : vector<2x1024xi32> to vector<2xi32>
    %200 = vector.shape_cast %199 : vector<2xi32> to vector<2x1xi32>
    %c410_i32_37 = arith.constant 410 : i32
    %201 = vector.broadcast %c410_i32_37 : i32 to vector<2x1xi32>
    %202 = arith.cmpi slt, %200, %201 : vector<2x1xi32>
    %203 = arith.extui %202 : vector<2x1xi1> to vector<2x1xi32>
    %204 = arith.addi %193, %203 : vector<2x1xi32>
    %c2097152_i32 = arith.constant 2097152 : i32
    %205 = vector.broadcast %c2097152_i32 : i32 to vector<2x1xi32>
    %206 = arith.addi %192, %205 : vector<2x1xi32>
    %207 = vector.broadcast %206 : vector<2x1xi32> to vector<2x1024xi32>
    %208 = arith.cmpi slt, %6, %207 : vector<2x1024xi32>
    %209 = arith.extui %208 : vector<2x1024xi1> to vector<2x1024xi32>
    %cst_38 = arith.constant dense<0> : vector<2xi32>
    %210 = vector.multi_reduction <add>, %209, %cst_38 [1] : vector<2x1024xi32> to vector<2xi32>
    %211 = vector.shape_cast %210 : vector<2xi32> to vector<2x1xi32>
    %c410_i32_39 = arith.constant 410 : i32
    %212 = vector.broadcast %c410_i32_39 : i32 to vector<2x1xi32>
    %213 = arith.cmpi slt, %211, %212 : vector<2x1xi32>
    %214 = arith.extui %213 : vector<2x1xi1> to vector<2x1xi32>
    %215 = arith.addi %204, %214 : vector<2x1xi32>
    %c3145728_i32 = arith.constant 3145728 : i32
    %216 = vector.broadcast %c3145728_i32 : i32 to vector<2x1xi32>
    %217 = arith.addi %192, %216 : vector<2x1xi32>
    %218 = vector.broadcast %217 : vector<2x1xi32> to vector<2x1024xi32>
    %219 = arith.cmpi slt, %6, %218 : vector<2x1024xi32>
    %220 = arith.extui %219 : vector<2x1024xi1> to vector<2x1024xi32>
    %cst_40 = arith.constant dense<0> : vector<2xi32>
    %221 = vector.multi_reduction <add>, %220, %cst_40 [1] : vector<2x1024xi32> to vector<2xi32>
    %222 = vector.shape_cast %221 : vector<2xi32> to vector<2x1xi32>
    %c410_i32_41 = arith.constant 410 : i32
    %223 = vector.broadcast %c410_i32_41 : i32 to vector<2x1xi32>
    %224 = arith.cmpi slt, %222, %223 : vector<2x1xi32>
    %225 = arith.extui %224 : vector<2x1xi1> to vector<2x1xi32>
    %226 = arith.addi %215, %225 : vector<2x1xi32>
    %c20_i32 = arith.constant 20 : i32
    %227 = vector.broadcast %c20_i32 : i32 to vector<2x1xi32>
    %228 = arith.shli %226, %227 : vector<2x1xi32>
    %229 = arith.addi %192, %228 : vector<2x1xi32>
    %c0_i32_42 = arith.constant 0 : i32
    %230 = vector.broadcast %c0_i32_42 : i32 to vector<2x1xi32>
    %c262144_i32 = arith.constant 262144 : i32
    %231 = vector.broadcast %c262144_i32 : i32 to vector<2x1xi32>
    %232 = arith.addi %229, %231 : vector<2x1xi32>
    %233 = vector.broadcast %232 : vector<2x1xi32> to vector<2x1024xi32>
    %234 = arith.cmpi slt, %6, %233 : vector<2x1024xi32>
    %235 = arith.extui %234 : vector<2x1024xi1> to vector<2x1024xi32>
    %cst_43 = arith.constant dense<0> : vector<2xi32>
    %236 = vector.multi_reduction <add>, %235, %cst_43 [1] : vector<2x1024xi32> to vector<2xi32>
    %237 = vector.shape_cast %236 : vector<2xi32> to vector<2x1xi32>
    %c410_i32_44 = arith.constant 410 : i32
    %238 = vector.broadcast %c410_i32_44 : i32 to vector<2x1xi32>
    %239 = arith.cmpi slt, %237, %238 : vector<2x1xi32>
    %240 = arith.extui %239 : vector<2x1xi1> to vector<2x1xi32>
    %241 = arith.addi %230, %240 : vector<2x1xi32>
    %c524288_i32 = arith.constant 524288 : i32
    %242 = vector.broadcast %c524288_i32 : i32 to vector<2x1xi32>
    %243 = arith.addi %229, %242 : vector<2x1xi32>
    %244 = vector.broadcast %243 : vector<2x1xi32> to vector<2x1024xi32>
    %245 = arith.cmpi slt, %6, %244 : vector<2x1024xi32>
    %246 = arith.extui %245 : vector<2x1024xi1> to vector<2x1024xi32>
    %cst_45 = arith.constant dense<0> : vector<2xi32>
    %247 = vector.multi_reduction <add>, %246, %cst_45 [1] : vector<2x1024xi32> to vector<2xi32>
    %248 = vector.shape_cast %247 : vector<2xi32> to vector<2x1xi32>
    %c410_i32_46 = arith.constant 410 : i32
    %249 = vector.broadcast %c410_i32_46 : i32 to vector<2x1xi32>
    %250 = arith.cmpi slt, %248, %249 : vector<2x1xi32>
    %251 = arith.extui %250 : vector<2x1xi1> to vector<2x1xi32>
    %252 = arith.addi %241, %251 : vector<2x1xi32>
    %c786432_i32 = arith.constant 786432 : i32
    %253 = vector.broadcast %c786432_i32 : i32 to vector<2x1xi32>
    %254 = arith.addi %229, %253 : vector<2x1xi32>
    %255 = vector.broadcast %254 : vector<2x1xi32> to vector<2x1024xi32>
    %256 = arith.cmpi slt, %6, %255 : vector<2x1024xi32>
    %257 = arith.extui %256 : vector<2x1024xi1> to vector<2x1024xi32>
    %cst_47 = arith.constant dense<0> : vector<2xi32>
    %258 = vector.multi_reduction <add>, %257, %cst_47 [1] : vector<2x1024xi32> to vector<2xi32>
    %259 = vector.shape_cast %258 : vector<2xi32> to vector<2x1xi32>
    %c410_i32_48 = arith.constant 410 : i32
    %260 = vector.broadcast %c410_i32_48 : i32 to vector<2x1xi32>
    %261 = arith.cmpi slt, %259, %260 : vector<2x1xi32>
    %262 = arith.extui %261 : vector<2x1xi1> to vector<2x1xi32>
    %263 = arith.addi %252, %262 : vector<2x1xi32>
    %c18_i32 = arith.constant 18 : i32
    %264 = vector.broadcast %c18_i32 : i32 to vector<2x1xi32>
    %265 = arith.shli %263, %264 : vector<2x1xi32>
    %266 = arith.addi %229, %265 : vector<2x1xi32>
    %c0_i32_49 = arith.constant 0 : i32
    %267 = vector.broadcast %c0_i32_49 : i32 to vector<2x1xi32>
    %c65536_i32 = arith.constant 65536 : i32
    %268 = vector.broadcast %c65536_i32 : i32 to vector<2x1xi32>
    %269 = arith.addi %266, %268 : vector<2x1xi32>
    %270 = vector.broadcast %269 : vector<2x1xi32> to vector<2x1024xi32>
    %271 = arith.cmpi slt, %6, %270 : vector<2x1024xi32>
    %272 = arith.extui %271 : vector<2x1024xi1> to vector<2x1024xi32>
    %cst_50 = arith.constant dense<0> : vector<2xi32>
    %273 = vector.multi_reduction <add>, %272, %cst_50 [1] : vector<2x1024xi32> to vector<2xi32>
    %274 = vector.shape_cast %273 : vector<2xi32> to vector<2x1xi32>
    %c410_i32_51 = arith.constant 410 : i32
    %275 = vector.broadcast %c410_i32_51 : i32 to vector<2x1xi32>
    %276 = arith.cmpi slt, %274, %275 : vector<2x1xi32>
    %277 = arith.extui %276 : vector<2x1xi1> to vector<2x1xi32>
    %278 = arith.addi %267, %277 : vector<2x1xi32>
    %c131072_i32 = arith.constant 131072 : i32
    %279 = vector.broadcast %c131072_i32 : i32 to vector<2x1xi32>
    %280 = arith.addi %266, %279 : vector<2x1xi32>
    %281 = vector.broadcast %280 : vector<2x1xi32> to vector<2x1024xi32>
    %282 = arith.cmpi slt, %6, %281 : vector<2x1024xi32>
    %283 = arith.extui %282 : vector<2x1024xi1> to vector<2x1024xi32>
    %cst_52 = arith.constant dense<0> : vector<2xi32>
    %284 = vector.multi_reduction <add>, %283, %cst_52 [1] : vector<2x1024xi32> to vector<2xi32>
    %285 = vector.shape_cast %284 : vector<2xi32> to vector<2x1xi32>
    %c410_i32_53 = arith.constant 410 : i32
    %286 = vector.broadcast %c410_i32_53 : i32 to vector<2x1xi32>
    %287 = arith.cmpi slt, %285, %286 : vector<2x1xi32>
    %288 = arith.extui %287 : vector<2x1xi1> to vector<2x1xi32>
    %289 = arith.addi %278, %288 : vector<2x1xi32>
    %c196608_i32 = arith.constant 196608 : i32
    %290 = vector.broadcast %c196608_i32 : i32 to vector<2x1xi32>
    %291 = arith.addi %266, %290 : vector<2x1xi32>
    %292 = vector.broadcast %291 : vector<2x1xi32> to vector<2x1024xi32>
    %293 = arith.cmpi slt, %6, %292 : vector<2x1024xi32>
    %294 = arith.extui %293 : vector<2x1024xi1> to vector<2x1024xi32>
    %cst_54 = arith.constant dense<0> : vector<2xi32>
    %295 = vector.multi_reduction <add>, %294, %cst_54 [1] : vector<2x1024xi32> to vector<2xi32>
    %296 = vector.shape_cast %295 : vector<2xi32> to vector<2x1xi32>
    %c410_i32_55 = arith.constant 410 : i32
    %297 = vector.broadcast %c410_i32_55 : i32 to vector<2x1xi32>
    %298 = arith.cmpi slt, %296, %297 : vector<2x1xi32>
    %299 = arith.extui %298 : vector<2x1xi1> to vector<2x1xi32>
    %300 = arith.addi %289, %299 : vector<2x1xi32>
    %c16_i32 = arith.constant 16 : i32
    %301 = vector.broadcast %c16_i32 : i32 to vector<2x1xi32>
    %302 = arith.shli %300, %301 : vector<2x1xi32>
    %303 = arith.addi %266, %302 : vector<2x1xi32>
    %c0_i32_56 = arith.constant 0 : i32
    %304 = vector.broadcast %c0_i32_56 : i32 to vector<2x1xi32>
    %c16384_i32 = arith.constant 16384 : i32
    %305 = vector.broadcast %c16384_i32 : i32 to vector<2x1xi32>
    %306 = arith.addi %303, %305 : vector<2x1xi32>
    %307 = vector.broadcast %306 : vector<2x1xi32> to vector<2x1024xi32>
    %308 = arith.cmpi slt, %6, %307 : vector<2x1024xi32>
    %309 = arith.extui %308 : vector<2x1024xi1> to vector<2x1024xi32>
    %cst_57 = arith.constant dense<0> : vector<2xi32>
    %310 = vector.multi_reduction <add>, %309, %cst_57 [1] : vector<2x1024xi32> to vector<2xi32>
    %311 = vector.shape_cast %310 : vector<2xi32> to vector<2x1xi32>
    %c410_i32_58 = arith.constant 410 : i32
    %312 = vector.broadcast %c410_i32_58 : i32 to vector<2x1xi32>
    %313 = arith.cmpi slt, %311, %312 : vector<2x1xi32>
    %314 = arith.extui %313 : vector<2x1xi1> to vector<2x1xi32>
    %315 = arith.addi %304, %314 : vector<2x1xi32>
    %c32768_i32 = arith.constant 32768 : i32
    %316 = vector.broadcast %c32768_i32 : i32 to vector<2x1xi32>
    %317 = arith.addi %303, %316 : vector<2x1xi32>
    %318 = vector.broadcast %317 : vector<2x1xi32> to vector<2x1024xi32>
    %319 = arith.cmpi slt, %6, %318 : vector<2x1024xi32>
    %320 = arith.extui %319 : vector<2x1024xi1> to vector<2x1024xi32>
    %cst_59 = arith.constant dense<0> : vector<2xi32>
    %321 = vector.multi_reduction <add>, %320, %cst_59 [1] : vector<2x1024xi32> to vector<2xi32>
    %322 = vector.shape_cast %321 : vector<2xi32> to vector<2x1xi32>
    %c410_i32_60 = arith.constant 410 : i32
    %323 = vector.broadcast %c410_i32_60 : i32 to vector<2x1xi32>
    %324 = arith.cmpi slt, %322, %323 : vector<2x1xi32>
    %325 = arith.extui %324 : vector<2x1xi1> to vector<2x1xi32>
    %326 = arith.addi %315, %325 : vector<2x1xi32>
    %c49152_i32 = arith.constant 49152 : i32
    %327 = vector.broadcast %c49152_i32 : i32 to vector<2x1xi32>
    %328 = arith.addi %303, %327 : vector<2x1xi32>
    %329 = vector.broadcast %328 : vector<2x1xi32> to vector<2x1024xi32>
    %330 = arith.cmpi slt, %6, %329 : vector<2x1024xi32>
    %331 = arith.extui %330 : vector<2x1024xi1> to vector<2x1024xi32>
    %cst_61 = arith.constant dense<0> : vector<2xi32>
    %332 = vector.multi_reduction <add>, %331, %cst_61 [1] : vector<2x1024xi32> to vector<2xi32>
    %333 = vector.shape_cast %332 : vector<2xi32> to vector<2x1xi32>
    %c410_i32_62 = arith.constant 410 : i32
    %334 = vector.broadcast %c410_i32_62 : i32 to vector<2x1xi32>
    %335 = arith.cmpi slt, %333, %334 : vector<2x1xi32>
    %336 = arith.extui %335 : vector<2x1xi1> to vector<2x1xi32>
    %337 = arith.addi %326, %336 : vector<2x1xi32>
    %c14_i32 = arith.constant 14 : i32
    %338 = vector.broadcast %c14_i32 : i32 to vector<2x1xi32>
    %339 = arith.shli %337, %338 : vector<2x1xi32>
    %340 = arith.addi %303, %339 : vector<2x1xi32>
    %c0_i32_63 = arith.constant 0 : i32
    %341 = vector.broadcast %c0_i32_63 : i32 to vector<2x1xi32>
    %c4096_i32 = arith.constant 4096 : i32
    %342 = vector.broadcast %c4096_i32 : i32 to vector<2x1xi32>
    %343 = arith.addi %340, %342 : vector<2x1xi32>
    %344 = vector.broadcast %343 : vector<2x1xi32> to vector<2x1024xi32>
    %345 = arith.cmpi slt, %6, %344 : vector<2x1024xi32>
    %346 = arith.extui %345 : vector<2x1024xi1> to vector<2x1024xi32>
    %cst_64 = arith.constant dense<0> : vector<2xi32>
    %347 = vector.multi_reduction <add>, %346, %cst_64 [1] : vector<2x1024xi32> to vector<2xi32>
    %348 = vector.shape_cast %347 : vector<2xi32> to vector<2x1xi32>
    %c410_i32_65 = arith.constant 410 : i32
    %349 = vector.broadcast %c410_i32_65 : i32 to vector<2x1xi32>
    %350 = arith.cmpi slt, %348, %349 : vector<2x1xi32>
    %351 = arith.extui %350 : vector<2x1xi1> to vector<2x1xi32>
    %352 = arith.addi %341, %351 : vector<2x1xi32>
    %c8192_i32 = arith.constant 8192 : i32
    %353 = vector.broadcast %c8192_i32 : i32 to vector<2x1xi32>
    %354 = arith.addi %340, %353 : vector<2x1xi32>
    %355 = vector.broadcast %354 : vector<2x1xi32> to vector<2x1024xi32>
    %356 = arith.cmpi slt, %6, %355 : vector<2x1024xi32>
    %357 = arith.extui %356 : vector<2x1024xi1> to vector<2x1024xi32>
    %cst_66 = arith.constant dense<0> : vector<2xi32>
    %358 = vector.multi_reduction <add>, %357, %cst_66 [1] : vector<2x1024xi32> to vector<2xi32>
    %359 = vector.shape_cast %358 : vector<2xi32> to vector<2x1xi32>
    %c410_i32_67 = arith.constant 410 : i32
    %360 = vector.broadcast %c410_i32_67 : i32 to vector<2x1xi32>
    %361 = arith.cmpi slt, %359, %360 : vector<2x1xi32>
    %362 = arith.extui %361 : vector<2x1xi1> to vector<2x1xi32>
    %363 = arith.addi %352, %362 : vector<2x1xi32>
    %c12288_i32 = arith.constant 12288 : i32
    %364 = vector.broadcast %c12288_i32 : i32 to vector<2x1xi32>
    %365 = arith.addi %340, %364 : vector<2x1xi32>
    %366 = vector.broadcast %365 : vector<2x1xi32> to vector<2x1024xi32>
    %367 = arith.cmpi slt, %6, %366 : vector<2x1024xi32>
    %368 = arith.extui %367 : vector<2x1024xi1> to vector<2x1024xi32>
    %cst_68 = arith.constant dense<0> : vector<2xi32>
    %369 = vector.multi_reduction <add>, %368, %cst_68 [1] : vector<2x1024xi32> to vector<2xi32>
    %370 = vector.shape_cast %369 : vector<2xi32> to vector<2x1xi32>
    %c410_i32_69 = arith.constant 410 : i32
    %371 = vector.broadcast %c410_i32_69 : i32 to vector<2x1xi32>
    %372 = arith.cmpi slt, %370, %371 : vector<2x1xi32>
    %373 = arith.extui %372 : vector<2x1xi1> to vector<2x1xi32>
    %374 = arith.addi %363, %373 : vector<2x1xi32>
    %c12_i32 = arith.constant 12 : i32
    %375 = vector.broadcast %c12_i32 : i32 to vector<2x1xi32>
    %376 = arith.shli %374, %375 : vector<2x1xi32>
    %377 = arith.addi %340, %376 : vector<2x1xi32>
    %c0_i32_70 = arith.constant 0 : i32
    %378 = vector.broadcast %c0_i32_70 : i32 to vector<2x1xi32>
    %c1024_i32 = arith.constant 1024 : i32
    %379 = vector.broadcast %c1024_i32 : i32 to vector<2x1xi32>
    %380 = arith.addi %377, %379 : vector<2x1xi32>
    %381 = vector.broadcast %380 : vector<2x1xi32> to vector<2x1024xi32>
    %382 = arith.cmpi slt, %6, %381 : vector<2x1024xi32>
    %383 = arith.extui %382 : vector<2x1024xi1> to vector<2x1024xi32>
    %cst_71 = arith.constant dense<0> : vector<2xi32>
    %384 = vector.multi_reduction <add>, %383, %cst_71 [1] : vector<2x1024xi32> to vector<2xi32>
    %385 = vector.shape_cast %384 : vector<2xi32> to vector<2x1xi32>
    %c410_i32_72 = arith.constant 410 : i32
    %386 = vector.broadcast %c410_i32_72 : i32 to vector<2x1xi32>
    %387 = arith.cmpi slt, %385, %386 : vector<2x1xi32>
    %388 = arith.extui %387 : vector<2x1xi1> to vector<2x1xi32>
    %389 = arith.addi %378, %388 : vector<2x1xi32>
    %c2048_i32 = arith.constant 2048 : i32
    %390 = vector.broadcast %c2048_i32 : i32 to vector<2x1xi32>
    %391 = arith.addi %377, %390 : vector<2x1xi32>
    %392 = vector.broadcast %391 : vector<2x1xi32> to vector<2x1024xi32>
    %393 = arith.cmpi slt, %6, %392 : vector<2x1024xi32>
    %394 = arith.extui %393 : vector<2x1024xi1> to vector<2x1024xi32>
    %cst_73 = arith.constant dense<0> : vector<2xi32>
    %395 = vector.multi_reduction <add>, %394, %cst_73 [1] : vector<2x1024xi32> to vector<2xi32>
    %396 = vector.shape_cast %395 : vector<2xi32> to vector<2x1xi32>
    %c410_i32_74 = arith.constant 410 : i32
    %397 = vector.broadcast %c410_i32_74 : i32 to vector<2x1xi32>
    %398 = arith.cmpi slt, %396, %397 : vector<2x1xi32>
    %399 = arith.extui %398 : vector<2x1xi1> to vector<2x1xi32>
    %400 = arith.addi %389, %399 : vector<2x1xi32>
    %c3072_i32 = arith.constant 3072 : i32
    %401 = vector.broadcast %c3072_i32 : i32 to vector<2x1xi32>
    %402 = arith.addi %377, %401 : vector<2x1xi32>
    %403 = vector.broadcast %402 : vector<2x1xi32> to vector<2x1024xi32>
    %404 = arith.cmpi slt, %6, %403 : vector<2x1024xi32>
    %405 = arith.extui %404 : vector<2x1024xi1> to vector<2x1024xi32>
    %cst_75 = arith.constant dense<0> : vector<2xi32>
    %406 = vector.multi_reduction <add>, %405, %cst_75 [1] : vector<2x1024xi32> to vector<2xi32>
    %407 = vector.shape_cast %406 : vector<2xi32> to vector<2x1xi32>
    %c410_i32_76 = arith.constant 410 : i32
    %408 = vector.broadcast %c410_i32_76 : i32 to vector<2x1xi32>
    %409 = arith.cmpi slt, %407, %408 : vector<2x1xi32>
    %410 = arith.extui %409 : vector<2x1xi1> to vector<2x1xi32>
    %411 = arith.addi %400, %410 : vector<2x1xi32>
    %c10_i32 = arith.constant 10 : i32
    %412 = vector.broadcast %c10_i32 : i32 to vector<2x1xi32>
    %413 = arith.shli %411, %412 : vector<2x1xi32>
    %414 = arith.addi %377, %413 : vector<2x1xi32>
    %c0_i32_77 = arith.constant 0 : i32
    %415 = vector.broadcast %c0_i32_77 : i32 to vector<2x1xi32>
    %c256_i32 = arith.constant 256 : i32
    %416 = vector.broadcast %c256_i32 : i32 to vector<2x1xi32>
    %417 = arith.addi %414, %416 : vector<2x1xi32>
    %418 = vector.broadcast %417 : vector<2x1xi32> to vector<2x1024xi32>
    %419 = arith.cmpi slt, %6, %418 : vector<2x1024xi32>
    %420 = arith.extui %419 : vector<2x1024xi1> to vector<2x1024xi32>
    %cst_78 = arith.constant dense<0> : vector<2xi32>
    %421 = vector.multi_reduction <add>, %420, %cst_78 [1] : vector<2x1024xi32> to vector<2xi32>
    %422 = vector.shape_cast %421 : vector<2xi32> to vector<2x1xi32>
    %c410_i32_79 = arith.constant 410 : i32
    %423 = vector.broadcast %c410_i32_79 : i32 to vector<2x1xi32>
    %424 = arith.cmpi slt, %422, %423 : vector<2x1xi32>
    %425 = arith.extui %424 : vector<2x1xi1> to vector<2x1xi32>
    %426 = arith.addi %415, %425 : vector<2x1xi32>
    %c512_i32 = arith.constant 512 : i32
    %427 = vector.broadcast %c512_i32 : i32 to vector<2x1xi32>
    %428 = arith.addi %414, %427 : vector<2x1xi32>
    %429 = vector.broadcast %428 : vector<2x1xi32> to vector<2x1024xi32>
    %430 = arith.cmpi slt, %6, %429 : vector<2x1024xi32>
    %431 = arith.extui %430 : vector<2x1024xi1> to vector<2x1024xi32>
    %cst_80 = arith.constant dense<0> : vector<2xi32>
    %432 = vector.multi_reduction <add>, %431, %cst_80 [1] : vector<2x1024xi32> to vector<2xi32>
    %433 = vector.shape_cast %432 : vector<2xi32> to vector<2x1xi32>
    %c410_i32_81 = arith.constant 410 : i32
    %434 = vector.broadcast %c410_i32_81 : i32 to vector<2x1xi32>
    %435 = arith.cmpi slt, %433, %434 : vector<2x1xi32>
    %436 = arith.extui %435 : vector<2x1xi1> to vector<2x1xi32>
    %437 = arith.addi %426, %436 : vector<2x1xi32>
    %c768_i32 = arith.constant 768 : i32
    %438 = vector.broadcast %c768_i32 : i32 to vector<2x1xi32>
    %439 = arith.addi %414, %438 : vector<2x1xi32>
    %440 = vector.broadcast %439 : vector<2x1xi32> to vector<2x1024xi32>
    %441 = arith.cmpi slt, %6, %440 : vector<2x1024xi32>
    %442 = arith.extui %441 : vector<2x1024xi1> to vector<2x1024xi32>
    %cst_82 = arith.constant dense<0> : vector<2xi32>
    %443 = vector.multi_reduction <add>, %442, %cst_82 [1] : vector<2x1024xi32> to vector<2xi32>
    %444 = vector.shape_cast %443 : vector<2xi32> to vector<2x1xi32>
    %c410_i32_83 = arith.constant 410 : i32
    %445 = vector.broadcast %c410_i32_83 : i32 to vector<2x1xi32>
    %446 = arith.cmpi slt, %444, %445 : vector<2x1xi32>
    %447 = arith.extui %446 : vector<2x1xi1> to vector<2x1xi32>
    %448 = arith.addi %437, %447 : vector<2x1xi32>
    %c8_i32 = arith.constant 8 : i32
    %449 = vector.broadcast %c8_i32 : i32 to vector<2x1xi32>
    %450 = arith.shli %448, %449 : vector<2x1xi32>
    %451 = arith.addi %414, %450 : vector<2x1xi32>
    %c0_i32_84 = arith.constant 0 : i32
    %452 = vector.broadcast %c0_i32_84 : i32 to vector<2x1xi32>
    %c64_i32 = arith.constant 64 : i32
    %453 = vector.broadcast %c64_i32 : i32 to vector<2x1xi32>
    %454 = arith.addi %451, %453 : vector<2x1xi32>
    %455 = vector.broadcast %454 : vector<2x1xi32> to vector<2x1024xi32>
    %456 = arith.cmpi slt, %6, %455 : vector<2x1024xi32>
    %457 = arith.extui %456 : vector<2x1024xi1> to vector<2x1024xi32>
    %cst_85 = arith.constant dense<0> : vector<2xi32>
    %458 = vector.multi_reduction <add>, %457, %cst_85 [1] : vector<2x1024xi32> to vector<2xi32>
    %459 = vector.shape_cast %458 : vector<2xi32> to vector<2x1xi32>
    %c410_i32_86 = arith.constant 410 : i32
    %460 = vector.broadcast %c410_i32_86 : i32 to vector<2x1xi32>
    %461 = arith.cmpi slt, %459, %460 : vector<2x1xi32>
    %462 = arith.extui %461 : vector<2x1xi1> to vector<2x1xi32>
    %463 = arith.addi %452, %462 : vector<2x1xi32>
    %c128_i32 = arith.constant 128 : i32
    %464 = vector.broadcast %c128_i32 : i32 to vector<2x1xi32>
    %465 = arith.addi %451, %464 : vector<2x1xi32>
    %466 = vector.broadcast %465 : vector<2x1xi32> to vector<2x1024xi32>
    %467 = arith.cmpi slt, %6, %466 : vector<2x1024xi32>
    %468 = arith.extui %467 : vector<2x1024xi1> to vector<2x1024xi32>
    %cst_87 = arith.constant dense<0> : vector<2xi32>
    %469 = vector.multi_reduction <add>, %468, %cst_87 [1] : vector<2x1024xi32> to vector<2xi32>
    %470 = vector.shape_cast %469 : vector<2xi32> to vector<2x1xi32>
    %c410_i32_88 = arith.constant 410 : i32
    %471 = vector.broadcast %c410_i32_88 : i32 to vector<2x1xi32>
    %472 = arith.cmpi slt, %470, %471 : vector<2x1xi32>
    %473 = arith.extui %472 : vector<2x1xi1> to vector<2x1xi32>
    %474 = arith.addi %463, %473 : vector<2x1xi32>
    %c192_i32 = arith.constant 192 : i32
    %475 = vector.broadcast %c192_i32 : i32 to vector<2x1xi32>
    %476 = arith.addi %451, %475 : vector<2x1xi32>
    %477 = vector.broadcast %476 : vector<2x1xi32> to vector<2x1024xi32>
    %478 = arith.cmpi slt, %6, %477 : vector<2x1024xi32>
    %479 = arith.extui %478 : vector<2x1024xi1> to vector<2x1024xi32>
    %cst_89 = arith.constant dense<0> : vector<2xi32>
    %480 = vector.multi_reduction <add>, %479, %cst_89 [1] : vector<2x1024xi32> to vector<2xi32>
    %481 = vector.shape_cast %480 : vector<2xi32> to vector<2x1xi32>
    %c410_i32_90 = arith.constant 410 : i32
    %482 = vector.broadcast %c410_i32_90 : i32 to vector<2x1xi32>
    %483 = arith.cmpi slt, %481, %482 : vector<2x1xi32>
    %484 = arith.extui %483 : vector<2x1xi1> to vector<2x1xi32>
    %485 = arith.addi %474, %484 : vector<2x1xi32>
    %c6_i32 = arith.constant 6 : i32
    %486 = vector.broadcast %c6_i32 : i32 to vector<2x1xi32>
    %487 = arith.shli %485, %486 : vector<2x1xi32>
    %488 = arith.addi %451, %487 : vector<2x1xi32>
    %c0_i32_91 = arith.constant 0 : i32
    %489 = vector.broadcast %c0_i32_91 : i32 to vector<2x1xi32>
    %c16_i32_92 = arith.constant 16 : i32
    %490 = vector.broadcast %c16_i32_92 : i32 to vector<2x1xi32>
    %491 = arith.addi %488, %490 : vector<2x1xi32>
    %492 = vector.broadcast %491 : vector<2x1xi32> to vector<2x1024xi32>
    %493 = arith.cmpi slt, %6, %492 : vector<2x1024xi32>
    %494 = arith.extui %493 : vector<2x1024xi1> to vector<2x1024xi32>
    %cst_93 = arith.constant dense<0> : vector<2xi32>
    %495 = vector.multi_reduction <add>, %494, %cst_93 [1] : vector<2x1024xi32> to vector<2xi32>
    %496 = vector.shape_cast %495 : vector<2xi32> to vector<2x1xi32>
    %c410_i32_94 = arith.constant 410 : i32
    %497 = vector.broadcast %c410_i32_94 : i32 to vector<2x1xi32>
    %498 = arith.cmpi slt, %496, %497 : vector<2x1xi32>
    %499 = arith.extui %498 : vector<2x1xi1> to vector<2x1xi32>
    %500 = arith.addi %489, %499 : vector<2x1xi32>
    %c32_i32 = arith.constant 32 : i32
    %501 = vector.broadcast %c32_i32 : i32 to vector<2x1xi32>
    %502 = arith.addi %488, %501 : vector<2x1xi32>
    %503 = vector.broadcast %502 : vector<2x1xi32> to vector<2x1024xi32>
    %504 = arith.cmpi slt, %6, %503 : vector<2x1024xi32>
    %505 = arith.extui %504 : vector<2x1024xi1> to vector<2x1024xi32>
    %cst_95 = arith.constant dense<0> : vector<2xi32>
    %506 = vector.multi_reduction <add>, %505, %cst_95 [1] : vector<2x1024xi32> to vector<2xi32>
    %507 = vector.shape_cast %506 : vector<2xi32> to vector<2x1xi32>
    %c410_i32_96 = arith.constant 410 : i32
    %508 = vector.broadcast %c410_i32_96 : i32 to vector<2x1xi32>
    %509 = arith.cmpi slt, %507, %508 : vector<2x1xi32>
    %510 = arith.extui %509 : vector<2x1xi1> to vector<2x1xi32>
    %511 = arith.addi %500, %510 : vector<2x1xi32>
    %c48_i32 = arith.constant 48 : i32
    %512 = vector.broadcast %c48_i32 : i32 to vector<2x1xi32>
    %513 = arith.addi %488, %512 : vector<2x1xi32>
    %514 = vector.broadcast %513 : vector<2x1xi32> to vector<2x1024xi32>
    %515 = arith.cmpi slt, %6, %514 : vector<2x1024xi32>
    %516 = arith.extui %515 : vector<2x1024xi1> to vector<2x1024xi32>
    %cst_97 = arith.constant dense<0> : vector<2xi32>
    %517 = vector.multi_reduction <add>, %516, %cst_97 [1] : vector<2x1024xi32> to vector<2xi32>
    %518 = vector.shape_cast %517 : vector<2xi32> to vector<2x1xi32>
    %c410_i32_98 = arith.constant 410 : i32
    %519 = vector.broadcast %c410_i32_98 : i32 to vector<2x1xi32>
    %520 = arith.cmpi slt, %518, %519 : vector<2x1xi32>
    %521 = arith.extui %520 : vector<2x1xi1> to vector<2x1xi32>
    %522 = arith.addi %511, %521 : vector<2x1xi32>
    %c4_i32 = arith.constant 4 : i32
    %523 = vector.broadcast %c4_i32 : i32 to vector<2x1xi32>
    %524 = arith.shli %522, %523 : vector<2x1xi32>
    %525 = arith.addi %488, %524 : vector<2x1xi32>
    %c0_i32_99 = arith.constant 0 : i32
    %526 = vector.broadcast %c0_i32_99 : i32 to vector<2x1xi32>
    %c4_i32_100 = arith.constant 4 : i32
    %527 = vector.broadcast %c4_i32_100 : i32 to vector<2x1xi32>
    %528 = arith.addi %525, %527 : vector<2x1xi32>
    %529 = vector.broadcast %528 : vector<2x1xi32> to vector<2x1024xi32>
    %530 = arith.cmpi slt, %6, %529 : vector<2x1024xi32>
    %531 = arith.extui %530 : vector<2x1024xi1> to vector<2x1024xi32>
    %cst_101 = arith.constant dense<0> : vector<2xi32>
    %532 = vector.multi_reduction <add>, %531, %cst_101 [1] : vector<2x1024xi32> to vector<2xi32>
    %533 = vector.shape_cast %532 : vector<2xi32> to vector<2x1xi32>
    %c410_i32_102 = arith.constant 410 : i32
    %534 = vector.broadcast %c410_i32_102 : i32 to vector<2x1xi32>
    %535 = arith.cmpi slt, %533, %534 : vector<2x1xi32>
    %536 = arith.extui %535 : vector<2x1xi1> to vector<2x1xi32>
    %537 = arith.addi %526, %536 : vector<2x1xi32>
    %c8_i32_103 = arith.constant 8 : i32
    %538 = vector.broadcast %c8_i32_103 : i32 to vector<2x1xi32>
    %539 = arith.addi %525, %538 : vector<2x1xi32>
    %540 = vector.broadcast %539 : vector<2x1xi32> to vector<2x1024xi32>
    %541 = arith.cmpi slt, %6, %540 : vector<2x1024xi32>
    %542 = arith.extui %541 : vector<2x1024xi1> to vector<2x1024xi32>
    %cst_104 = arith.constant dense<0> : vector<2xi32>
    %543 = vector.multi_reduction <add>, %542, %cst_104 [1] : vector<2x1024xi32> to vector<2xi32>
    %544 = vector.shape_cast %543 : vector<2xi32> to vector<2x1xi32>
    %c410_i32_105 = arith.constant 410 : i32
    %545 = vector.broadcast %c410_i32_105 : i32 to vector<2x1xi32>
    %546 = arith.cmpi slt, %544, %545 : vector<2x1xi32>
    %547 = arith.extui %546 : vector<2x1xi1> to vector<2x1xi32>
    %548 = arith.addi %537, %547 : vector<2x1xi32>
    %c12_i32_106 = arith.constant 12 : i32
    %549 = vector.broadcast %c12_i32_106 : i32 to vector<2x1xi32>
    %550 = arith.addi %525, %549 : vector<2x1xi32>
    %551 = vector.broadcast %550 : vector<2x1xi32> to vector<2x1024xi32>
    %552 = arith.cmpi slt, %6, %551 : vector<2x1024xi32>
    %553 = arith.extui %552 : vector<2x1024xi1> to vector<2x1024xi32>
    %cst_107 = arith.constant dense<0> : vector<2xi32>
    %554 = vector.multi_reduction <add>, %553, %cst_107 [1] : vector<2x1024xi32> to vector<2xi32>
    %555 = vector.shape_cast %554 : vector<2xi32> to vector<2x1xi32>
    %c410_i32_108 = arith.constant 410 : i32
    %556 = vector.broadcast %c410_i32_108 : i32 to vector<2x1xi32>
    %557 = arith.cmpi slt, %555, %556 : vector<2x1xi32>
    %558 = arith.extui %557 : vector<2x1xi1> to vector<2x1xi32>
    %559 = arith.addi %548, %558 : vector<2x1xi32>
    %c2_i32 = arith.constant 2 : i32
    %560 = vector.broadcast %c2_i32 : i32 to vector<2x1xi32>
    %561 = arith.shli %559, %560 : vector<2x1xi32>
    %562 = arith.addi %525, %561 : vector<2x1xi32>
    %c0_i32_109 = arith.constant 0 : i32
    %563 = vector.broadcast %c0_i32_109 : i32 to vector<2x1xi32>
    %c1_i32 = arith.constant 1 : i32
    %564 = vector.broadcast %c1_i32 : i32 to vector<2x1xi32>
    %565 = arith.addi %562, %564 : vector<2x1xi32>
    %566 = vector.broadcast %565 : vector<2x1xi32> to vector<2x1024xi32>
    %567 = arith.cmpi slt, %6, %566 : vector<2x1024xi32>
    %568 = arith.extui %567 : vector<2x1024xi1> to vector<2x1024xi32>
    %cst_110 = arith.constant dense<0> : vector<2xi32>
    %569 = vector.multi_reduction <add>, %568, %cst_110 [1] : vector<2x1024xi32> to vector<2xi32>
    %570 = vector.shape_cast %569 : vector<2xi32> to vector<2x1xi32>
    %c410_i32_111 = arith.constant 410 : i32
    %571 = vector.broadcast %c410_i32_111 : i32 to vector<2x1xi32>
    %572 = arith.cmpi slt, %570, %571 : vector<2x1xi32>
    %573 = arith.extui %572 : vector<2x1xi1> to vector<2x1xi32>
    %574 = arith.addi %563, %573 : vector<2x1xi32>
    %c2_i32_112 = arith.constant 2 : i32
    %575 = vector.broadcast %c2_i32_112 : i32 to vector<2x1xi32>
    %576 = arith.addi %562, %575 : vector<2x1xi32>
    %577 = vector.broadcast %576 : vector<2x1xi32> to vector<2x1024xi32>
    %578 = arith.cmpi slt, %6, %577 : vector<2x1024xi32>
    %579 = arith.extui %578 : vector<2x1024xi1> to vector<2x1024xi32>
    %cst_113 = arith.constant dense<0> : vector<2xi32>
    %580 = vector.multi_reduction <add>, %579, %cst_113 [1] : vector<2x1024xi32> to vector<2xi32>
    %581 = vector.shape_cast %580 : vector<2xi32> to vector<2x1xi32>
    %c410_i32_114 = arith.constant 410 : i32
    %582 = vector.broadcast %c410_i32_114 : i32 to vector<2x1xi32>
    %583 = arith.cmpi slt, %581, %582 : vector<2x1xi32>
    %584 = arith.extui %583 : vector<2x1xi1> to vector<2x1xi32>
    %585 = arith.addi %574, %584 : vector<2x1xi32>
    %c3_i32 = arith.constant 3 : i32
    %586 = vector.broadcast %c3_i32 : i32 to vector<2x1xi32>
    %587 = arith.addi %562, %586 : vector<2x1xi32>
    %588 = vector.broadcast %587 : vector<2x1xi32> to vector<2x1024xi32>
    %589 = arith.cmpi slt, %6, %588 : vector<2x1024xi32>
    %590 = arith.extui %589 : vector<2x1024xi1> to vector<2x1024xi32>
    %cst_115 = arith.constant dense<0> : vector<2xi32>
    %591 = vector.multi_reduction <add>, %590, %cst_115 [1] : vector<2x1024xi32> to vector<2xi32>
    %592 = vector.shape_cast %591 : vector<2xi32> to vector<2x1xi32>
    %c410_i32_116 = arith.constant 410 : i32
    %593 = vector.broadcast %c410_i32_116 : i32 to vector<2x1xi32>
    %594 = arith.cmpi slt, %592, %593 : vector<2x1xi32>
    %595 = arith.extui %594 : vector<2x1xi1> to vector<2x1xi32>
    %596 = arith.addi %585, %595 : vector<2x1xi32>
    %c0_i32_117 = arith.constant 0 : i32
    %597 = vector.broadcast %c0_i32_117 : i32 to vector<2x1xi32>
    %598 = arith.shli %596, %597 : vector<2x1xi32>
    %599 = arith.addi %562, %598 : vector<2x1xi32>
    %c0_i32_118 = arith.constant 0 : i32
    %600 = vector.broadcast %c0_i32_118 : i32 to vector<2x1xi32>
    %601 = arith.cmpi slt, %599, %600 : vector<2x1xi32>
    %c2147483647_i32_119 = arith.constant 2147483647 : i32
    %602 = vector.broadcast %c2147483647_i32_119 : i32 to vector<2x1xi32>
    %603 = arith.xori %599, %602 : vector<2x1xi32>
    %604 = arith.select %601, %603, %599 : vector<2x1xi1>, vector<2x1xi32>
    %605 = tpu.bitcast %604 : vector<2x1xi32> -> vector<2x1xf32>
    %cst_120 = arith.constant 1.000000e+00 : f32
    %606 = vector.broadcast %cst_120 : f32 to vector<2x1xf32>
    %607 = arith.minimumf %605, %606 : vector<2x1xf32>
    %608 = vector.broadcast %607 : vector<2x1xf32> to vector<2x1024xf32>
    %609 = arith.cmpf ogt, %0, %608 : vector<2x1024xf32>
    %cst_121 = arith.constant 1.000000e+00 : f32
    %610 = vector.broadcast %cst_121 : f32 to vector<2x1024xf32>
    %611 = arith.mulf %0, %610 : vector<2x1024xf32>
    %cst_122 = arith.constant 1.000000e+00 : f32
    %612 = vector.broadcast %cst_122 : f32 to vector<2x1024xf32>
    %613 = arith.subf %612, %611 : vector<2x1024xf32>
    %cst_123 = arith.constant 0.000000e+00 : f32
    %614 = vector.broadcast %cst_123 : f32 to vector<2x1024xf32>
    %615 = arith.select %609, %614, %613 : vector<2x1024xi1>, vector<2x1024xf32>
    %c0_124 = arith.constant 0 : index
    %c0_125 = arith.constant 0 : index
    %616 = vector.load %arg2[%c0_124, %c0_125] : memref<2x1024xf32, #tpu.memory_space<vmem>>, vector<2x1024xf32>
    tpu.vector_store %arg2[%c0_124, %c0_125], %615 {strides = array<i32>} : memref<2x1024xf32, #tpu.memory_space<vmem>>, vector<2x1024xf32>,
    return
  }
  func.func @transform_0(%arg0: i32) -> (i32, i32) {
    %c0_i32 = arith.constant 0 : i32
    %c0_i32_0 = arith.constant 0 : i32
    return %arg0, %c0_i32 : i32, i32
  }
  func.func @transform_1(%arg0: i32) -> (i32, i32) {
    %c0_i32 = arith.constant 0 : i32
    %c0_i32_0 = arith.constant 0 : i32
    return %arg0, %c0_i32 : i32, i32
  }
}

</mosaic_0001>

<llo_original>
// kernel: tpu_custom_call.1
$region0: #{tpu_custom_call.1}
  #allocation0 [shape = 'u32[]', space=smem, size = 0x4, offset = 0x4, fixed_abs, tag = 'smem constant byte address 0x4 - core index']
  #allocation1 [shape = 'u32[144,128]{1,0:T(1,128)}', space=vmem, size = 0x12000, scoped, tag = 'internal scratch']
  %s0 = inlined_call_operand.hbm [shape: f32[2,1024], index: 0, kind: input, shape index: {}]
  %s1 = inlined_call_operand.hbm [shape: f32[2,1024], index: 1, kind: output, shape index: {}]
  %s2 = sld [smem:[#allocation0]]
  $region18: #{tpu_custom_call.1} parent=0
    _
  %s4 = ssub.s32 1, %s2
  %s5 = scalar_select 0, %s4, %s2
  $region1: #{tpu_custom_call.1} parent=0
    #allocation2 [shape = 'u8[8192]{0}', space=vmem, size = 0x2000, scoped, tag = 'input window, operand 0, single buffered']
    #allocation3 [shape = 's32[1]{0}', space=sflag, size = 0x4, scoped, tag = 'scoped memory for tpu_custom_call.1']
    #allocation4 [shape = 's32[1]{0}', space=sflag, size = 0x4, scoped, tag = 'scoped memory for tpu_custom_call.1']
    #allocation5 [shape = 'u8[8192]{0}', space=vmem, size = 0x2000, scoped, tag = 'output window, operand 0, single buffered']
    %6 = vsyncpa [#allocation3], 0
    %7 = vsyncpa [#allocation4], 0
    // Predicated region
    $region2: #{tpu_custom_call.1} parent=1 // pred_check
      _
    $region3: #{tpu_custom_call.1} parent=1 // pred_check_branch
      %9 = sbr.rel (0) target = $region5
    $region4: #{tpu_custom_call.1} parent=1 // pred_region
      %s11 = ssub.s32 256, 256
      %12 = vsyncadd [#allocation3], %s11
      %s14 = sshll.u32 [#allocation2], 4
      %s15 = int_to_ptr.vmem [resolvable:$true] %s14
      %17 = dma.hbm_to_vmem [thread:$0]  %s0, 256, %s15, [#allocation3]
    $region5: #{tpu_custom_call.1} parent=1 // pred_fallthru
      _
    // Predicated region
    $region6: #{tpu_custom_call.1} parent=1 // pred_check
      _
    $region7: #{tpu_custom_call.1} parent=1 // pred_check_branch
      %19 = sbr.rel (0) target = $region9
    $region8: #{tpu_custom_call.1} parent=1 // pred_region
      %20 = dma.done [#allocation3], 256
    $region9: #{tpu_custom_call.1} parent=1 // pred_fallthru
      _
    %v21 = vld [vmem:[#allocation2] sm:$0xff]
    %v22 = vld [vmem:[#allocation2 + $0x8] sm:$0xff]
    %v25 = vcombine.high %v21, %v21
    %v27 = vunpack.c.l.s4 1983009808
    %v28 = vunpack.c.0.s8 %v27
    %v29 = vlaneseq
    %v30 = vshrl.u32 %v29, 7
    %v31 = vsub.s32 %v28, %v30
    %v32 = vrot.slane %v21, %v31
    %v34 = vunpack.c.l.s4 1983009808
    %v35 = vunpack.c.0.s8 %v34
    %v36 = vlaneseq
    %v37 = vshrl.u32 %v36, 7
    %v38 = vsub.s32 %v35, %v37
    %v39 = vrot.slane %v25, %v38
    %v40 = vcombine.high %v32, %v32
    %v41 = vcombine.high %v39, %v39
    %v42 = vcombine.high %v22, %v22
    %v44 = vunpack.c.l.s4 1983009808
    %v45 = vunpack.c.0.s8 %v44
    %v46 = vlaneseq
    %v47 = vshrl.u32 %v46, 7
    %v48 = vsub.s32 %v45, %v47
    %v49 = vrot.slane %v22, %v48
    %v51 = vunpack.c.l.s4 1983009808
    %v52 = vunpack.c.0.s8 %v51
    %v53 = vlaneseq
    %v54 = vshrl.u32 %v53, 7
    %v55 = vsub.s32 %v52, %v54
    %v56 = vrot.slane %v42, %v55
    %v57 = vcombine.high %v49, %v49
    %v58 = vcombine.high %v56, %v56
    %vm59 = vcmp.lt.s32.totalorder %v32, 0
    %vm60 = vcmp.lt.s32.totalorder %v40, 0
    %vm61 = vcmp.lt.s32.totalorder %v39, 0
    %vm62 = vcmp.lt.s32.totalorder %v41, 0
    %vm63 = vcmp.lt.s32.totalorder %v49, 0
    %vm64 = vcmp.lt.s32.totalorder %v57, 0
    %vm65 = vcmp.lt.s32.totalorder %v56, 0
    %vm66 = vcmp.lt.s32.totalorder %v58, 0
    %v67 = vxor.u32 %v32, 2147483647
    %v68 = vxor.u32 %v40, 2147483647
    %v69 = vxor.u32 %v39, 2147483647
    %v70 = vxor.u32 %v41, 2147483647
    %v71 = vxor.u32 %v49, 2147483647
    %v72 = vxor.u32 %v57, 2147483647
    %v73 = vxor.u32 %v56, 2147483647
    %v74 = vxor.u32 %v58, 2147483647
    %v75 = vsel %vm59, %v67, %v32
    %v76 = vsel %vm60, %v68, %v40
    %v77 = vsel %vm61, %v69, %v39
    %v78 = vsel %vm62, %v70, %v41
    %v79 = vsel %vm63, %v71, %v49
    %v80 = vsel %vm64, %v72, %v57
    %v81 = vsel %vm65, %v73, %v56
    %v82 = vsel %vm66, %v74, %v58
    %vm83 = vcmp.lt.s32.totalorder %v75, 3221225472
    %vm84 = vcmp.lt.s32.totalorder %v76, 3221225472
    %vm85 = vcmp.lt.s32.totalorder %v77, 3221225472
    %vm86 = vcmp.lt.s32.totalorder %v78, 3221225472
    %vm87 = vcmp.lt.s32.totalorder %v79, 3221225472
    %vm88 = vcmp.lt.s32.totalorder %v80, 3221225472
    %vm89 = vcmp.lt.s32.totalorder %v81, 3221225472
    %vm90 = vcmp.lt.s32.totalorder %v82, 3221225472
    %v91 = vsel %vm83, 1, 0
    %v92 = vsel %vm84, 1, 0
    %v93 = vsel %vm85, 1, 0
    %v94 = vsel %vm86, 1, 0
    %v95 = vsel %vm87, 1, 0
    %v96 = vsel %vm88, 1, 0
    %v97 = vsel %vm89, 1, 0
    %v98 = vsel %vm90, 1, 0
    %vm99 = vcmask 1041408
    %v100 = vsel %vm99, %v91, 0
    %v101 = vsel %vm99, %v92, 0
    %v102 = vsel %vm99, %v93, 0
    %v103 = vsel %vm99, %v94, 0
    %v104 = vsel %vm99, %v95, 0
    %v105 = vadd.s32 %v100, %v104
    %v106 = vsel %vm99, %v96, 0
    %v107 = vadd.s32 %v101, %v106
    %v108 = vsel %vm99, %v97, 0
    %v109 = vadd.s32 %v102, %v108
    %v110 = vsel %vm99, %v98, 0
    %v111 = vadd.s32 %v103, %v110
    %v112 = vadd.s32 %v105, %v107
    %v113 = vadd.s32 %v109, %v111
    %v114 = vadd.s32 %v112, %v113
    %v115 = vand.u32 %v114, 65535
    %v116 = vshrl.u32 %v114, 16
    %v117 = vcvt.s32.f32 %v115
    %v118 = vcvt.s32.f32 %v116
    %119 = vadd.xlane.f32.xlu0 %v117
    %v120 = vpop.xlane.xlu0 %119
    %121 = vadd.xlane.f32.xlu0 %v118
    %v122 = vpop.xlane.xlu0 %121
    %v123 = vcvt.f32.s32 %v120
    %v124 = vcvt.f32.s32 %v122
    %v125 = vshll.u32 %v124, 16
    %v126 = vadd.s32 %v125, %v123
    %vm127 = vcmp.lt.s32.totalorder %v126, 410
    %v128 = vsel %vm127, 1, 0
    %vm129 = vcmp.lt.s32.totalorder %v75, 0
    %vm130 = vcmp.lt.s32.totalorder %v76, 0
    %vm131 = vcmp.lt.s32.totalorder %v77, 0
    %vm132 = vcmp.lt.s32.totalorder %v78, 0
    %vm133 = vcmp.lt.s32.totalorder %v79, 0
    %vm134 = vcmp.lt.s32.totalorder %v80, 0
    %vm135 = vcmp.lt.s32.totalorder %v81, 0
    %vm136 = vcmp.lt.s32.totalorder %v82, 0
    %v137 = vsel %vm129, 1, 0
    %v138 = vsel %vm130, 1, 0
    %v139 = vsel %vm131, 1, 0
    %v140 = vsel %vm132, 1, 0
    %v141 = vsel %vm133, 1, 0
    %v142 = vsel %vm134, 1, 0
    %v143 = vsel %vm135, 1, 0
    %v144 = vsel %vm136, 1, 0
    %v145 = vsel %vm99, %v137, 0
    %v146 = vsel %vm99, %v138, 0
    %v147 = vsel %vm99, %v139, 0
    %v148 = vsel %vm99, %v140, 0
    %v149 = vsel %vm99, %v141, 0
    %v150 = vadd.s32 %v145, %v149
    %v151 = vsel %vm99, %v142, 0
    %v152 = vadd.s32 %v146, %v151
    %v153 = vsel %vm99, %v143, 0
    %v154 = vadd.s32 %v147, %v153
    %v155 = vsel %vm99, %v144, 0
    %v156 = vadd.s32 %v148, %v155
    %v157 = vadd.s32 %v150, %v152
    %v158 = vadd.s32 %v154, %v156
    %v159 = vadd.s32 %v157, %v158
    %v160 = vand.u32 %v159, 65535
    %v161 = vshrl.u32 %v159, 16
    %v162 = vcvt.s32.f32 %v160
    %v163 = vcvt.s32.f32 %v161
    %164 = vadd.xlane.f32.xlu0 %v162
    %v165 = vpop.xlane.xlu0 %164
    %166 = vadd.xlane.f32.xlu0 %v163
    %v167 = vpop.xlane.xlu0 %166
    %v168 = vcvt.f32.s32 %v165
    %v169 = vcvt.f32.s32 %v167
    %v170 = vshll.u32 %v169, 16
    %v171 = vadd.s32 %v170, %v168
    %vm172 = vcmp.lt.s32.totalorder %v171, 410
    %v173 = vsel %vm172, 1, 0
    %v174 = vadd.s32 %v128, %v173
    %vm175 = vcmp.lt.s32.totalorder %v75, 1073741824
    %vm176 = vcmp.lt.s32.totalorder %v76, 1073741824
    %vm177 = vcmp.lt.s32.totalorder %v77, 1073741824
    %vm178 = vcmp.lt.s32.totalorder %v78, 1073741824
    %vm179 = vcmp.lt.s32.totalorder %v79, 1073741824
    %vm180 = vcmp.lt.s32.totalorder %v80, 1073741824
    %vm181 = vcmp.lt.s32.totalorder %v81, 1073741824
    %vm182 = vcmp.lt.s32.totalorder %v82, 1073741824
    %v183 = vsel %vm175, 1, 0
    %v184 = vsel %vm176, 1, 0
    %v185 = vsel %vm177, 1, 0
    %v186 = vsel %vm178, 1, 0
    %v187 = vsel %vm179, 1, 0
    %v188 = vsel %vm180, 1, 0
    %v189 = vsel %vm181, 1, 0
    %v190 = vsel %vm182, 1, 0
    %v191 = vsel %vm99, %v183, 0
    %v192 = vsel %vm99, %v184, 0
    %v193 = vsel %vm99, %v185, 0
    %v194 = vsel %vm99, %v186, 0
    %v195 = vsel %vm99, %v187, 0
    %v196 = vadd.s32 %v191, %v195
    %v197 = vsel %vm99, %v188, 0
    %v198 = vadd.s32 %v192, %v197
    %v199 = vsel %vm99, %v189, 0
    %v200 = vadd.s32 %v193, %v199
    %v201 = vsel %vm99, %v190, 0
    %v202 = vadd.s32 %v194, %v201
    %v203 = vadd.s32 %v196, %v198
    %v204 = vadd.s32 %v200, %v202
    %v205 = vadd.s32 %v203, %v204
    %v206 = vand.u32 %v205, 65535
    %v207 = vshrl.u32 %v205, 16
    %v208 = vcvt.s32.f32 %v206
    %v209 = vcvt.s32.f32 %v207
    %210 = vadd.xlane.f32.xlu0 %v208
    %v211 = vpop.xlane.xlu0 %210
    %212 = vadd.xlane.f32.xlu0 %v209
    %v213 = vpop.xlane.xlu0 %212
    %v214 = vcvt.f32.s32 %v211
    %v215 = vcvt.f32.s32 %v213
    %v216 = vshll.u32 %v215, 16
    %v217 = vadd.s32 %v216, %v214
    %vm218 = vcmp.lt.s32.totalorder %v217, 410
    %v219 = vsel %vm218, 1, 0
    %v220 = vadd.s32 %v174, %v219
    %v221 = vshll.u32 %v220, 30
    %v222 = vadd.s32 %v221, 2147483648
    %v223 = vadd.s32 %v222, 268435456
    %vm224 = vcmp.lt.s32.totalorder %v75, %v223
    %vm225 = vcmp.lt.s32.totalorder %v76, %v223
    %vm226 = vcmp.lt.s32.totalorder %v77, %v223
    %vm227 = vcmp.lt.s32.totalorder %v78, %v223
    %vm228 = vcmp.lt.s32.totalorder %v79, %v223
    %vm229 = vcmp.lt.s32.totalorder %v80, %v223
    %vm230 = vcmp.lt.s32.totalorder %v81, %v223
    %vm231 = vcmp.lt.s32.totalorder %v82, %v223
    %v232 = vsel %vm224, 1, 0
    %v233 = vsel %vm225, 1, 0
    %v234 = vsel %vm226, 1, 0
    %v235 = vsel %vm227, 1, 0
    %v236 = vsel %vm228, 1, 0
    %v237 = vsel %vm229, 1, 0
    %v238 = vsel %vm230, 1, 0
    %v239 = vsel %vm231, 1, 0
    %v240 = vsel %vm99, %v232, 0
    %v241 = vsel %vm99, %v233, 0
    %v242 = vsel %vm99, %v234, 0
    %v243 = vsel %vm99, %v235, 0
    %v244 = vsel %vm99, %v236, 0
    %v245 = vadd.s32 %v240, %v244
    %v246 = vsel %vm99, %v237, 0
    %v247 = vadd.s32 %v241, %v246
    %v248 = vsel %vm99, %v238, 0
    %v249 = vadd.s32 %v242, %v248
    %v250 = vsel %vm99, %v239, 0
    %v251 = vadd.s32 %v243, %v250
    %v252 = vadd.s32 %v245, %v247
    %v253 = vadd.s32 %v249, %v251
    %v254 = vadd.s32 %v252, %v253
    %v255 = vand.u32 %v254, 65535
    %v256 = vshrl.u32 %v254, 16
    %v257 = vcvt.s32.f32 %v255
    %v258 = vcvt.s32.f32 %v256
    %259 = vadd.xlane.f32.xlu0 %v257
    %v260 = vpop.xlane.xlu0 %259
    %261 = vadd.xlane.f32.xlu0 %v258
    %v262 = vpop.xlane.xlu0 %261
    %v263 = vcvt.f32.s32 %v260
    %v264 = vcvt.f32.s32 %v262
    %v265 = vshll.u32 %v264, 16
    %v266 = vadd.s32 %v265, %v263
    %vm267 = vcmp.lt.s32.totalorder %v266, 410
    %v268 = vsel %vm267, 1, 0
    %v269 = vadd.s32 %v222, 536870912
    %vm270 = vcmp.lt.s32.totalorder %v75, %v269
    %vm271 = vcmp.lt.s32.totalorder %v76, %v269
    %vm272 = vcmp.lt.s32.totalorder %v77, %v269
    %vm273 = vcmp.lt.s32.totalorder %v78, %v269
    %vm274 = vcmp.lt.s32.totalorder %v79, %v269
    %vm275 = vcmp.lt.s32.totalorder %v80, %v269
    %vm276 = vcmp.lt.s32.totalorder %v81, %v269
    %vm277 = vcmp.lt.s32.totalorder %v82, %v269
    %v278 = vsel %vm270, 1, 0
    %v279 = vsel %vm271, 1, 0
    %v280 = vsel %vm272, 1, 0
    %v281 = vsel %vm273, 1, 0
    %v282 = vsel %vm274, 1, 0
    %v283 = vsel %vm275, 1, 0
    %v284 = vsel %vm276, 1, 0
    %v285 = vsel %vm277, 1, 0
    %v286 = vsel %vm99, %v278, 0
    %v287 = vsel %vm99, %v279, 0
    %v288 = vsel %vm99, %v280, 0
    %v289 = vsel %vm99, %v281, 0
    %v290 = vsel %vm99, %v282, 0
    %v291 = vadd.s32 %v286, %v290
    %v292 = vsel %vm99, %v283, 0
    %v293 = vadd.s32 %v287, %v292
    %v294 = vsel %vm99, %v284, 0
    %v295 = vadd.s32 %v288, %v294
    %v296 = vsel %vm99, %v285, 0
    %v297 = vadd.s32 %v289, %v296
    %v298 = vadd.s32 %v291, %v293
    %v299 = vadd.s32 %v295, %v297
    %v300 = vadd.s32 %v298, %v299
    %v301 = vand.u32 %v300, 65535
    %v302 = vshrl.u32 %v300, 16
    %v303 = vcvt.s32.f32 %v301
    %v304 = vcvt.s32.f32 %v302
    %305 = vadd.xlane.f32.xlu0 %v303
    %v306 = vpop.xlane.xlu0 %305
    %307 = vadd.xlane.f32.xlu0 %v304
    %v308 = vpop.xlane.xlu0 %307
    %v309 = vcvt.f32.s32 %v306
    %v310 = vcvt.f32.s32 %v308
    %v311 = vshll.u32 %v310, 16
    %v312 = vadd.s32 %v311, %v309
    %vm313 = vcmp.lt.s32.totalorder %v312, 410
    %v314 = vsel %vm313, 1, 0
    %v315 = vadd.s32 %v268, %v314
    %v316 = vadd.s32 %v222, 805306368
    %vm317 = vcmp.lt.s32.totalorder %v75, %v316
    %vm318 = vcmp.lt.s32.totalorder %v76, %v316
    %vm319 = vcmp.lt.s32.totalorder %v77, %v316
    %vm320 = vcmp.lt.s32.totalorder %v78, %v316
    %vm321 = vcmp.lt.s32.totalorder %v79, %v316
    %vm322 = vcmp.lt.s32.totalorder %v80, %v316
    %vm323 = vcmp.lt.s32.totalorder %v81, %v316
    %vm324 = vcmp.lt.s32.totalorder %v82, %v316
    %v325 = vsel %vm317, 1, 0
    %v326 = vsel %vm318, 1, 0
    %v327 = vsel %vm319, 1, 0
    %v328 = vsel %vm320, 1, 0
    %v329 = vsel %vm321, 1, 0
    %v330 = vsel %vm322, 1, 0
    %v331 = vsel %vm323, 1, 0
    %v332 = vsel %vm324, 1, 0
    %v333 = vsel %vm99, %v325, 0
    %v334 = vsel %vm99, %v326, 0
    %v335 = vsel %vm99, %v327, 0
    %v336 = vsel %vm99, %v328, 0
    %v337 = vsel %vm99, %v329, 0
    %v338 = vadd.s32 %v333, %v337
    %v339 = vsel %vm99, %v330, 0
    %v340 = vadd.s32 %v334, %v339
    %v341 = vsel %vm99, %v331, 0
    %v342 = vadd.s32 %v335, %v341
    %v343 = vsel %vm99, %v332, 0
    %v344 = vadd.s32 %v336, %v343
    %v345 = vadd.s32 %v338, %v340
    %v346 = vadd.s32 %v342, %v344
    %v347 = vadd.s32 %v345, %v346
    %v348 = vand.u32 %v347, 65535
    %v349 = vshrl.u32 %v347, 16
    %v350 = vcvt.s32.f32 %v348
    %v351 = vcvt.s32.f32 %v349
    %352 = vadd.xlane.f32.xlu0 %v350
    %v353 = vpop.xlane.xlu0 %352
    %354 = vadd.xlane.f32.xlu0 %v351
    %v355 = vpop.xlane.xlu0 %354
    %v356 = vcvt.f32.s32 %v353
    %v357 = vcvt.f32.s32 %v355
    %v358 = vshll.u32 %v357, 16
    %v359 = vadd.s32 %v358, %v356
    %vm360 = vcmp.lt.s32.totalorder %v359, 410
    %v361 = vsel %vm360, 1, 0
    %v362 = vadd.s32 %v315, %v361
    %v363 = vshll.u32 %v362, 28
    %v364 = vadd.s32 %v222, %v363
    %v365 = vadd.s32 %v364, 67108864
    %vm366 = vcmp.lt.s32.totalorder %v75, %v365
    %vm367 = vcmp.lt.s32.totalorder %v76, %v365
    %vm368 = vcmp.lt.s32.totalorder %v77, %v365
    %vm369 = vcmp.lt.s32.totalorder %v78, %v365
    %vm370 = vcmp.lt.s32.totalorder %v79, %v365
    %vm371 = vcmp.lt.s32.totalorder %v80, %v365
    %vm372 = vcmp.lt.s32.totalorder %v81, %v365
    %vm373 = vcmp.lt.s32.totalorder %v82, %v365
    %v374 = vsel %vm366, 1, 0
    %v375 = vsel %vm367, 1, 0
    %v376 = vsel %vm368, 1, 0
    %v377 = vsel %vm369, 1, 0
    %v378 = vsel %vm370, 1, 0
    %v379 = vsel %vm371, 1, 0
    %v380 = vsel %vm372, 1, 0
    %v381 = vsel %vm373, 1, 0
    %v382 = vsel %vm99, %v374, 0
    %v383 = vsel %vm99, %v375, 0
    %v384 = vsel %vm99, %v376, 0
    %v385 = vsel %vm99, %v377, 0
    %v386 = vsel %vm99, %v378, 0
    %v387 = vadd.s32 %v382, %v386
    %v388 = vsel %vm99, %v379, 0
    %v389 = vadd.s32 %v383, %v388
    %v390 = vsel %vm99, %v380, 0
    %v391 = vadd.s32 %v384, %v390
    %v392 = vsel %vm99, %v381, 0
    %v393 = vadd.s32 %v385, %v392
    %v394 = vadd.s32 %v387, %v389
    %v395 = vadd.s32 %v391, %v393
    %v396 = vadd.s32 %v394, %v395
    %v397 = vand.u32 %v396, 65535
    %v398 = vshrl.u32 %v396, 16
    %v399 = vcvt.s32.f32 %v397
    %v400 = vcvt.s32.f32 %v398
    %401 = vadd.xlane.f32.xlu0 %v399
    %v402 = vpop.xlane.xlu0 %401
    %403 = vadd.xlane.f32.xlu0 %v400
    %v404 = vpop.xlane.xlu0 %403
    %v405 = vcvt.f32.s32 %v402
    %v406 = vcvt.f32.s32 %v404
    %v407 = vshll.u32 %v406, 16
    %v408 = vadd.s32 %v407, %v405
    %vm409 = vcmp.lt.s32.totalorder %v408, 410
    %v410 = vsel %vm409, 1, 0
    %v411 = vadd.s32 %v364, 134217728
    %vm412 = vcmp.lt.s32.totalorder %v75, %v411
    %vm413 = vcmp.lt.s32.totalorder %v76, %v411
    %vm414 = vcmp.lt.s32.totalorder %v77, %v411
    %vm415 = vcmp.lt.s32.totalorder %v78, %v411
    %vm416 = vcmp.lt.s32.totalorder %v79, %v411
    %vm417 = vcmp.lt.s32.totalorder %v80, %v411
    %vm418 = vcmp.lt.s32.totalorder %v81, %v411
    %vm419 = vcmp.lt.s32.totalorder %v82, %v411
    %v420 = vsel %vm412, 1, 0
    %v421 = vsel %vm413, 1, 0
    %v422 = vsel %vm414, 1, 0
    %v423 = vsel %vm415, 1, 0
    %v424 = vsel %vm416, 1, 0
    %v425 = vsel %vm417, 1, 0
    %v426 = vsel %vm418, 1, 0
    %v427 = vsel %vm419, 1, 0
    %v428 = vsel %vm99, %v420, 0
    %v429 = vsel %vm99, %v421, 0
    %v430 = vsel %vm99, %v422, 0
    %v431 = vsel %vm99, %v423, 0
    %v432 = vsel %vm99, %v424, 0
    %v433 = vadd.s32 %v428, %v432
    %v434 = vsel %vm99, %v425, 0
    %v435 = vadd.s32 %v429, %v434
    %v436 = vsel %vm99, %v426, 0
    %v437 = vadd.s32 %v430, %v436
    %v438 = vsel %vm99, %v427, 0
    %v439 = vadd.s32 %v431, %v438
    %v440 = vadd.s32 %v433, %v435
    %v441 = vadd.s32 %v437, %v439
    %v442 = vadd.s32 %v440, %v441
    %v443 = vand.u32 %v442, 65535
    %v444 = vshrl.u32 %v442, 16
    %v445 = vcvt.s32.f32 %v443
    %v446 = vcvt.s32.f32 %v444
    %447 = vadd.xlane.f32.xlu0 %v445
    %v448 = vpop.xlane.xlu0 %447
    %449 = vadd.xlane.f32.xlu0 %v446
    %v450 = vpop.xlane.xlu0 %449
    %v451 = vcvt.f32.s32 %v448
    %v452 = vcvt.f32.s32 %v450
    %v453 = vshll.u32 %v452, 16
    %v454 = vadd.s32 %v453, %v451
    %vm455 = vcmp.lt.s32.totalorder %v454, 410
    %v456 = vsel %vm455, 1, 0
    %v457 = vadd.s32 %v410, %v456
    %v458 = vadd.s32 %v364, 201326592
    %vm459 = vcmp.lt.s32.totalorder %v75, %v458
    %vm460 = vcmp.lt.s32.totalorder %v76, %v458
    %vm461 = vcmp.lt.s32.totalorder %v77, %v458
    %vm462 = vcmp.lt.s32.totalorder %v78, %v458
    %vm463 = vcmp.lt.s32.totalorder %v79, %v458
    %vm464 = vcmp.lt.s32.totalorder %v80, %v458
    %vm465 = vcmp.lt.s32.totalorder %v81, %v458
    %vm466 = vcmp.lt.s32.totalorder %v82, %v458
    %v467 = vsel %vm459, 1, 0
    %v468 = vsel %vm460, 1, 0
    %v469 = vsel %vm461, 1, 0
    %v470 = vsel %vm462, 1, 0
    %v471 = vsel %vm463, 1, 0
    %v472 = vsel %vm464, 1, 0
    %v473 = vsel %vm465, 1, 0
    %v474 = vsel %vm466, 1, 0
    %v475 = vsel %vm99, %v467, 0
    %v476 = vsel %vm99, %v468, 0
    %v477 = vsel %vm99, %v469, 0
    %v478 = vsel %vm99, %v470, 0
    %v479 = vsel %vm99, %v471, 0
    %v480 = vadd.s32 %v475, %v479
    %v481 = vsel %vm99, %v472, 0
    %v482 = vadd.s32 %v476, %v481
    %v483 = vsel %vm99, %v473, 0
    %v484 = vadd.s32 %v477, %v483
    %v485 = vsel %vm99, %v474, 0
    %v486 = vadd.s32 %v478, %v485
    %v487 = vadd.s32 %v480, %v482
    %v488 = vadd.s32 %v484, %v486
    %v489 = vadd.s32 %v487, %v488
    %v490 = vand.u32 %v489, 65535
    %v491 = vshrl.u32 %v489, 16
    %v492 = vcvt.s32.f32 %v490
    %v493 = vcvt.s32.f32 %v491
    %494 = vadd.xlane.f32.xlu0 %v492
    %v495 = vpop.xlane.xlu0 %494
    %496 = vadd.xlane.f32.xlu0 %v493
    %v497 = vpop.xlane.xlu0 %496
    %v498 = vcvt.f32.s32 %v495
    %v499 = vcvt.f32.s32 %v497
    %v500 = vshll.u32 %v499, 16
    %v501 = vadd.s32 %v500, %v498
    %vm502 = vcmp.lt.s32.totalorder %v501, 410
    %v503 = vsel %vm502, 1, 0
    %v504 = vadd.s32 %v457, %v503
    %v505 = vshll.u32 %v504, 26
    %v506 = vadd.s32 %v364, %v505
    %v507 = vadd.s32 %v506, 16777216
    %vm508 = vcmp.lt.s32.totalorder %v75, %v507
    %vm509 = vcmp.lt.s32.totalorder %v76, %v507
    %vm510 = vcmp.lt.s32.totalorder %v77, %v507
    %vm511 = vcmp.lt.s32.totalorder %v78, %v507
    %vm512 = vcmp.lt.s32.totalorder %v79, %v507
    %vm513 = vcmp.lt.s32.totalorder %v80, %v507
    %vm514 = vcmp.lt.s32.totalorder %v81, %v507
    %vm515 = vcmp.lt.s32.totalorder %v82, %v507
    %v516 = vsel %vm508, 1, 0
    %v517 = vsel %vm509, 1, 0
    %v518 = vsel %vm510, 1, 0
    %v519 = vsel %vm511, 1, 0
    %v520 = vsel %vm512, 1, 0
    %v521 = vsel %vm513, 1, 0
    %v522 = vsel %vm514, 1, 0
    %v523 = vsel %vm515, 1, 0
    %v524 = vsel %vm99, %v516, 0
    %v525 = vsel %vm99, %v517, 0
    %v526 = vsel %vm99, %v518, 0
    %v527 = vsel %vm99, %v519, 0
    %v528 = vsel %vm99, %v520, 0
    %v529 = vadd.s32 %v524, %v528
    %v530 = vsel %vm99, %v521, 0
    %v531 = vadd.s32 %v525, %v530
    %v532 = vsel %vm99, %v522, 0
    %v533 = vadd.s32 %v526, %v532
    %v534 = vsel %vm99, %v523, 0
    %v535 = vadd.s32 %v527, %v534
    %v536 = vadd.s32 %v529, %v531
    %v537 = vadd.s32 %v533, %v535
    %v538 = vadd.s32 %v536, %v537
    %v539 = vand.u32 %v538, 65535
    %v540 = vshrl.u32 %v538, 16
    %v541 = vcvt.s32.f32 %v539
    %v542 = vcvt.s32.f32 %v540
    %543 = vadd.xlane.f32.xlu0 %v541
    %v544 = vpop.xlane.xlu0 %543
    %545 = vadd.xlane.f32.xlu0 %v542
    %v546 = vpop.xlane.xlu0 %545
    %v547 = vcvt.f32.s32 %v544
    %v548 = vcvt.f32.s32 %v546
    %v549 = vshll.u32 %v548, 16
    %v550 = vadd.s32 %v549, %v547
    %vm551 = vcmp.lt.s32.totalorder %v550, 410
    %v552 = vsel %vm551, 1, 0
    %v553 = vadd.s32 %v506, 33554432
    %vm554 = vcmp.lt.s32.totalorder %v75, %v553
    %vm555 = vcmp.lt.s32.totalorder %v76, %v553
    %vm556 = vcmp.lt.s32.totalorder %v77, %v553
    %vm557 = vcmp.lt.s32.totalorder %v78, %v553
    %vm558 = vcmp.lt.s32.totalorder %v79, %v553
    %vm559 = vcmp.lt.s32.totalorder %v80, %v553
    %vm560 = vcmp.lt.s32.totalorder %v81, %v553
    %vm561 = vcmp.lt.s32.totalorder %v82, %v553
    %v562 = vsel %vm554, 1, 0
    %v563 = vsel %vm555, 1, 0
    %v564 = vsel %vm556, 1, 0
    %v565 = vsel %vm557, 1, 0
    %v566 = vsel %vm558, 1, 0
    %v567 = vsel %vm559, 1, 0
    %v568 = vsel %vm560, 1, 0
    %v569 = vsel %vm561, 1, 0
    %v570 = vsel %vm99, %v562, 0
    %v571 = vsel %vm99, %v563, 0
    %v572 = vsel %vm99, %v564, 0
    %v573 = vsel %vm99, %v565, 0
    %v574 = vsel %vm99, %v566, 0
    %v575 = vadd.s32 %v570, %v574
    %v576 = vsel %vm99, %v567, 0
    %v577 = vadd.s32 %v571, %v576
    %v578 = vsel %vm99, %v568, 0
    %v579 = vadd.s32 %v572, %v578
    %v580 = vsel %vm99, %v569, 0
    %v581 = vadd.s32 %v573, %v580
    %v582 = vadd.s32 %v575, %v577
    %v583 = vadd.s32 %v579, %v581
    %v584 = vadd.s32 %v582, %v583
    %v585 = vand.u32 %v584, 65535
    %v586 = vshrl.u32 %v584, 16
    %v587 = vcvt.s32.f32 %v585
    %v588 = vcvt.s32.f32 %v586
    %589 = vadd.xlane.f32.xlu0 %v587
    %v590 = vpop.xlane.xlu0 %589
    %591 = vadd.xlane.f32.xlu0 %v588
    %v592 = vpop.xlane.xlu0 %591
    %v593 = vcvt.f32.s32 %v590
    %v594 = vcvt.f32.s32 %v592
    %v595 = vshll.u32 %v594, 16
    %v596 = vadd.s32 %v595, %v593
    %vm597 = vcmp.lt.s32.totalorder %v596, 410
    %v598 = vsel %vm597, 1, 0
    %v599 = vadd.s32 %v552, %v598
    %v600 = vadd.s32 %v506, 50331648
    %vm601 = vcmp.lt.s32.totalorder %v75, %v600
    %vm602 = vcmp.lt.s32.totalorder %v76, %v600
    %vm603 = vcmp.lt.s32.totalorder %v77, %v600
    %vm604 = vcmp.lt.s32.totalorder %v78, %v600
    %vm605 = vcmp.lt.s32.totalorder %v79, %v600
    %vm606 = vcmp.lt.s32.totalorder %v80, %v600
    %vm607 = vcmp.lt.s32.totalorder %v81, %v600
    %vm608 = vcmp.lt.s32.totalorder %v82, %v600
    %v609 = vsel %vm601, 1, 0
    %v610 = vsel %vm602, 1, 0
    %v611 = vsel %vm603, 1, 0
    %v612 = vsel %vm604, 1, 0
    %v613 = vsel %vm605, 1, 0
    %v614 = vsel %vm606, 1, 0
    %v615 = vsel %vm607, 1, 0
    %v616 = vsel %vm608, 1, 0
    %v617 = vsel %vm99, %v609, 0
    %v618 = vsel %vm99, %v610, 0
    %v619 = vsel %vm99, %v611, 0
    %v620 = vsel %vm99, %v612, 0
    %v621 = vsel %vm99, %v613, 0
    %v622 = vadd.s32 %v617, %v621
    %v623 = vsel %vm99, %v614, 0
    %v624 = vadd.s32 %v618, %v623
    %v625 = vsel %vm99, %v615, 0
    %v626 = vadd.s32 %v619, %v625
    %v627 = vsel %vm99, %v616, 0
    %v628 = vadd.s32 %v620, %v627
    %v629 = vadd.s32 %v622, %v624
    %v630 = vadd.s32 %v626, %v628
    %v631 = vadd.s32 %v629, %v630
    %v632 = vand.u32 %v631, 65535
    %v633 = vshrl.u32 %v631, 16
    %v634 = vcvt.s32.f32 %v632
    %v635 = vcvt.s32.f32 %v633
    %636 = vadd.xlane.f32.xlu0 %v634
    %v637 = vpop.xlane.xlu0 %636
    %638 = vadd.xlane.f32.xlu0 %v635
    %v639 = vpop.xlane.xlu0 %638
    %v640 = vcvt.f32.s32 %v637
    %v641 = vcvt.f32.s32 %v639
    %v642 = vshll.u32 %v641, 16
    %v643 = vadd.s32 %v642, %v640
    %vm644 = vcmp.lt.s32.totalorder %v643, 410
    %v645 = vsel %vm644, 1, 0
    %v646 = vadd.s32 %v599, %v645
    %v647 = vshll.u32 %v646, 24
    %v648 = vadd.s32 %v506, %v647
    %v649 = vadd.s32 %v648, 4194304
    %vm650 = vcmp.lt.s32.totalorder %v75, %v649
    %vm651 = vcmp.lt.s32.totalorder %v76, %v649
    %vm652 = vcmp.lt.s32.totalorder %v77, %v649
    %vm653 = vcmp.lt.s32.totalorder %v78, %v649
    %vm654 = vcmp.lt.s32.totalorder %v79, %v649
    %vm655 = vcmp.lt.s32.totalorder %v80, %v649
    %vm656 = vcmp.lt.s32.totalorder %v81, %v649
    %vm657 = vcmp.lt.s32.totalorder %v82, %v649
    %v658 = vsel %vm650, 1, 0
    %v659 = vsel %vm651, 1, 0
    %v660 = vsel %vm652, 1, 0
    %v661 = vsel %vm653, 1, 0
    %v662 = vsel %vm654, 1, 0
    %v663 = vsel %vm655, 1, 0
    %v664 = vsel %vm656, 1, 0
    %v665 = vsel %vm657, 1, 0
    %v666 = vsel %vm99, %v658, 0
    %v667 = vsel %vm99, %v659, 0
    %v668 = vsel %vm99, %v660, 0
    %v669 = vsel %vm99, %v661, 0
    %v670 = vsel %vm99, %v662, 0
    %v671 = vadd.s32 %v666, %v670
    %v672 = vsel %vm99, %v663, 0
    %v673 = vadd.s32 %v667, %v672
    %v674 = vsel %vm99, %v664, 0
    %v675 = vadd.s32 %v668, %v674
    %v676 = vsel %vm99, %v665, 0
    %v677 = vadd.s32 %v669, %v676
    %v678 = vadd.s32 %v671, %v673
    %v679 = vadd.s32 %v675, %v677
    %v680 = vadd.s32 %v678, %v679
    %v681 = vand.u32 %v680, 65535
    %v682 = vshrl.u32 %v680, 16
    %v683 = vcvt.s32.f32 %v681
    %v684 = vcvt.s32.f32 %v682
    %685 = vadd.xlane.f32.xlu0 %v683
    %v686 = vpop.xlane.xlu0 %685
    %687 = vadd.xlane.f32.xlu0 %v684
    %v688 = vpop.xlane.xlu0 %687
    %v689 = vcvt.f32.s32 %v686
    %v690 = vcvt.f32.s32 %v688
    %v691 = vshll.u32 %v690, 16
    %v692 = vadd.s32 %v691, %v689
    %vm693 = vcmp.lt.s32.totalorder %v692, 410
    %v694 = vsel %vm693, 1, 0
    %v695 = vadd.s32 %v648, 8388608
    %vm696 = vcmp.lt.s32.totalorder %v75, %v695
    %vm697 = vcmp.lt.s32.totalorder %v76, %v695
    %vm698 = vcmp.lt.s32.totalorder %v77, %v695
    %vm699 = vcmp.lt.s32.totalorder %v78, %v695
    %vm700 = vcmp.lt.s32.totalorder %v79, %v695
    %vm701 = vcmp.lt.s32.totalorder %v80, %v695
    %vm702 = vcmp.lt.s32.totalorder %v81, %v695
    %vm703 = vcmp.lt.s32.totalorder %v82, %v695
    %v704 = vsel %vm696, 1, 0
    %v705 = vsel %vm697, 1, 0
    %v706 = vsel %vm698, 1, 0
    %v707 = vsel %vm699, 1, 0
    %v708 = vsel %vm700, 1, 0
    %v709 = vsel %vm701, 1, 0
    %v710 = vsel %vm702, 1, 0
    %v711 = vsel %vm703, 1, 0
    %v712 = vsel %vm99, %v704, 0
    %v713 = vsel %vm99, %v705, 0
    %v714 = vsel %vm99, %v706, 0
    %v715 = vsel %vm99, %v707, 0
    %v716 = vsel %vm99, %v708, 0
    %v717 = vadd.s32 %v712, %v716
    %v718 = vsel %vm99, %v709, 0
    %v719 = vadd.s32 %v713, %v718
    %v720 = vsel %vm99, %v710, 0
    %v721 = vadd.s32 %v714, %v720
    %v722 = vsel %vm99, %v711, 0
    %v723 = vadd.s32 %v715, %v722
    %v724 = vadd.s32 %v717, %v719
    %v725 = vadd.s32 %v721, %v723
    %v726 = vadd.s32 %v724, %v725
    %v727 = vand.u32 %v726, 65535
    %v728 = vshrl.u32 %v726, 16
    %v729 = vcvt.s32.f32 %v727
    %v730 = vcvt.s32.f32 %v728
    %731 = vadd.xlane.f32.xlu0 %v729
    %v732 = vpop.xlane.xlu0 %731
    %733 = vadd.xlane.f32.xlu0 %v730
    %v734 = vpop.xlane.xlu0 %733
    %v735 = vcvt.f32.s32 %v732
    %v736 = vcvt.f32.s32 %v734
    %v737 = vshll.u32 %v736, 16
    %v738 = vadd.s32 %v737, %v735
    %vm739 = vcmp.lt.s32.totalorder %v738, 410
    %v740 = vsel %vm739, 1, 0
    %v741 = vadd.s32 %v694, %v740
    %v742 = vadd.s32 %v648, 12582912
    %vm743 = vcmp.lt.s32.totalorder %v75, %v742
    %vm744 = vcmp.lt.s32.totalorder %v76, %v742
    %vm745 = vcmp.lt.s32.totalorder %v77, %v742
    %vm746 = vcmp.lt.s32.totalorder %v78, %v742
    %vm747 = vcmp.lt.s32.totalorder %v79, %v742
    %vm748 = vcmp.lt.s32.totalorder %v80, %v742
    %vm749 = vcmp.lt.s32.totalorder %v81, %v742
    %vm750 = vcmp.lt.s32.totalorder %v82, %v742
    %v751 = vsel %vm743, 1, 0
    %v752 = vsel %vm744, 1, 0
    %v753 = vsel %vm745, 1, 0
    %v754 = vsel %vm746, 1, 0
    %v755 = vsel %vm747, 1, 0
    %v756 = vsel %vm748, 1, 0
    %v757 = vsel %vm749, 1, 0
    %v758 = vsel %vm750, 1, 0
    %v759 = vsel %vm99, %v751, 0
    %v760 = vsel %vm99, %v752, 0
    %v761 = vsel %vm99, %v753, 0
    %v762 = vsel %vm99, %v754, 0
    %v763 = vsel %vm99, %v755, 0
    %v764 = vadd.s32 %v759, %v763
    %v765 = vsel %vm99, %v756, 0
    %v766 = vadd.s32 %v760, %v765
    %v767 = vsel %vm99, %v757, 0
    %v768 = vadd.s32 %v761, %v767
    %v769 = vsel %vm99, %v758, 0
    %v770 = vadd.s32 %v762, %v769
    %v771 = vadd.s32 %v764, %v766
    %v772 = vadd.s32 %v768, %v770
    %v773 = vadd.s32 %v771, %v772
    %v774 = vand.u32 %v773, 65535
    %v775 = vshrl.u32 %v773, 16
    %v776 = vcvt.s32.f32 %v774
    %v777 = vcvt.s32.f32 %v775
    %778 = vadd.xlane.f32.xlu0 %v776
    %v779 = vpop.xlane.xlu0 %778
    %780 = vadd.xlane.f32.xlu0 %v777
    %v781 = vpop.xlane.xlu0 %780
    %v782 = vcvt.f32.s32 %v779
    %v783 = vcvt.f32.s32 %v781
    %v784 = vshll.u32 %v783, 16
    %v785 = vadd.s32 %v784, %v782
    %vm786 = vcmp.lt.s32.totalorder %v785, 410
    %v787 = vsel %vm786, 1, 0
    %v788 = vadd.s32 %v741, %v787
    %v789 = vshll.u32 %v788, 22
    %v790 = vadd.s32 %v648, %v789
    %v791 = vadd.s32 %v790, 1048576
    %vm792 = vcmp.lt.s32.totalorder %v75, %v791
    %vm793 = vcmp.lt.s32.totalorder %v76, %v791
    %vm794 = vcmp.lt.s32.totalorder %v77, %v791
    %vm795 = vcmp.lt.s32.totalorder %v78, %v791
    %vm796 = vcmp.lt.s32.totalorder %v79, %v791
    %vm797 = vcmp.lt.s32.totalorder %v80, %v791
    %vm798 = vcmp.lt.s32.totalorder %v81, %v791
    %vm799 = vcmp.lt.s32.totalorder %v82, %v791
    %v800 = vsel %vm792, 1, 0
    %v801 = vsel %vm793, 1, 0
    %v802 = vsel %vm794, 1, 0
    %v803 = vsel %vm795, 1, 0
    %v804 = vsel %vm796, 1, 0
    %v805 = vsel %vm797, 1, 0
    %v806 = vsel %vm798, 1, 0
    %v807 = vsel %vm799, 1, 0
    %v808 = vsel %vm99, %v800, 0
    %v809 = vsel %vm99, %v801, 0
    %v810 = vsel %vm99, %v802, 0
    %v811 = vsel %vm99, %v803, 0
    %v812 = vsel %vm99, %v804, 0
    %v813 = vadd.s32 %v808, %v812
    %v814 = vsel %vm99, %v805, 0
    %v815 = vadd.s32 %v809, %v814
    %v816 = vsel %vm99, %v806, 0
    %v817 = vadd.s32 %v810, %v816
    %v818 = vsel %vm99, %v807, 0
    %v819 = vadd.s32 %v811, %v818
    %v820 = vadd.s32 %v813, %v815
    %v821 = vadd.s32 %v817, %v819
    %v822 = vadd.s32 %v820, %v821
    %v823 = vand.u32 %v822, 65535
    %v824 = vshrl.u32 %v822, 16
    %v825 = vcvt.s32.f32 %v823
    %v826 = vcvt.s32.f32 %v824
    %827 = vadd.xlane.f32.xlu0 %v825
    %v828 = vpop.xlane.xlu0 %827
    %829 = vadd.xlane.f32.xlu0 %v826
    %v830 = vpop.xlane.xlu0 %829
    %v831 = vcvt.f32.s32 %v828
    %v832 = vcvt.f32.s32 %v830
    %v833 = vshll.u32 %v832, 16
    %v834 = vadd.s32 %v833, %v831
    %vm835 = vcmp.lt.s32.totalorder %v834, 410
    %v836 = vsel %vm835, 1, 0
    %v837 = vadd.s32 %v790, 2097152
    %vm838 = vcmp.lt.s32.totalorder %v75, %v837
    %vm839 = vcmp.lt.s32.totalorder %v76, %v837
    %vm840 = vcmp.lt.s32.totalorder %v77, %v837
    %vm841 = vcmp.lt.s32.totalorder %v78, %v837
    %vm842 = vcmp.lt.s32.totalorder %v79, %v837
    %vm843 = vcmp.lt.s32.totalorder %v80, %v837
    %vm844 = vcmp.lt.s32.totalorder %v81, %v837
    %vm845 = vcmp.lt.s32.totalorder %v82, %v837
    %v846 = vsel %vm838, 1, 0
    %v847 = vsel %vm839, 1, 0
    %v848 = vsel %vm840, 1, 0
    %v849 = vsel %vm841, 1, 0
    %v850 = vsel %vm842, 1, 0
    %v851 = vsel %vm843, 1, 0
    %v852 = vsel %vm844, 1, 0
    %v853 = vsel %vm845, 1, 0
    %v854 = vsel %vm99, %v846, 0
    %v855 = vsel %vm99, %v847, 0
    %v856 = vsel %vm99, %v848, 0
    %v857 = vsel %vm99, %v849, 0
    %v858 = vsel %vm99, %v850, 0
    %v859 = vadd.s32 %v854, %v858
    %v860 = vsel %vm99, %v851, 0
    %v861 = vadd.s32 %v855, %v860
    %v862 = vsel %vm99, %v852, 0
    %v863 = vadd.s32 %v856, %v862
    %v864 = vsel %vm99, %v853, 0
    %v865 = vadd.s32 %v857, %v864
    %v866 = vadd.s32 %v859, %v861
    %v867 = vadd.s32 %v863, %v865
    %v868 = vadd.s32 %v866, %v867
    %v869 = vand.u32 %v868, 65535
    %v870 = vshrl.u32 %v868, 16
    %v871 = vcvt.s32.f32 %v869
    %v872 = vcvt.s32.f32 %v870
    %873 = vadd.xlane.f32.xlu0 %v871
    %v874 = vpop.xlane.xlu0 %873
    %875 = vadd.xlane.f32.xlu0 %v872
    %v876 = vpop.xlane.xlu0 %875
    %v877 = vcvt.f32.s32 %v874
    %v878 = vcvt.f32.s32 %v876
    %v879 = vshll.u32 %v878, 16
    %v880 = vadd.s32 %v879, %v877
    %vm881 = vcmp.lt.s32.totalorder %v880, 410
    %v882 = vsel %vm881, 1, 0
    %v883 = vadd.s32 %v836, %v882
    %v884 = vadd.s32 %v790, 3145728
    %vm885 = vcmp.lt.s32.totalorder %v75, %v884
    %vm886 = vcmp.lt.s32.totalorder %v76, %v884
    %vm887 = vcmp.lt.s32.totalorder %v77, %v884
    %vm888 = vcmp.lt.s32.totalorder %v78, %v884
    %vm889 = vcmp.lt.s32.totalorder %v79, %v884
    %vm890 = vcmp.lt.s32.totalorder %v80, %v884
    %vm891 = vcmp.lt.s32.totalorder %v81, %v884
    %vm892 = vcmp.lt.s32.totalorder %v82, %v884
    %v893 = vsel %vm885, 1, 0
    %v894 = vsel %vm886, 1, 0
    %v895 = vsel %vm887, 1, 0
    %v896 = vsel %vm888, 1, 0
    %v897 = vsel %vm889, 1, 0
    %v898 = vsel %vm890, 1, 0
    %v899 = vsel %vm891, 1, 0
    %v900 = vsel %vm892, 1, 0
    %v901 = vsel %vm99, %v893, 0
    %v902 = vsel %vm99, %v894, 0
    %v903 = vsel %vm99, %v895, 0
    %v904 = vsel %vm99, %v896, 0
    %v905 = vsel %vm99, %v897, 0
    %v906 = vadd.s32 %v901, %v905
    %v907 = vsel %vm99, %v898, 0
    %v908 = vadd.s32 %v902, %v907
    %v909 = vsel %vm99, %v899, 0
    %v910 = vadd.s32 %v903, %v909
    %v911 = vsel %vm99, %v900, 0
    %v912 = vadd.s32 %v904, %v911
    %v913 = vadd.s32 %v906, %v908
    %v914 = vadd.s32 %v910, %v912
    %v915 = vadd.s32 %v913, %v914
    %v916 = vand.u32 %v915, 65535
    %v917 = vshrl.u32 %v915, 16
    %v918 = vcvt.s32.f32 %v916
    %v919 = vcvt.s32.f32 %v917
    %920 = vadd.xlane.f32.xlu0 %v918
    %v921 = vpop.xlane.xlu0 %920
    %922 = vadd.xlane.f32.xlu0 %v919
    %v923 = vpop.xlane.xlu0 %922
    %v924 = vcvt.f32.s32 %v921
    %v925 = vcvt.f32.s32 %v923
    %v926 = vshll.u32 %v925, 16
    %v927 = vadd.s32 %v926, %v924
    %vm928 = vcmp.lt.s32.totalorder %v927, 410
    %v929 = vsel %vm928, 1, 0
    %v930 = vadd.s32 %v883, %v929
    %v931 = vshll.u32 %v930, 20
    %v932 = vadd.s32 %v790, %v931
    %v933 = vadd.s32 %v932, 262144
    %vm934 = vcmp.lt.s32.totalorder %v75, %v933
    %vm935 = vcmp.lt.s32.totalorder %v76, %v933
    %vm936 = vcmp.lt.s32.totalorder %v77, %v933
    %vm937 = vcmp.lt.s32.totalorder %v78, %v933
    %vm938 = vcmp.lt.s32.totalorder %v79, %v933
    %vm939 = vcmp.lt.s32.totalorder %v80, %v933
    %vm940 = vcmp.lt.s32.totalorder %v81, %v933
    %vm941 = vcmp.lt.s32.totalorder %v82, %v933
    %v942 = vsel %vm934, 1, 0
    %v943 = vsel %vm935, 1, 0
    %v944 = vsel %vm936, 1, 0
    %v945 = vsel %vm937, 1, 0
    %v946 = vsel %vm938, 1, 0
    %v947 = vsel %vm939, 1, 0
    %v948 = vsel %vm940, 1, 0
    %v949 = vsel %vm941, 1, 0
    %v950 = vsel %vm99, %v942, 0
    %v951 = vsel %vm99, %v943, 0
    %v952 = vsel %vm99, %v944, 0
    %v953 = vsel %vm99, %v945, 0
    %v954 = vsel %vm99, %v946, 0
    %v955 = vadd.s32 %v950, %v954
    %v956 = vsel %vm99, %v947, 0
    %v957 = vadd.s32 %v951, %v956
    %v958 = vsel %vm99, %v948, 0
    %v959 = vadd.s32 %v952, %v958
    %v960 = vsel %vm99, %v949, 0
    %v961 = vadd.s32 %v953, %v960
    %v962 = vadd.s32 %v955, %v957
    %v963 = vadd.s32 %v959, %v961
    %v964 = vadd.s32 %v962, %v963
    %v965 = vand.u32 %v964, 65535
    %v966 = vshrl.u32 %v964, 16
    %v967 = vcvt.s32.f32 %v965
    %v968 = vcvt.s32.f32 %v966
    %969 = vadd.xlane.f32.xlu0 %v967
    %v970 = vpop.xlane.xlu0 %969
    %971 = vadd.xlane.f32.xlu0 %v968
    %v972 = vpop.xlane.xlu0 %971
    %v973 = vcvt.f32.s32 %v970
    %v974 = vcvt.f32.s32 %v972
    %v975 = vshll.u32 %v974, 16
    %v976 = vadd.s32 %v975, %v973
    %vm977 = vcmp.lt.s32.totalorder %v976, 410
    %v978 = vsel %vm977, 1, 0
    %v979 = vadd.s32 %v932, 524288
    %vm980 = vcmp.lt.s32.totalorder %v75, %v979
    %vm981 = vcmp.lt.s32.totalorder %v76, %v979
    %vm982 = vcmp.lt.s32.totalorder %v77, %v979
    %vm983 = vcmp.lt.s32.totalorder %v78, %v979
    %vm984 = vcmp.lt.s32.totalorder %v79, %v979
    %vm985 = vcmp.lt.s32.totalorder %v80, %v979
    %vm986 = vcmp.lt.s32.totalorder %v81, %v979
    %vm987 = vcmp.lt.s32.totalorder %v82, %v979
    %v988 = vsel %vm980, 1, 0
    %v989 = vsel %vm981, 1, 0
    %v990 = vsel %vm982, 1, 0
    %v991 = vsel %vm983, 1, 0
    %v992 = vsel %vm984, 1, 0
    %v993 = vsel %vm985, 1, 0
    %v994 = vsel %vm986, 1, 0
    %v995 = vsel %vm987, 1, 0
    %v996 = vsel %vm99, %v988, 0
    %v997 = vsel %vm99, %v989, 0
    %v998 = vsel %vm99, %v990, 0
    %v999 = vsel %vm99, %v991, 0
    %v1000 = vsel %vm99, %v992, 0
    %v1001 = vadd.s32 %v996, %v1000
    %v1002 = vsel %vm99, %v993, 0
    %v1003 = vadd.s32 %v997, %v1002
    %v1004 = vsel %vm99, %v994, 0
    %v1005 = vadd.s32 %v998, %v1004
    %v1006 = vsel %vm99, %v995, 0
    %v1007 = vadd.s32 %v999, %v1006
    %v1008 = vadd.s32 %v1001, %v1003
    %v1009 = vadd.s32 %v1005, %v1007
    %v1010 = vadd.s32 %v1008, %v1009
    %v1011 = vand.u32 %v1010, 65535
    %v1012 = vshrl.u32 %v1010, 16
    %v1013 = vcvt.s32.f32 %v1011
    %v1014 = vcvt.s32.f32 %v1012
    %1015 = vadd.xlane.f32.xlu0 %v1013
    %v1016 = vpop.xlane.xlu0 %1015
    %1017 = vadd.xlane.f32.xlu0 %v1014
    %v1018 = vpop.xlane.xlu0 %1017
    %v1019 = vcvt.f32.s32 %v1016
    %v1020 = vcvt.f32.s32 %v1018
    %v1021 = vshll.u32 %v1020, 16
    %v1022 = vadd.s32 %v1021, %v1019
    %vm1023 = vcmp.lt.s32.totalorder %v1022, 410
    %v1024 = vsel %vm1023, 1, 0
    %v1025 = vadd.s32 %v978, %v1024
    %v1026 = vadd.s32 %v932, 786432
    %vm1027 = vcmp.lt.s32.totalorder %v75, %v1026
    %vm1028 = vcmp.lt.s32.totalorder %v76, %v1026
    %vm1029 = vcmp.lt.s32.totalorder %v77, %v1026
    %vm1030 = vcmp.lt.s32.totalorder %v78, %v1026
    %vm1031 = vcmp.lt.s32.totalorder %v79, %v1026
    %vm1032 = vcmp.lt.s32.totalorder %v80, %v1026
    %vm1033 = vcmp.lt.s32.totalorder %v81, %v1026
    %vm1034 = vcmp.lt.s32.totalorder %v82, %v1026
    %v1035 = vsel %vm1027, 1, 0
    %v1036 = vsel %vm1028, 1, 0
    %v1037 = vsel %vm1029, 1, 0
    %v1038 = vsel %vm1030, 1, 0
    %v1039 = vsel %vm1031, 1, 0
    %v1040 = vsel %vm1032, 1, 0
    %v1041 = vsel %vm1033, 1, 0
    %v1042 = vsel %vm1034, 1, 0
    %v1043 = vsel %vm99, %v1035, 0
    %v1044 = vsel %vm99, %v1036, 0
    %v1045 = vsel %vm99, %v1037, 0
    %v1046 = vsel %vm99, %v1038, 0
    %v1047 = vsel %vm99, %v1039, 0
    %v1048 = vadd.s32 %v1043, %v1047
    %v1049 = vsel %vm99, %v1040, 0
    %v1050 = vadd.s32 %v1044, %v1049
    %v1051 = vsel %vm99, %v1041, 0
    %v1052 = vadd.s32 %v1045, %v1051
    %v1053 = vsel %vm99, %v1042, 0
    %v1054 = vadd.s32 %v1046, %v1053
    %v1055 = vadd.s32 %v1048, %v1050
    %v1056 = vadd.s32 %v1052, %v1054
    %v1057 = vadd.s32 %v1055, %v1056
    %v1058 = vand.u32 %v1057, 65535
    %v1059 = vshrl.u32 %v1057, 16
    %v1060 = vcvt.s32.f32 %v1058
    %v1061 = vcvt.s32.f32 %v1059
    %1062 = vadd.xlane.f32.xlu0 %v1060
    %v1063 = vpop.xlane.xlu0 %1062
    %1064 = vadd.xlane.f32.xlu0 %v1061
    %v1065 = vpop.xlane.xlu0 %1064
    %v1066 = vcvt.f32.s32 %v1063
    %v1067 = vcvt.f32.s32 %v1065
    %v1068 = vshll.u32 %v1067, 16
    %v1069 = vadd.s32 %v1068, %v1066
    %vm1070 = vcmp.lt.s32.totalorder %v1069, 410
    %v1071 = vsel %vm1070, 1, 0
    %v1072 = vadd.s32 %v1025, %v1071
    %v1073 = vshll.u32 %v1072, 18
    %v1074 = vadd.s32 %v932, %v1073
    %v1075 = vadd.s32 %v1074, 65536
    %vm1076 = vcmp.lt.s32.totalorder %v75, %v1075
    %vm1077 = vcmp.lt.s32.totalorder %v76, %v1075
    %vm1078 = vcmp.lt.s32.totalorder %v77, %v1075
    %vm1079 = vcmp.lt.s32.totalorder %v78, %v1075
    %vm1080 = vcmp.lt.s32.totalorder %v79, %v1075
    %vm1081 = vcmp.lt.s32.totalorder %v80, %v1075
    %vm1082 = vcmp.lt.s32.totalorder %v81, %v1075
    %vm1083 = vcmp.lt.s32.totalorder %v82, %v1075
    %v1084 = vsel %vm1076, 1, 0
    %v1085 = vsel %vm1077, 1, 0
    %v1086 = vsel %vm1078, 1, 0
    %v1087 = vsel %vm1079, 1, 0
    %v1088 = vsel %vm1080, 1, 0
    %v1089 = vsel %vm1081, 1, 0
    %v1090 = vsel %vm1082, 1, 0
    %v1091 = vsel %vm1083, 1, 0
    %v1092 = vsel %vm99, %v1084, 0
    %v1093 = vsel %vm99, %v1085, 0
    %v1094 = vsel %vm99, %v1086, 0
    %v1095 = vsel %vm99, %v1087, 0
    %v1096 = vsel %vm99, %v1088, 0
    %v1097 = vadd.s32 %v1092, %v1096
    %v1098 = vsel %vm99, %v1089, 0
    %v1099 = vadd.s32 %v1093, %v1098
    %v1100 = vsel %vm99, %v1090, 0
    %v1101 = vadd.s32 %v1094, %v1100
    %v1102 = vsel %vm99, %v1091, 0
    %v1103 = vadd.s32 %v1095, %v1102
    %v1104 = vadd.s32 %v1097, %v1099
    %v1105 = vadd.s32 %v1101, %v1103
    %v1106 = vadd.s32 %v1104, %v1105
    %v1107 = vand.u32 %v1106, 65535
    %v1108 = vshrl.u32 %v1106, 16
    %v1109 = vcvt.s32.f32 %v1107
    %v1110 = vcvt.s32.f32 %v1108
    %1111 = vadd.xlane.f32.xlu0 %v1109
    %v1112 = vpop.xlane.xlu0 %1111
    %1113 = vadd.xlane.f32.xlu0 %v1110
    %v1114 = vpop.xlane.xlu0 %1113
    %v1115 = vcvt.f32.s32 %v1112
    %v1116 = vcvt.f32.s32 %v1114
    %v1117 = vshll.u32 %v1116, 16
    %v1118 = vadd.s32 %v1117, %v1115
    %vm1119 = vcmp.lt.s32.totalorder %v1118, 410
    %v1120 = vsel %vm1119, 1, 0
    %v1121 = vadd.s32 %v1074, 131072
    %vm1122 = vcmp.lt.s32.totalorder %v75, %v1121
    %vm1123 = vcmp.lt.s32.totalorder %v76, %v1121
    %vm1124 = vcmp.lt.s32.totalorder %v77, %v1121
    %vm1125 = vcmp.lt.s32.totalorder %v78, %v1121
    %vm1126 = vcmp.lt.s32.totalorder %v79, %v1121
    %vm1127 = vcmp.lt.s32.totalorder %v80, %v1121
    %vm1128 = vcmp.lt.s32.totalorder %v81, %v1121
    %vm1129 = vcmp.lt.s32.totalorder %v82, %v1121
    %v1130 = vsel %vm1122, 1, 0
    %v1131 = vsel %vm1123, 1, 0
    %v1132 = vsel %vm1124, 1, 0
    %v1133 = vsel %vm1125, 1, 0
    %v1134 = vsel %vm1126, 1, 0
    %v1135 = vsel %vm1127, 1, 0
    %v1136 = vsel %vm1128, 1, 0
    %v1137 = vsel %vm1129, 1, 0
    %v1138 = vsel %vm99, %v1130, 0
    %v1139 = vsel %vm99, %v1131, 0
    %v1140 = vsel %vm99, %v1132, 0
    %v1141 = vsel %vm99, %v1133, 0
    %v1142 = vsel %vm99, %v1134, 0
    %v1143 = vadd.s32 %v1138, %v1142
    %v1144 = vsel %vm99, %v1135, 0
    %v1145 = vadd.s32 %v1139, %v1144
    %v1146 = vsel %vm99, %v1136, 0
    %v1147 = vadd.s32 %v1140, %v1146
    %v1148 = vsel %vm99, %v1137, 0
    %v1149 = vadd.s32 %v1141, %v1148
    %v1150 = vadd.s32 %v1143, %v1145
    %v1151 = vadd.s32 %v1147, %v1149
    %v1152 = vadd.s32 %v1150, %v1151
    %v1153 = vand.u32 %v1152, 65535
    %v1154 = vshrl.u32 %v1152, 16
    %v1155 = vcvt.s32.f32 %v1153
    %v1156 = vcvt.s32.f32 %v1154
    %1157 = vadd.xlane.f32.xlu0 %v1155
    %v1158 = vpop.xlane.xlu0 %1157
    %1159 = vadd.xlane.f32.xlu0 %v1156
    %v1160 = vpop.xlane.xlu0 %1159
    %v1161 = vcvt.f32.s32 %v1158
    %v1162 = vcvt.f32.s32 %v1160
    %v1163 = vshll.u32 %v1162, 16
    %v1164 = vadd.s32 %v1163, %v1161
    %vm1165 = vcmp.lt.s32.totalorder %v1164, 410
    %v1166 = vsel %vm1165, 1, 0
    %v1167 = vadd.s32 %v1120, %v1166
    %v1168 = vadd.s32 %v1074, 196608
    %vm1169 = vcmp.lt.s32.totalorder %v75, %v1168
    %vm1170 = vcmp.lt.s32.totalorder %v76, %v1168
    %vm1171 = vcmp.lt.s32.totalorder %v77, %v1168
    %vm1172 = vcmp.lt.s32.totalorder %v78, %v1168
    %vm1173 = vcmp.lt.s32.totalorder %v79, %v1168
    %vm1174 = vcmp.lt.s32.totalorder %v80, %v1168
    %vm1175 = vcmp.lt.s32.totalorder %v81, %v1168
    %vm1176 = vcmp.lt.s32.totalorder %v82, %v1168
    %v1177 = vsel %vm1169, 1, 0
    %v1178 = vsel %vm1170, 1, 0
    %v1179 = vsel %vm1171, 1, 0
    %v1180 = vsel %vm1172, 1, 0
    %v1181 = vsel %vm1173, 1, 0
    %v1182 = vsel %vm1174, 1, 0
    %v1183 = vsel %vm1175, 1, 0
    %v1184 = vsel %vm1176, 1, 0
    %v1185 = vsel %vm99, %v1177, 0
    %v1186 = vsel %vm99, %v1178, 0
    %v1187 = vsel %vm99, %v1179, 0
    %v1188 = vsel %vm99, %v1180, 0
    %v1189 = vsel %vm99, %v1181, 0
    %v1190 = vadd.s32 %v1185, %v1189
    %v1191 = vsel %vm99, %v1182, 0
    %v1192 = vadd.s32 %v1186, %v1191
    %v1193 = vsel %vm99, %v1183, 0
    %v1194 = vadd.s32 %v1187, %v1193
    %v1195 = vsel %vm99, %v1184, 0
    %v1196 = vadd.s32 %v1188, %v1195
    %v1197 = vadd.s32 %v1190, %v1192
    %v1198 = vadd.s32 %v1194, %v1196
    %v1199 = vadd.s32 %v1197, %v1198
    %v1200 = vand.u32 %v1199, 65535
    %v1201 = vshrl.u32 %v1199, 16
    %v1202 = vcvt.s32.f32 %v1200
    %v1203 = vcvt.s32.f32 %v1201
    %1204 = vadd.xlane.f32.xlu0 %v1202
    %v1205 = vpop.xlane.xlu0 %1204
    %1206 = vadd.xlane.f32.xlu0 %v1203
    %v1207 = vpop.xlane.xlu0 %1206
    %v1208 = vcvt.f32.s32 %v1205
    %v1209 = vcvt.f32.s32 %v1207
    %v1210 = vshll.u32 %v1209, 16
    %v1211 = vadd.s32 %v1210, %v1208
    %vm1212 = vcmp.lt.s32.totalorder %v1211, 410
    %v1213 = vsel %vm1212, 1, 0
    %v1214 = vadd.s32 %v1167, %v1213
    %v1215 = vshll.u32 %v1214, 16
    %v1216 = vadd.s32 %v1074, %v1215
    %v1217 = vadd.s32 %v1216, 16384
    %vm1218 = vcmp.lt.s32.totalorder %v75, %v1217
    %vm1219 = vcmp.lt.s32.totalorder %v76, %v1217
    %vm1220 = vcmp.lt.s32.totalorder %v77, %v1217
    %vm1221 = vcmp.lt.s32.totalorder %v78, %v1217
    %vm1222 = vcmp.lt.s32.totalorder %v79, %v1217
    %vm1223 = vcmp.lt.s32.totalorder %v80, %v1217
    %vm1224 = vcmp.lt.s32.totalorder %v81, %v1217
    %vm1225 = vcmp.lt.s32.totalorder %v82, %v1217
    %v1226 = vsel %vm1218, 1, 0
    %v1227 = vsel %vm1219, 1, 0
    %v1228 = vsel %vm1220, 1, 0
    %v1229 = vsel %vm1221, 1, 0
    %v1230 = vsel %vm1222, 1, 0
    %v1231 = vsel %vm1223, 1, 0
    %v1232 = vsel %vm1224, 1, 0
    %v1233 = vsel %vm1225, 1, 0
    %v1234 = vsel %vm99, %v1226, 0
    %v1235 = vsel %vm99, %v1227, 0
    %v1236 = vsel %vm99, %v1228, 0
    %v1237 = vsel %vm99, %v1229, 0
    %v1238 = vsel %vm99, %v1230, 0
    %v1239 = vadd.s32 %v1234, %v1238
    %v1240 = vsel %vm99, %v1231, 0
    %v1241 = vadd.s32 %v1235, %v1240
    %v1242 = vsel %vm99, %v1232, 0
    %v1243 = vadd.s32 %v1236, %v1242
    %v1244 = vsel %vm99, %v1233, 0
    %v1245 = vadd.s32 %v1237, %v1244
    %v1246 = vadd.s32 %v1239, %v1241
    %v1247 = vadd.s32 %v1243, %v1245
    %v1248 = vadd.s32 %v1246, %v1247
    %v1249 = vand.u32 %v1248, 65535
    %v1250 = vshrl.u32 %v1248, 16
    %v1251 = vcvt.s32.f32 %v1249
    %v1252 = vcvt.s32.f32 %v1250
    %1253 = vadd.xlane.f32.xlu0 %v1251
    %v1254 = vpop.xlane.xlu0 %1253
    %1255 = vadd.xlane.f32.xlu0 %v1252
    %v1256 = vpop.xlane.xlu0 %1255
    %v1257 = vcvt.f32.s32 %v1254
    %v1258 = vcvt.f32.s32 %v1256
    %v1259 = vshll.u32 %v1258, 16
    %v1260 = vadd.s32 %v1259, %v1257
    %vm1261 = vcmp.lt.s32.totalorder %v1260, 410
    %v1262 = vsel %vm1261, 1, 0
    %v1263 = vadd.s32 %v1216, 32768
    %vm1264 = vcmp.lt.s32.totalorder %v75, %v1263
    %vm1265 = vcmp.lt.s32.totalorder %v76, %v1263
    %vm1266 = vcmp.lt.s32.totalorder %v77, %v1263
    %vm1267 = vcmp.lt.s32.totalorder %v78, %v1263
    %vm1268 = vcmp.lt.s32.totalorder %v79, %v1263
    %vm1269 = vcmp.lt.s32.totalorder %v80, %v1263
    %vm1270 = vcmp.lt.s32.totalorder %v81, %v1263
    %vm1271 = vcmp.lt.s32.totalorder %v82, %v1263
    %v1272 = vsel %vm1264, 1, 0
    %v1273 = vsel %vm1265, 1, 0
    %v1274 = vsel %vm1266, 1, 0
    %v1275 = vsel %vm1267, 1, 0
    %v1276 = vsel %vm1268, 1, 0
    %v1277 = vsel %vm1269, 1, 0
    %v1278 = vsel %vm1270, 1, 0
    %v1279 = vsel %vm1271, 1, 0
    %v1280 = vsel %vm99, %v1272, 0
    %v1281 = vsel %vm99, %v1273, 0
    %v1282 = vsel %vm99, %v1274, 0
    %v1283 = vsel %vm99, %v1275, 0
    %v1284 = vsel %vm99, %v1276, 0
    %v1285 = vadd.s32 %v1280, %v1284
    %v1286 = vsel %vm99, %v1277, 0
    %v1287 = vadd.s32 %v1281, %v1286
    %v1288 = vsel %vm99, %v1278, 0
    %v1289 = vadd.s32 %v1282, %v1288
    %v1290 = vsel %vm99, %v1279, 0
    %v1291 = vadd.s32 %v1283, %v1290
    %v1292 = vadd.s32 %v1285, %v1287
    %v1293 = vadd.s32 %v1289, %v1291
    %v1294 = vadd.s32 %v1292, %v1293
    %v1295 = vand.u32 %v1294, 65535
    %v1296 = vshrl.u32 %v1294, 16
    %v1297 = vcvt.s32.f32 %v1295
    %v1298 = vcvt.s32.f32 %v1296
    %1299 = vadd.xlane.f32.xlu0 %v1297
    %v1300 = vpop.xlane.xlu0 %1299
    %1301 = vadd.xlane.f32.xlu0 %v1298
    %v1302 = vpop.xlane.xlu0 %1301
    %v1303 = vcvt.f32.s32 %v1300
    %v1304 = vcvt.f32.s32 %v1302
    %v1305 = vshll.u32 %v1304, 16
    %v1306 = vadd.s32 %v1305, %v1303
    %vm1307 = vcmp.lt.s32.totalorder %v1306, 410
    %v1308 = vsel %vm1307, 1, 0
    %v1309 = vadd.s32 %v1262, %v1308
    %v1310 = vadd.s32 %v1216, 49152
    %vm1311 = vcmp.lt.s32.totalorder %v75, %v1310
    %vm1312 = vcmp.lt.s32.totalorder %v76, %v1310
    %vm1313 = vcmp.lt.s32.totalorder %v77, %v1310
    %vm1314 = vcmp.lt.s32.totalorder %v78, %v1310
    %vm1315 = vcmp.lt.s32.totalorder %v79, %v1310
    %vm1316 = vcmp.lt.s32.totalorder %v80, %v1310
    %vm1317 = vcmp.lt.s32.totalorder %v81, %v1310
    %vm1318 = vcmp.lt.s32.totalorder %v82, %v1310
    %v1319 = vsel %vm1311, 1, 0
    %v1320 = vsel %vm1312, 1, 0
    %v1321 = vsel %vm1313, 1, 0
    %v1322 = vsel %vm1314, 1, 0
    %v1323 = vsel %vm1315, 1, 0
    %v1324 = vsel %vm1316, 1, 0
    %v1325 = vsel %vm1317, 1, 0
    %v1326 = vsel %vm1318, 1, 0
    %v1327 = vsel %vm99, %v1319, 0
    %v1328 = vsel %vm99, %v1320, 0
    %v1329 = vsel %vm99, %v1321, 0
    %v1330 = vsel %vm99, %v1322, 0
    %v1331 = vsel %vm99, %v1323, 0
    %v1332 = vadd.s32 %v1327, %v1331
    %v1333 = vsel %vm99, %v1324, 0
    %v1334 = vadd.s32 %v1328, %v1333
    %v1335 = vsel %vm99, %v1325, 0
    %v1336 = vadd.s32 %v1329, %v1335
    %v1337 = vsel %vm99, %v1326, 0
    %v1338 = vadd.s32 %v1330, %v1337
    %v1339 = vadd.s32 %v1332, %v1334
    %v1340 = vadd.s32 %v1336, %v1338
    %v1341 = vadd.s32 %v1339, %v1340
    %v1342 = vand.u32 %v1341, 65535
    %v1343 = vshrl.u32 %v1341, 16
    %v1344 = vcvt.s32.f32 %v1342
    %v1345 = vcvt.s32.f32 %v1343
    %1346 = vadd.xlane.f32.xlu0 %v1344
    %v1347 = vpop.xlane.xlu0 %1346
    %1348 = vadd.xlane.f32.xlu0 %v1345
    %v1349 = vpop.xlane.xlu0 %1348
    %v1350 = vcvt.f32.s32 %v1347
    %v1351 = vcvt.f32.s32 %v1349
    %v1352 = vshll.u32 %v1351, 16
    %v1353 = vadd.s32 %v1352, %v1350
    %vm1354 = vcmp.lt.s32.totalorder %v1353, 410
    %v1355 = vsel %vm1354, 1, 0
    %v1356 = vadd.s32 %v1309, %v1355
    %v1357 = vshll.u32 %v1356, 14
    %v1358 = vadd.s32 %v1216, %v1357
    %v1359 = vadd.s32 %v1358, 4096
    %vm1360 = vcmp.lt.s32.totalorder %v75, %v1359
    %vm1361 = vcmp.lt.s32.totalorder %v76, %v1359
    %vm1362 = vcmp.lt.s32.totalorder %v77, %v1359
    %vm1363 = vcmp.lt.s32.totalorder %v78, %v1359
    %vm1364 = vcmp.lt.s32.totalorder %v79, %v1359
    %vm1365 = vcmp.lt.s32.totalorder %v80, %v1359
    %vm1366 = vcmp.lt.s32.totalorder %v81, %v1359
    %vm1367 = vcmp.lt.s32.totalorder %v82, %v1359
    %v1368 = vsel %vm1360, 1, 0
    %v1369 = vsel %vm1361, 1, 0
    %v1370 = vsel %vm1362, 1, 0
    %v1371 = vsel %vm1363, 1, 0
    %v1372 = vsel %vm1364, 1, 0
    %v1373 = vsel %vm1365, 1, 0
    %v1374 = vsel %vm1366, 1, 0
    %v1375 = vsel %vm1367, 1, 0
    %v1376 = vsel %vm99, %v1368, 0
    %v1377 = vsel %vm99, %v1369, 0
    %v1378 = vsel %vm99, %v1370, 0
    %v1379 = vsel %vm99, %v1371, 0
    %v1380 = vsel %vm99, %v1372, 0
    %v1381 = vadd.s32 %v1376, %v1380
    %v1382 = vsel %vm99, %v1373, 0
    %v1383 = vadd.s32 %v1377, %v1382
    %v1384 = vsel %vm99, %v1374, 0
    %v1385 = vadd.s32 %v1378, %v1384
    %v1386 = vsel %vm99, %v1375, 0
    %v1387 = vadd.s32 %v1379, %v1386
    %v1388 = vadd.s32 %v1381, %v1383
    %v1389 = vadd.s32 %v1385, %v1387
    %v1390 = vadd.s32 %v1388, %v1389
    %v1391 = vand.u32 %v1390, 65535
    %v1392 = vshrl.u32 %v1390, 16
    %v1393 = vcvt.s32.f32 %v1391
    %v1394 = vcvt.s32.f32 %v1392
    %1395 = vadd.xlane.f32.xlu0 %v1393
    %v1396 = vpop.xlane.xlu0 %1395
    %1397 = vadd.xlane.f32.xlu0 %v1394
    %v1398 = vpop.xlane.xlu0 %1397
    %v1399 = vcvt.f32.s32 %v1396
    %v1400 = vcvt.f32.s32 %v1398
    %v1401 = vshll.u32 %v1400, 16
    %v1402 = vadd.s32 %v1401, %v1399
    %vm1403 = vcmp.lt.s32.totalorder %v1402, 410
    %v1404 = vsel %vm1403, 1, 0
    %v1405 = vadd.s32 %v1358, 8192
    %vm1406 = vcmp.lt.s32.totalorder %v75, %v1405
    %vm1407 = vcmp.lt.s32.totalorder %v76, %v1405
    %vm1408 = vcmp.lt.s32.totalorder %v77, %v1405
    %vm1409 = vcmp.lt.s32.totalorder %v78, %v1405
    %vm1410 = vcmp.lt.s32.totalorder %v79, %v1405
    %vm1411 = vcmp.lt.s32.totalorder %v80, %v1405
    %vm1412 = vcmp.lt.s32.totalorder %v81, %v1405
    %vm1413 = vcmp.lt.s32.totalorder %v82, %v1405
    %v1414 = vsel %vm1406, 1, 0
    %v1415 = vsel %vm1407, 1, 0
    %v1416 = vsel %vm1408, 1, 0
    %v1417 = vsel %vm1409, 1, 0
    %v1418 = vsel %vm1410, 1, 0
    %v1419 = vsel %vm1411, 1, 0
    %v1420 = vsel %vm1412, 1, 0
    %v1421 = vsel %vm1413, 1, 0
    %v1422 = vsel %vm99, %v1414, 0
    %v1423 = vsel %vm99, %v1415, 0
    %v1424 = vsel %vm99, %v1416, 0
    %v1425 = vsel %vm99, %v1417, 0
    %v1426 = vsel %vm99, %v1418, 0
    %v1427 = vadd.s32 %v1422, %v1426
    %v1428 = vsel %vm99, %v1419, 0
    %v1429 = vadd.s32 %v1423, %v1428
    %v1430 = vsel %vm99, %v1420, 0
    %v1431 = vadd.s32 %v1424, %v1430
    %v1432 = vsel %vm99, %v1421, 0
    %v1433 = vadd.s32 %v1425, %v1432
    %v1434 = vadd.s32 %v1427, %v1429
    %v1435 = vadd.s32 %v1431, %v1433
    %v1436 = vadd.s32 %v1434, %v1435
    %v1437 = vand.u32 %v1436, 65535
    %v1438 = vshrl.u32 %v1436, 16
    %v1439 = vcvt.s32.f32 %v1437
    %v1440 = vcvt.s32.f32 %v1438
    %1441 = vadd.xlane.f32.xlu0 %v1439
    %v1442 = vpop.xlane.xlu0 %1441
    %1443 = vadd.xlane.f32.xlu0 %v1440
    %v1444 = vpop.xlane.xlu0 %1443
    %v1445 = vcvt.f32.s32 %v1442
    %v1446 = vcvt.f32.s32 %v1444
    %v1447 = vshll.u32 %v1446, 16
    %v1448 = vadd.s32 %v1447, %v1445
    %vm1449 = vcmp.lt.s32.totalorder %v1448, 410
    %v1450 = vsel %vm1449, 1, 0
    %v1451 = vadd.s32 %v1404, %v1450
    %v1452 = vadd.s32 %v1358, 12288
    %vm1453 = vcmp.lt.s32.totalorder %v75, %v1452
    %vm1454 = vcmp.lt.s32.totalorder %v76, %v1452
    %vm1455 = vcmp.lt.s32.totalorder %v77, %v1452
    %vm1456 = vcmp.lt.s32.totalorder %v78, %v1452
    %vm1457 = vcmp.lt.s32.totalorder %v79, %v1452
    %vm1458 = vcmp.lt.s32.totalorder %v80, %v1452
    %vm1459 = vcmp.lt.s32.totalorder %v81, %v1452
    %vm1460 = vcmp.lt.s32.totalorder %v82, %v1452
    %v1461 = vsel %vm1453, 1, 0
    %v1462 = vsel %vm1454, 1, 0
    %v1463 = vsel %vm1455, 1, 0
    %v1464 = vsel %vm1456, 1, 0
    %v1465 = vsel %vm1457, 1, 0
    %v1466 = vsel %vm1458, 1, 0
    %v1467 = vsel %vm1459, 1, 0
    %v1468 = vsel %vm1460, 1, 0
    %v1469 = vsel %vm99, %v1461, 0
    %v1470 = vsel %vm99, %v1462, 0
    %v1471 = vsel %vm99, %v1463, 0
    %v1472 = vsel %vm99, %v1464, 0
    %v1473 = vsel %vm99, %v1465, 0
    %v1474 = vadd.s32 %v1469, %v1473
    %v1475 = vsel %vm99, %v1466, 0
    %v1476 = vadd.s32 %v1470, %v1475
    %v1477 = vsel %vm99, %v1467, 0
    %v1478 = vadd.s32 %v1471, %v1477
    %v1479 = vsel %vm99, %v1468, 0
    %v1480 = vadd.s32 %v1472, %v1479
    %v1481 = vadd.s32 %v1474, %v1476
    %v1482 = vadd.s32 %v1478, %v1480
    %v1483 = vadd.s32 %v1481, %v1482
    %v1484 = vand.u32 %v1483, 65535
    %v1485 = vshrl.u32 %v1483, 16
    %v1486 = vcvt.s32.f32 %v1484
    %v1487 = vcvt.s32.f32 %v1485
    %1488 = vadd.xlane.f32.xlu0 %v1486
    %v1489 = vpop.xlane.xlu0 %1488
    %1490 = vadd.xlane.f32.xlu0 %v1487
    %v1491 = vpop.xlane.xlu0 %1490
    %v1492 = vcvt.f32.s32 %v1489
    %v1493 = vcvt.f32.s32 %v1491
    %v1494 = vshll.u32 %v1493, 16
    %v1495 = vadd.s32 %v1494, %v1492
    %vm1496 = vcmp.lt.s32.totalorder %v1495, 410
    %v1497 = vsel %vm1496, 1, 0
    %v1498 = vadd.s32 %v1451, %v1497
    %v1499 = vshll.u32 %v1498, 12
    %v1500 = vadd.s32 %v1358, %v1499
    %v1501 = vadd.s32 %v1500, 1024
    %vm1502 = vcmp.lt.s32.totalorder %v75, %v1501
    %vm1503 = vcmp.lt.s32.totalorder %v76, %v1501
    %vm1504 = vcmp.lt.s32.totalorder %v77, %v1501
    %vm1505 = vcmp.lt.s32.totalorder %v78, %v1501
    %vm1506 = vcmp.lt.s32.totalorder %v79, %v1501
    %vm1507 = vcmp.lt.s32.totalorder %v80, %v1501
    %vm1508 = vcmp.lt.s32.totalorder %v81, %v1501
    %vm1509 = vcmp.lt.s32.totalorder %v82, %v1501
    %v1510 = vsel %vm1502, 1, 0
    %v1511 = vsel %vm1503, 1, 0
    %v1512 = vsel %vm1504, 1, 0
    %v1513 = vsel %vm1505, 1, 0
    %v1514 = vsel %vm1506, 1, 0
    %v1515 = vsel %vm1507, 1, 0
    %v1516 = vsel %vm1508, 1, 0
    %v1517 = vsel %vm1509, 1, 0
    %v1518 = vsel %vm99, %v1510, 0
    %v1519 = vsel %vm99, %v1511, 0
    %v1520 = vsel %vm99, %v1512, 0
    %v1521 = vsel %vm99, %v1513, 0
    %v1522 = vsel %vm99, %v1514, 0
    %v1523 = vadd.s32 %v1518, %v1522
    %v1524 = vsel %vm99, %v1515, 0
    %v1525 = vadd.s32 %v1519, %v1524
    %v1526 = vsel %vm99, %v1516, 0
    %v1527 = vadd.s32 %v1520, %v1526
    %v1528 = vsel %vm99, %v1517, 0
    %v1529 = vadd.s32 %v1521, %v1528
    %v1530 = vadd.s32 %v1523, %v1525
    %v1531 = vadd.s32 %v1527, %v1529
    %v1532 = vadd.s32 %v1530, %v1531
    %v1533 = vand.u32 %v1532, 65535
    %v1534 = vshrl.u32 %v1532, 16
    %v1535 = vcvt.s32.f32 %v1533
    %v1536 = vcvt.s32.f32 %v1534
    %1537 = vadd.xlane.f32.xlu0 %v1535
    %v1538 = vpop.xlane.xlu0 %1537
    %1539 = vadd.xlane.f32.xlu0 %v1536
    %v1540 = vpop.xlane.xlu0 %1539
    %v1541 = vcvt.f32.s32 %v1538
    %v1542 = vcvt.f32.s32 %v1540
    %v1543 = vshll.u32 %v1542, 16
    %v1544 = vadd.s32 %v1543, %v1541
    %vm1545 = vcmp.lt.s32.totalorder %v1544, 410
    %v1546 = vsel %vm1545, 1, 0
    %v1547 = vadd.s32 %v1500, 2048
    %vm1548 = vcmp.lt.s32.totalorder %v75, %v1547
    %vm1549 = vcmp.lt.s32.totalorder %v76, %v1547
    %vm1550 = vcmp.lt.s32.totalorder %v77, %v1547
    %vm1551 = vcmp.lt.s32.totalorder %v78, %v1547
    %vm1552 = vcmp.lt.s32.totalorder %v79, %v1547
    %vm1553 = vcmp.lt.s32.totalorder %v80, %v1547
    %vm1554 = vcmp.lt.s32.totalorder %v81, %v1547
    %vm1555 = vcmp.lt.s32.totalorder %v82, %v1547
    %v1556 = vsel %vm1548, 1, 0
    %v1557 = vsel %vm1549, 1, 0
    %v1558 = vsel %vm1550, 1, 0
    %v1559 = vsel %vm1551, 1, 0
    %v1560 = vsel %vm1552, 1, 0
    %v1561 = vsel %vm1553, 1, 0
    %v1562 = vsel %vm1554, 1, 0
    %v1563 = vsel %vm1555, 1, 0
    %v1564 = vsel %vm99, %v1556, 0
    %v1565 = vsel %vm99, %v1557, 0
    %v1566 = vsel %vm99, %v1558, 0
    %v1567 = vsel %vm99, %v1559, 0
    %v1568 = vsel %vm99, %v1560, 0
    %v1569 = vadd.s32 %v1564, %v1568
    %v1570 = vsel %vm99, %v1561, 0
    %v1571 = vadd.s32 %v1565, %v1570
    %v1572 = vsel %vm99, %v1562, 0
    %v1573 = vadd.s32 %v1566, %v1572
    %v1574 = vsel %vm99, %v1563, 0
    %v1575 = vadd.s32 %v1567, %v1574
    %v1576 = vadd.s32 %v1569, %v1571
    %v1577 = vadd.s32 %v1573, %v1575
    %v1578 = vadd.s32 %v1576, %v1577
    %v1579 = vand.u32 %v1578, 65535
    %v1580 = vshrl.u32 %v1578, 16
    %v1581 = vcvt.s32.f32 %v1579
    %v1582 = vcvt.s32.f32 %v1580
    %1583 = vadd.xlane.f32.xlu0 %v1581
    %v1584 = vpop.xlane.xlu0 %1583
    %1585 = vadd.xlane.f32.xlu0 %v1582
    %v1586 = vpop.xlane.xlu0 %1585
    %v1587 = vcvt.f32.s32 %v1584
    %v1588 = vcvt.f32.s32 %v1586
    %v1589 = vshll.u32 %v1588, 16
    %v1590 = vadd.s32 %v1589, %v1587
    %vm1591 = vcmp.lt.s32.totalorder %v1590, 410
    %v1592 = vsel %vm1591, 1, 0
    %v1593 = vadd.s32 %v1546, %v1592
    %v1594 = vadd.s32 %v1500, 3072
    %vm1595 = vcmp.lt.s32.totalorder %v75, %v1594
    %vm1596 = vcmp.lt.s32.totalorder %v76, %v1594
    %vm1597 = vcmp.lt.s32.totalorder %v77, %v1594
    %vm1598 = vcmp.lt.s32.totalorder %v78, %v1594
    %vm1599 = vcmp.lt.s32.totalorder %v79, %v1594
    %vm1600 = vcmp.lt.s32.totalorder %v80, %v1594
    %vm1601 = vcmp.lt.s32.totalorder %v81, %v1594
    %vm1602 = vcmp.lt.s32.totalorder %v82, %v1594
    %v1603 = vsel %vm1595, 1, 0
    %v1604 = vsel %vm1596, 1, 0
    %v1605 = vsel %vm1597, 1, 0
    %v1606 = vsel %vm1598, 1, 0
    %v1607 = vsel %vm1599, 1, 0
    %v1608 = vsel %vm1600, 1, 0
    %v1609 = vsel %vm1601, 1, 0
    %v1610 = vsel %vm1602, 1, 0
    %v1611 = vsel %vm99, %v1603, 0
    %v1612 = vsel %vm99, %v1604, 0
    %v1613 = vsel %vm99, %v1605, 0
    %v1614 = vsel %vm99, %v1606, 0
    %v1615 = vsel %vm99, %v1607, 0
    %v1616 = vadd.s32 %v1611, %v1615
    %v1617 = vsel %vm99, %v1608, 0
    %v1618 = vadd.s32 %v1612, %v1617
    %v1619 = vsel %vm99, %v1609, 0
    %v1620 = vadd.s32 %v1613, %v1619
    %v1621 = vsel %vm99, %v1610, 0
    %v1622 = vadd.s32 %v1614, %v1621
    %v1623 = vadd.s32 %v1616, %v1618
    %v1624 = vadd.s32 %v1620, %v1622
    %v1625 = vadd.s32 %v1623, %v1624
    %v1626 = vand.u32 %v1625, 65535
    %v1627 = vshrl.u32 %v1625, 16
    %v1628 = vcvt.s32.f32 %v1626
    %v1629 = vcvt.s32.f32 %v1627
    %1630 = vadd.xlane.f32.xlu0 %v1628
    %v1631 = vpop.xlane.xlu0 %1630
    %1632 = vadd.xlane.f32.xlu0 %v1629
    %v1633 = vpop.xlane.xlu0 %1632
    %v1634 = vcvt.f32.s32 %v1631
    %v1635 = vcvt.f32.s32 %v1633
    %v1636 = vshll.u32 %v1635, 16
    %v1637 = vadd.s32 %v1636, %v1634
    %vm1638 = vcmp.lt.s32.totalorder %v1637, 410
    %v1639 = vsel %vm1638, 1, 0
    %v1640 = vadd.s32 %v1593, %v1639
    %v1641 = vshll.u32 %v1640, 10
    %v1642 = vadd.s32 %v1500, %v1641
    %v1643 = vadd.s32 %v1642, 256
    %vm1644 = vcmp.lt.s32.totalorder %v75, %v1643
    %vm1645 = vcmp.lt.s32.totalorder %v76, %v1643
    %vm1646 = vcmp.lt.s32.totalorder %v77, %v1643
    %vm1647 = vcmp.lt.s32.totalorder %v78, %v1643
    %vm1648 = vcmp.lt.s32.totalorder %v79, %v1643
    %vm1649 = vcmp.lt.s32.totalorder %v80, %v1643
    %vm1650 = vcmp.lt.s32.totalorder %v81, %v1643
    %vm1651 = vcmp.lt.s32.totalorder %v82, %v1643
    %v1652 = vsel %vm1644, 1, 0
    %v1653 = vsel %vm1645, 1, 0
    %v1654 = vsel %vm1646, 1, 0
    %v1655 = vsel %vm1647, 1, 0
    %v1656 = vsel %vm1648, 1, 0
    %v1657 = vsel %vm1649, 1, 0
    %v1658 = vsel %vm1650, 1, 0
    %v1659 = vsel %vm1651, 1, 0
    %v1660 = vsel %vm99, %v1652, 0
    %v1661 = vsel %vm99, %v1653, 0
    %v1662 = vsel %vm99, %v1654, 0
    %v1663 = vsel %vm99, %v1655, 0
    %v1664 = vsel %vm99, %v1656, 0
    %v1665 = vadd.s32 %v1660, %v1664
    %v1666 = vsel %vm99, %v1657, 0
    %v1667 = vadd.s32 %v1661, %v1666
    %v1668 = vsel %vm99, %v1658, 0
    %v1669 = vadd.s32 %v1662, %v1668
    %v1670 = vsel %vm99, %v1659, 0
    %v1671 = vadd.s32 %v1663, %v1670
    %v1672 = vadd.s32 %v1665, %v1667
    %v1673 = vadd.s32 %v1669, %v1671
    %v1674 = vadd.s32 %v1672, %v1673
    %v1675 = vand.u32 %v1674, 65535
    %v1676 = vshrl.u32 %v1674, 16
    %v1677 = vcvt.s32.f32 %v1675
    %v1678 = vcvt.s32.f32 %v1676
    %1679 = vadd.xlane.f32.xlu0 %v1677
    %v1680 = vpop.xlane.xlu0 %1679
    %1681 = vadd.xlane.f32.xlu0 %v1678
    %v1682 = vpop.xlane.xlu0 %1681
    %v1683 = vcvt.f32.s32 %v1680
    %v1684 = vcvt.f32.s32 %v1682
    %v1685 = vshll.u32 %v1684, 16
    %v1686 = vadd.s32 %v1685, %v1683
    %vm1687 = vcmp.lt.s32.totalorder %v1686, 410
    %v1688 = vsel %vm1687, 1, 0
    %v1689 = vadd.s32 %v1642, 512
    %vm1690 = vcmp.lt.s32.totalorder %v75, %v1689
    %vm1691 = vcmp.lt.s32.totalorder %v76, %v1689
    %vm1692 = vcmp.lt.s32.totalorder %v77, %v1689
    %vm1693 = vcmp.lt.s32.totalorder %v78, %v1689
    %vm1694 = vcmp.lt.s32.totalorder %v79, %v1689
    %vm1695 = vcmp.lt.s32.totalorder %v80, %v1689
    %vm1696 = vcmp.lt.s32.totalorder %v81, %v1689
    %vm1697 = vcmp.lt.s32.totalorder %v82, %v1689
    %v1698 = vsel %vm1690, 1, 0
    %v1699 = vsel %vm1691, 1, 0
    %v1700 = vsel %vm1692, 1, 0
    %v1701 = vsel %vm1693, 1, 0
    %v1702 = vsel %vm1694, 1, 0
    %v1703 = vsel %vm1695, 1, 0
    %v1704 = vsel %vm1696, 1, 0
    %v1705 = vsel %vm1697, 1, 0
    %v1706 = vsel %vm99, %v1698, 0
    %v1707 = vsel %vm99, %v1699, 0
    %v1708 = vsel %vm99, %v1700, 0
    %v1709 = vsel %vm99, %v1701, 0
    %v1710 = vsel %vm99, %v1702, 0
    %v1711 = vadd.s32 %v1706, %v1710
    %v1712 = vsel %vm99, %v1703, 0
    %v1713 = vadd.s32 %v1707, %v1712
    %v1714 = vsel %vm99, %v1704, 0
    %v1715 = vadd.s32 %v1708, %v1714
    %v1716 = vsel %vm99, %v1705, 0
    %v1717 = vadd.s32 %v1709, %v1716
    %v1718 = vadd.s32 %v1711, %v1713
    %v1719 = vadd.s32 %v1715, %v1717
    %v1720 = vadd.s32 %v1718, %v1719
    %v1721 = vand.u32 %v1720, 65535
    %v1722 = vshrl.u32 %v1720, 16
    %v1723 = vcvt.s32.f32 %v1721
    %v1724 = vcvt.s32.f32 %v1722
    %1725 = vadd.xlane.f32.xlu0 %v1723
    %v1726 = vpop.xlane.xlu0 %1725
    %1727 = vadd.xlane.f32.xlu0 %v1724
    %v1728 = vpop.xlane.xlu0 %1727
    %v1729 = vcvt.f32.s32 %v1726
    %v1730 = vcvt.f32.s32 %v1728
    %v1731 = vshll.u32 %v1730, 16
    %v1732 = vadd.s32 %v1731, %v1729
    %vm1733 = vcmp.lt.s32.totalorder %v1732, 410
    %v1734 = vsel %vm1733, 1, 0
    %v1735 = vadd.s32 %v1688, %v1734
    %v1736 = vadd.s32 %v1642, 768
    %vm1737 = vcmp.lt.s32.totalorder %v75, %v1736
    %vm1738 = vcmp.lt.s32.totalorder %v76, %v1736
    %vm1739 = vcmp.lt.s32.totalorder %v77, %v1736
    %vm1740 = vcmp.lt.s32.totalorder %v78, %v1736
    %vm1741 = vcmp.lt.s32.totalorder %v79, %v1736
    %vm1742 = vcmp.lt.s32.totalorder %v80, %v1736
    %vm1743 = vcmp.lt.s32.totalorder %v81, %v1736
    %vm1744 = vcmp.lt.s32.totalorder %v82, %v1736
    %v1745 = vsel %vm1737, 1, 0
    %v1746 = vsel %vm1738, 1, 0
    %v1747 = vsel %vm1739, 1, 0
    %v1748 = vsel %vm1740, 1, 0
    %v1749 = vsel %vm1741, 1, 0
    %v1750 = vsel %vm1742, 1, 0
    %v1751 = vsel %vm1743, 1, 0
    %v1752 = vsel %vm1744, 1, 0
    %v1753 = vsel %vm99, %v1745, 0
    %v1754 = vsel %vm99, %v1746, 0
    %v1755 = vsel %vm99, %v1747, 0
    %v1756 = vsel %vm99, %v1748, 0
    %v1757 = vsel %vm99, %v1749, 0
    %v1758 = vadd.s32 %v1753, %v1757
    %v1759 = vsel %vm99, %v1750, 0
    %v1760 = vadd.s32 %v1754, %v1759
    %v1761 = vsel %vm99, %v1751, 0
    %v1762 = vadd.s32 %v1755, %v1761
    %v1763 = vsel %vm99, %v1752, 0
    %v1764 = vadd.s32 %v1756, %v1763
    %v1765 = vadd.s32 %v1758, %v1760
    %v1766 = vadd.s32 %v1762, %v1764
    %v1767 = vadd.s32 %v1765, %v1766
    %v1768 = vand.u32 %v1767, 65535
    %v1769 = vshrl.u32 %v1767, 16
    %v1770 = vcvt.s32.f32 %v1768
    %v1771 = vcvt.s32.f32 %v1769
    %1772 = vadd.xlane.f32.xlu0 %v1770
    %v1773 = vpop.xlane.xlu0 %1772
    %1774 = vadd.xlane.f32.xlu0 %v1771
    %v1775 = vpop.xlane.xlu0 %1774
    %v1776 = vcvt.f32.s32 %v1773
    %v1777 = vcvt.f32.s32 %v1775
    %v1778 = vshll.u32 %v1777, 16
    %v1779 = vadd.s32 %v1778, %v1776
    %vm1780 = vcmp.lt.s32.totalorder %v1779, 410
    %v1781 = vsel %vm1780, 1, 0
    %v1782 = vadd.s32 %v1735, %v1781
    %v1783 = vshll.u32 %v1782, 8
    %v1784 = vadd.s32 %v1642, %v1783
    %v1785 = vadd.s32 %v1784, 64
    %vm1786 = vcmp.lt.s32.totalorder %v75, %v1785
    %vm1787 = vcmp.lt.s32.totalorder %v76, %v1785
    %vm1788 = vcmp.lt.s32.totalorder %v77, %v1785
    %vm1789 = vcmp.lt.s32.totalorder %v78, %v1785
    %vm1790 = vcmp.lt.s32.totalorder %v79, %v1785
    %vm1791 = vcmp.lt.s32.totalorder %v80, %v1785
    %vm1792 = vcmp.lt.s32.totalorder %v81, %v1785
    %vm1793 = vcmp.lt.s32.totalorder %v82, %v1785
    %v1794 = vsel %vm1786, 1, 0
    %v1795 = vsel %vm1787, 1, 0
    %v1796 = vsel %vm1788, 1, 0
    %v1797 = vsel %vm1789, 1, 0
    %v1798 = vsel %vm1790, 1, 0
    %v1799 = vsel %vm1791, 1, 0
    %v1800 = vsel %vm1792, 1, 0
    %v1801 = vsel %vm1793, 1, 0
    %v1802 = vsel %vm99, %v1794, 0
    %v1803 = vsel %vm99, %v1795, 0
    %v1804 = vsel %vm99, %v1796, 0
    %v1805 = vsel %vm99, %v1797, 0
    %v1806 = vsel %vm99, %v1798, 0
    %v1807 = vadd.s32 %v1802, %v1806
    %v1808 = vsel %vm99, %v1799, 0
    %v1809 = vadd.s32 %v1803, %v1808
    %v1810 = vsel %vm99, %v1800, 0
    %v1811 = vadd.s32 %v1804, %v1810
    %v1812 = vsel %vm99, %v1801, 0
    %v1813 = vadd.s32 %v1805, %v1812
    %v1814 = vadd.s32 %v1807, %v1809
    %v1815 = vadd.s32 %v1811, %v1813
    %v1816 = vadd.s32 %v1814, %v1815
    %v1817 = vand.u32 %v1816, 65535
    %v1818 = vshrl.u32 %v1816, 16
    %v1819 = vcvt.s32.f32 %v1817
    %v1820 = vcvt.s32.f32 %v1818
    %1821 = vadd.xlane.f32.xlu0 %v1819
    %v1822 = vpop.xlane.xlu0 %1821
    %1823 = vadd.xlane.f32.xlu0 %v1820
    %v1824 = vpop.xlane.xlu0 %1823
    %v1825 = vcvt.f32.s32 %v1822
    %v1826 = vcvt.f32.s32 %v1824
    %v1827 = vshll.u32 %v1826, 16
    %v1828 = vadd.s32 %v1827, %v1825
    %vm1829 = vcmp.lt.s32.totalorder %v1828, 410
    %v1830 = vsel %vm1829, 1, 0
    %v1831 = vadd.s32 %v1784, 128
    %vm1832 = vcmp.lt.s32.totalorder %v75, %v1831
    %vm1833 = vcmp.lt.s32.totalorder %v76, %v1831
    %vm1834 = vcmp.lt.s32.totalorder %v77, %v1831
    %vm1835 = vcmp.lt.s32.totalorder %v78, %v1831
    %vm1836 = vcmp.lt.s32.totalorder %v79, %v1831
    %vm1837 = vcmp.lt.s32.totalorder %v80, %v1831
    %vm1838 = vcmp.lt.s32.totalorder %v81, %v1831
    %vm1839 = vcmp.lt.s32.totalorder %v82, %v1831
    %v1840 = vsel %vm1832, 1, 0
    %v1841 = vsel %vm1833, 1, 0
    %v1842 = vsel %vm1834, 1, 0
    %v1843 = vsel %vm1835, 1, 0
    %v1844 = vsel %vm1836, 1, 0
    %v1845 = vsel %vm1837, 1, 0
    %v1846 = vsel %vm1838, 1, 0
    %v1847 = vsel %vm1839, 1, 0
    %v1848 = vsel %vm99, %v1840, 0
    %v1849 = vsel %vm99, %v1841, 0
    %v1850 = vsel %vm99, %v1842, 0
    %v1851 = vsel %vm99, %v1843, 0
    %v1852 = vsel %vm99, %v1844, 0
    %v1853 = vadd.s32 %v1848, %v1852
    %v1854 = vsel %vm99, %v1845, 0
    %v1855 = vadd.s32 %v1849, %v1854
    %v1856 = vsel %vm99, %v1846, 0
    %v1857 = vadd.s32 %v1850, %v1856
    %v1858 = vsel %vm99, %v1847, 0
    %v1859 = vadd.s32 %v1851, %v1858
    %v1860 = vadd.s32 %v1853, %v1855
    %v1861 = vadd.s32 %v1857, %v1859
    %v1862 = vadd.s32 %v1860, %v1861
    %v1863 = vand.u32 %v1862, 65535
    %v1864 = vshrl.u32 %v1862, 16
    %v1865 = vcvt.s32.f32 %v1863
    %v1866 = vcvt.s32.f32 %v1864
    %1867 = vadd.xlane.f32.xlu0 %v1865
    %v1868 = vpop.xlane.xlu0 %1867
    %1869 = vadd.xlane.f32.xlu0 %v1866
    %v1870 = vpop.xlane.xlu0 %1869
    %v1871 = vcvt.f32.s32 %v1868
    %v1872 = vcvt.f32.s32 %v1870
    %v1873 = vshll.u32 %v1872, 16
    %v1874 = vadd.s32 %v1873, %v1871
    %vm1875 = vcmp.lt.s32.totalorder %v1874, 410
    %v1876 = vsel %vm1875, 1, 0
    %v1877 = vadd.s32 %v1830, %v1876
    %v1878 = vadd.s32 %v1784, 192
    %vm1879 = vcmp.lt.s32.totalorder %v75, %v1878
    %vm1880 = vcmp.lt.s32.totalorder %v76, %v1878
    %vm1881 = vcmp.lt.s32.totalorder %v77, %v1878
    %vm1882 = vcmp.lt.s32.totalorder %v78, %v1878
    %vm1883 = vcmp.lt.s32.totalorder %v79, %v1878
    %vm1884 = vcmp.lt.s32.totalorder %v80, %v1878
    %vm1885 = vcmp.lt.s32.totalorder %v81, %v1878
    %vm1886 = vcmp.lt.s32.totalorder %v82, %v1878
    %v1887 = vsel %vm1879, 1, 0
    %v1888 = vsel %vm1880, 1, 0
    %v1889 = vsel %vm1881, 1, 0
    %v1890 = vsel %vm1882, 1, 0
    %v1891 = vsel %vm1883, 1, 0
    %v1892 = vsel %vm1884, 1, 0
    %v1893 = vsel %vm1885, 1, 0
    %v1894 = vsel %vm1886, 1, 0
    %v1895 = vsel %vm99, %v1887, 0
    %v1896 = vsel %vm99, %v1888, 0
    %v1897 = vsel %vm99, %v1889, 0
    %v1898 = vsel %vm99, %v1890, 0
    %v1899 = vsel %vm99, %v1891, 0
    %v1900 = vadd.s32 %v1895, %v1899
    %v1901 = vsel %vm99, %v1892, 0
    %v1902 = vadd.s32 %v1896, %v1901
    %v1903 = vsel %vm99, %v1893, 0
    %v1904 = vadd.s32 %v1897, %v1903
    %v1905 = vsel %vm99, %v1894, 0
    %v1906 = vadd.s32 %v1898, %v1905
    %v1907 = vadd.s32 %v1900, %v1902
    %v1908 = vadd.s32 %v1904, %v1906
    %v1909 = vadd.s32 %v1907, %v1908
    %v1910 = vand.u32 %v1909, 65535
    %v1911 = vshrl.u32 %v1909, 16
    %v1912 = vcvt.s32.f32 %v1910
    %v1913 = vcvt.s32.f32 %v1911
    %1914 = vadd.xlane.f32.xlu0 %v1912
    %v1915 = vpop.xlane.xlu0 %1914
    %1916 = vadd.xlane.f32.xlu0 %v1913
    %v1917 = vpop.xlane.xlu0 %1916
    %v1918 = vcvt.f32.s32 %v1915
    %v1919 = vcvt.f32.s32 %v1917
    %v1920 = vshll.u32 %v1919, 16
    %v1921 = vadd.s32 %v1920, %v1918
    %vm1922 = vcmp.lt.s32.totalorder %v1921, 410
    %v1923 = vsel %vm1922, 1, 0
    %v1924 = vadd.s32 %v1877, %v1923
    %v1925 = vshll.u32 %v1924, 6
    %v1926 = vadd.s32 %v1784, %v1925
    %v1927 = vadd.s32 %v1926, 16
    %vm1928 = vcmp.lt.s32.totalorder %v75, %v1927
    %vm1929 = vcmp.lt.s32.totalorder %v76, %v1927
    %vm1930 = vcmp.lt.s32.totalorder %v77, %v1927
    %vm1931 = vcmp.lt.s32.totalorder %v78, %v1927
    %vm1932 = vcmp.lt.s32.totalorder %v79, %v1927
    %vm1933 = vcmp.lt.s32.totalorder %v80, %v1927
    %vm1934 = vcmp.lt.s32.totalorder %v81, %v1927
    %vm1935 = vcmp.lt.s32.totalorder %v82, %v1927
    %v1936 = vsel %vm1928, 1, 0
    %v1937 = vsel %vm1929, 1, 0
    %v1938 = vsel %vm1930, 1, 0
    %v1939 = vsel %vm1931, 1, 0
    %v1940 = vsel %vm1932, 1, 0
    %v1941 = vsel %vm1933, 1, 0
    %v1942 = vsel %vm1934, 1, 0
    %v1943 = vsel %vm1935, 1, 0
    %v1944 = vsel %vm99, %v1936, 0
    %v1945 = vsel %vm99, %v1937, 0
    %v1946 = vsel %vm99, %v1938, 0
    %v1947 = vsel %vm99, %v1939, 0
    %v1948 = vsel %vm99, %v1940, 0
    %v1949 = vadd.s32 %v1944, %v1948
    %v1950 = vsel %vm99, %v1941, 0
    %v1951 = vadd.s32 %v1945, %v1950
    %v1952 = vsel %vm99, %v1942, 0
    %v1953 = vadd.s32 %v1946, %v1952
    %v1954 = vsel %vm99, %v1943, 0
    %v1955 = vadd.s32 %v1947, %v1954
    %v1956 = vadd.s32 %v1949, %v1951
    %v1957 = vadd.s32 %v1953, %v1955
    %v1958 = vadd.s32 %v1956, %v1957
    %v1959 = vand.u32 %v1958, 65535
    %v1960 = vshrl.u32 %v1958, 16
    %v1961 = vcvt.s32.f32 %v1959
    %v1962 = vcvt.s32.f32 %v1960
    %1963 = vadd.xlane.f32.xlu0 %v1961
    %v1964 = vpop.xlane.xlu0 %1963
    %1965 = vadd.xlane.f32.xlu0 %v1962
    %v1966 = vpop.xlane.xlu0 %1965
    %v1967 = vcvt.f32.s32 %v1964
    %v1968 = vcvt.f32.s32 %v1966
    %v1969 = vshll.u32 %v1968, 16
    %v1970 = vadd.s32 %v1969, %v1967
    %vm1971 = vcmp.lt.s32.totalorder %v1970, 410
    %v1972 = vsel %vm1971, 1, 0
    %v1973 = vadd.s32 %v1926, 32
    %vm1974 = vcmp.lt.s32.totalorder %v75, %v1973
    %vm1975 = vcmp.lt.s32.totalorder %v76, %v1973
    %vm1976 = vcmp.lt.s32.totalorder %v77, %v1973
    %vm1977 = vcmp.lt.s32.totalorder %v78, %v1973
    %vm1978 = vcmp.lt.s32.totalorder %v79, %v1973
    %vm1979 = vcmp.lt.s32.totalorder %v80, %v1973
    %vm1980 = vcmp.lt.s32.totalorder %v81, %v1973
    %vm1981 = vcmp.lt.s32.totalorder %v82, %v1973
    %v1982 = vsel %vm1974, 1, 0
    %v1983 = vsel %vm1975, 1, 0
    %v1984 = vsel %vm1976, 1, 0
    %v1985 = vsel %vm1977, 1, 0
    %v1986 = vsel %vm1978, 1, 0
    %v1987 = vsel %vm1979, 1, 0
    %v1988 = vsel %vm1980, 1, 0
    %v1989 = vsel %vm1981, 1, 0
    %v1990 = vsel %vm99, %v1982, 0
    %v1991 = vsel %vm99, %v1983, 0
    %v1992 = vsel %vm99, %v1984, 0
    %v1993 = vsel %vm99, %v1985, 0
    %v1994 = vsel %vm99, %v1986, 0
    %v1995 = vadd.s32 %v1990, %v1994
    %v1996 = vsel %vm99, %v1987, 0
    %v1997 = vadd.s32 %v1991, %v1996
    %v1998 = vsel %vm99, %v1988, 0
    %v1999 = vadd.s32 %v1992, %v1998
    %v2000 = vsel %vm99, %v1989, 0
    %v2001 = vadd.s32 %v1993, %v2000
    %v2002 = vadd.s32 %v1995, %v1997
    %v2003 = vadd.s32 %v1999, %v2001
    %v2004 = vadd.s32 %v2002, %v2003
    %v2005 = vand.u32 %v2004, 65535
    %v2006 = vshrl.u32 %v2004, 16
    %v2007 = vcvt.s32.f32 %v2005
    %v2008 = vcvt.s32.f32 %v2006
    %2009 = vadd.xlane.f32.xlu0 %v2007
    %v2010 = vpop.xlane.xlu0 %2009
    %2011 = vadd.xlane.f32.xlu0 %v2008
    %v2012 = vpop.xlane.xlu0 %2011
    %v2013 = vcvt.f32.s32 %v2010
    %v2014 = vcvt.f32.s32 %v2012
    %v2015 = vshll.u32 %v2014, 16
    %v2016 = vadd.s32 %v2015, %v2013
    %vm2017 = vcmp.lt.s32.totalorder %v2016, 410
    %v2018 = vsel %vm2017, 1, 0
    %v2019 = vadd.s32 %v1972, %v2018
    %v2020 = vadd.s32 %v1926, 48
    %vm2021 = vcmp.lt.s32.totalorder %v75, %v2020
    %vm2022 = vcmp.lt.s32.totalorder %v76, %v2020
    %vm2023 = vcmp.lt.s32.totalorder %v77, %v2020
    %vm2024 = vcmp.lt.s32.totalorder %v78, %v2020
    %vm2025 = vcmp.lt.s32.totalorder %v79, %v2020
    %vm2026 = vcmp.lt.s32.totalorder %v80, %v2020
    %vm2027 = vcmp.lt.s32.totalorder %v81, %v2020
    %vm2028 = vcmp.lt.s32.totalorder %v82, %v2020
    %v2029 = vsel %vm2021, 1, 0
    %v2030 = vsel %vm2022, 1, 0
    %v2031 = vsel %vm2023, 1, 0
    %v2032 = vsel %vm2024, 1, 0
    %v2033 = vsel %vm2025, 1, 0
    %v2034 = vsel %vm2026, 1, 0
    %v2035 = vsel %vm2027, 1, 0
    %v2036 = vsel %vm2028, 1, 0
    %v2037 = vsel %vm99, %v2029, 0
    %v2038 = vsel %vm99, %v2030, 0
    %v2039 = vsel %vm99, %v2031, 0
    %v2040 = vsel %vm99, %v2032, 0
    %v2041 = vsel %vm99, %v2033, 0
    %v2042 = vadd.s32 %v2037, %v2041
    %v2043 = vsel %vm99, %v2034, 0
    %v2044 = vadd.s32 %v2038, %v2043
    %v2045 = vsel %vm99, %v2035, 0
    %v2046 = vadd.s32 %v2039, %v2045
    %v2047 = vsel %vm99, %v2036, 0
    %v2048 = vadd.s32 %v2040, %v2047
    %v2049 = vadd.s32 %v2042, %v2044
    %v2050 = vadd.s32 %v2046, %v2048
    %v2051 = vadd.s32 %v2049, %v2050
    %v2052 = vand.u32 %v2051, 65535
    %v2053 = vshrl.u32 %v2051, 16
    %v2054 = vcvt.s32.f32 %v2052
    %v2055 = vcvt.s32.f32 %v2053
    %2056 = vadd.xlane.f32.xlu0 %v2054
    %v2057 = vpop.xlane.xlu0 %2056
    %2058 = vadd.xlane.f32.xlu0 %v2055
    %v2059 = vpop.xlane.xlu0 %2058
    %v2060 = vcvt.f32.s32 %v2057
    %v2061 = vcvt.f32.s32 %v2059
    %v2062 = vshll.u32 %v2061, 16
    %v2063 = vadd.s32 %v2062, %v2060
    %vm2064 = vcmp.lt.s32.totalorder %v2063, 410
    %v2065 = vsel %vm2064, 1, 0
    %v2066 = vadd.s32 %v2019, %v2065
    %v2067 = vshll.u32 %v2066, 4
    %v2068 = vadd.s32 %v1926, %v2067
    %v2069 = vadd.s32 %v2068, 4
    %vm2070 = vcmp.lt.s32.totalorder %v75, %v2069
    %vm2071 = vcmp.lt.s32.totalorder %v76, %v2069
    %vm2072 = vcmp.lt.s32.totalorder %v77, %v2069
    %vm2073 = vcmp.lt.s32.totalorder %v78, %v2069
    %vm2074 = vcmp.lt.s32.totalorder %v79, %v2069
    %vm2075 = vcmp.lt.s32.totalorder %v80, %v2069
    %vm2076 = vcmp.lt.s32.totalorder %v81, %v2069
    %vm2077 = vcmp.lt.s32.totalorder %v82, %v2069
    %v2078 = vsel %vm2070, 1, 0
    %v2079 = vsel %vm2071, 1, 0
    %v2080 = vsel %vm2072, 1, 0
    %v2081 = vsel %vm2073, 1, 0
    %v2082 = vsel %vm2074, 1, 0
    %v2083 = vsel %vm2075, 1, 0
    %v2084 = vsel %vm2076, 1, 0
    %v2085 = vsel %vm2077, 1, 0
    %v2086 = vsel %vm99, %v2078, 0
    %v2087 = vsel %vm99, %v2079, 0
    %v2088 = vsel %vm99, %v2080, 0
    %v2089 = vsel %vm99, %v2081, 0
    %v2090 = vsel %vm99, %v2082, 0
    %v2091 = vadd.s32 %v2086, %v2090
    %v2092 = vsel %vm99, %v2083, 0
    %v2093 = vadd.s32 %v2087, %v2092
    %v2094 = vsel %vm99, %v2084, 0
    %v2095 = vadd.s32 %v2088, %v2094
    %v2096 = vsel %vm99, %v2085, 0
    %v2097 = vadd.s32 %v2089, %v2096
    %v2098 = vadd.s32 %v2091, %v2093
    %v2099 = vadd.s32 %v2095, %v2097
    %v2100 = vadd.s32 %v2098, %v2099
    %v2101 = vand.u32 %v2100, 65535
    %v2102 = vshrl.u32 %v2100, 16
    %v2103 = vcvt.s32.f32 %v2101
    %v2104 = vcvt.s32.f32 %v2102
    %2105 = vadd.xlane.f32.xlu0 %v2103
    %v2106 = vpop.xlane.xlu0 %2105
    %2107 = vadd.xlane.f32.xlu0 %v2104
    %v2108 = vpop.xlane.xlu0 %2107
    %v2109 = vcvt.f32.s32 %v2106
    %v2110 = vcvt.f32.s32 %v2108
    %v2111 = vshll.u32 %v2110, 16
    %v2112 = vadd.s32 %v2111, %v2109
    %vm2113 = vcmp.lt.s32.totalorder %v2112, 410
    %v2114 = vsel %vm2113, 1, 0
    %v2115 = vadd.s32 %v2068, 8
    %vm2116 = vcmp.lt.s32.totalorder %v75, %v2115
    %vm2117 = vcmp.lt.s32.totalorder %v76, %v2115
    %vm2118 = vcmp.lt.s32.totalorder %v77, %v2115
    %vm2119 = vcmp.lt.s32.totalorder %v78, %v2115
    %vm2120 = vcmp.lt.s32.totalorder %v79, %v2115
    %vm2121 = vcmp.lt.s32.totalorder %v80, %v2115
    %vm2122 = vcmp.lt.s32.totalorder %v81, %v2115
    %vm2123 = vcmp.lt.s32.totalorder %v82, %v2115
    %v2124 = vsel %vm2116, 1, 0
    %v2125 = vsel %vm2117, 1, 0
    %v2126 = vsel %vm2118, 1, 0
    %v2127 = vsel %vm2119, 1, 0
    %v2128 = vsel %vm2120, 1, 0
    %v2129 = vsel %vm2121, 1, 0
    %v2130 = vsel %vm2122, 1, 0
    %v2131 = vsel %vm2123, 1, 0
    %v2132 = vsel %vm99, %v2124, 0
    %v2133 = vsel %vm99, %v2125, 0
    %v2134 = vsel %vm99, %v2126, 0
    %v2135 = vsel %vm99, %v2127, 0
    %v2136 = vsel %vm99, %v2128, 0
    %v2137 = vadd.s32 %v2132, %v2136
    %v2138 = vsel %vm99, %v2129, 0
    %v2139 = vadd.s32 %v2133, %v2138
    %v2140 = vsel %vm99, %v2130, 0
    %v2141 = vadd.s32 %v2134, %v2140
    %v2142 = vsel %vm99, %v2131, 0
    %v2143 = vadd.s32 %v2135, %v2142
    %v2144 = vadd.s32 %v2137, %v2139
    %v2145 = vadd.s32 %v2141, %v2143
    %v2146 = vadd.s32 %v2144, %v2145
    %v2147 = vand.u32 %v2146, 65535
    %v2148 = vshrl.u32 %v2146, 16
    %v2149 = vcvt.s32.f32 %v2147
    %v2150 = vcvt.s32.f32 %v2148
    %2151 = vadd.xlane.f32.xlu0 %v2149
    %v2152 = vpop.xlane.xlu0 %2151
    %2153 = vadd.xlane.f32.xlu0 %v2150
    %v2154 = vpop.xlane.xlu0 %2153
    %v2155 = vcvt.f32.s32 %v2152
    %v2156 = vcvt.f32.s32 %v2154
    %v2157 = vshll.u32 %v2156, 16
    %v2158 = vadd.s32 %v2157, %v2155
    %vm2159 = vcmp.lt.s32.totalorder %v2158, 410
    %v2160 = vsel %vm2159, 1, 0
    %v2161 = vadd.s32 %v2114, %v2160
    %v2162 = vadd.s32 %v2068, 12
    %vm2163 = vcmp.lt.s32.totalorder %v75, %v2162
    %vm2164 = vcmp.lt.s32.totalorder %v76, %v2162
    %vm2165 = vcmp.lt.s32.totalorder %v77, %v2162
    %vm2166 = vcmp.lt.s32.totalorder %v78, %v2162
    %vm2167 = vcmp.lt.s32.totalorder %v79, %v2162
    %vm2168 = vcmp.lt.s32.totalorder %v80, %v2162
    %vm2169 = vcmp.lt.s32.totalorder %v81, %v2162
    %vm2170 = vcmp.lt.s32.totalorder %v82, %v2162
    %v2171 = vsel %vm2163, 1, 0
    %v2172 = vsel %vm2164, 1, 0
    %v2173 = vsel %vm2165, 1, 0
    %v2174 = vsel %vm2166, 1, 0
    %v2175 = vsel %vm2167, 1, 0
    %v2176 = vsel %vm2168, 1, 0
    %v2177 = vsel %vm2169, 1, 0
    %v2178 = vsel %vm2170, 1, 0
    %v2179 = vsel %vm99, %v2171, 0
    %v2180 = vsel %vm99, %v2172, 0
    %v2181 = vsel %vm99, %v2173, 0
    %v2182 = vsel %vm99, %v2174, 0
    %v2183 = vsel %vm99, %v2175, 0
    %v2184 = vadd.s32 %v2179, %v2183
    %v2185 = vsel %vm99, %v2176, 0
    %v2186 = vadd.s32 %v2180, %v2185
    %v2187 = vsel %vm99, %v2177, 0
    %v2188 = vadd.s32 %v2181, %v2187
    %v2189 = vsel %vm99, %v2178, 0
    %v2190 = vadd.s32 %v2182, %v2189
    %v2191 = vadd.s32 %v2184, %v2186
    %v2192 = vadd.s32 %v2188, %v2190
    %v2193 = vadd.s32 %v2191, %v2192
    %v2194 = vand.u32 %v2193, 65535
    %v2195 = vshrl.u32 %v2193, 16
    %v2196 = vcvt.s32.f32 %v2194
    %v2197 = vcvt.s32.f32 %v2195
    %2198 = vadd.xlane.f32.xlu0 %v2196
    %v2199 = vpop.xlane.xlu0 %2198
    %2200 = vadd.xlane.f32.xlu0 %v2197
    %v2201 = vpop.xlane.xlu0 %2200
    %v2202 = vcvt.f32.s32 %v2199
    %v2203 = vcvt.f32.s32 %v2201
    %v2204 = vshll.u32 %v2203, 16
    %v2205 = vadd.s32 %v2204, %v2202
    %vm2206 = vcmp.lt.s32.totalorder %v2205, 410
    %v2207 = vsel %vm2206, 1, 0
    %v2208 = vadd.s32 %v2161, %v2207
    %v2209 = vshll.u32 %v2208, 2
    %v2210 = vadd.s32 %v2068, %v2209
    %v2211 = vadd.s32 %v2210, 1
    %vm2212 = vcmp.lt.s32.totalorder %v75, %v2211
    %vm2213 = vcmp.lt.s32.totalorder %v76, %v2211
    %vm2214 = vcmp.lt.s32.totalorder %v77, %v2211
    %vm2215 = vcmp.lt.s32.totalorder %v78, %v2211
    %vm2216 = vcmp.lt.s32.totalorder %v79, %v2211
    %vm2217 = vcmp.lt.s32.totalorder %v80, %v2211
    %vm2218 = vcmp.lt.s32.totalorder %v81, %v2211
    %vm2219 = vcmp.lt.s32.totalorder %v82, %v2211
    %v2220 = vsel %vm2212, 1, 0
    %v2221 = vsel %vm2213, 1, 0
    %v2222 = vsel %vm2214, 1, 0
    %v2223 = vsel %vm2215, 1, 0
    %v2224 = vsel %vm2216, 1, 0
    %v2225 = vsel %vm2217, 1, 0
    %v2226 = vsel %vm2218, 1, 0
    %v2227 = vsel %vm2219, 1, 0
    %v2228 = vsel %vm99, %v2220, 0
    %v2229 = vsel %vm99, %v2221, 0
    %v2230 = vsel %vm99, %v2222, 0
    %v2231 = vsel %vm99, %v2223, 0
    %v2232 = vsel %vm99, %v2224, 0
    %v2233 = vadd.s32 %v2228, %v2232
    %v2234 = vsel %vm99, %v2225, 0
    %v2235 = vadd.s32 %v2229, %v2234
    %v2236 = vsel %vm99, %v2226, 0
    %v2237 = vadd.s32 %v2230, %v2236
    %v2238 = vsel %vm99, %v2227, 0
    %v2239 = vadd.s32 %v2231, %v2238
    %v2240 = vadd.s32 %v2233, %v2235
    %v2241 = vadd.s32 %v2237, %v2239
    %v2242 = vadd.s32 %v2240, %v2241
    %v2243 = vand.u32 %v2242, 65535
    %v2244 = vshrl.u32 %v2242, 16
    %v2245 = vcvt.s32.f32 %v2243
    %v2246 = vcvt.s32.f32 %v2244
    %2247 = vadd.xlane.f32.xlu0 %v2245
    %v2248 = vpop.xlane.xlu0 %2247
    %2249 = vadd.xlane.f32.xlu0 %v2246
    %v2250 = vpop.xlane.xlu0 %2249
    %v2251 = vcvt.f32.s32 %v2248
    %v2252 = vcvt.f32.s32 %v2250
    %v2253 = vshll.u32 %v2252, 16
    %v2254 = vadd.s32 %v2253, %v2251
    %vm2255 = vcmp.lt.s32.totalorder %v2254, 410
    %v2256 = vsel %vm2255, 1, 0
    %v2257 = vadd.s32 %v2210, 2
    %vm2258 = vcmp.lt.s32.totalorder %v75, %v2257
    %vm2259 = vcmp.lt.s32.totalorder %v76, %v2257
    %vm2260 = vcmp.lt.s32.totalorder %v77, %v2257
    %vm2261 = vcmp.lt.s32.totalorder %v78, %v2257
    %vm2262 = vcmp.lt.s32.totalorder %v79, %v2257
    %vm2263 = vcmp.lt.s32.totalorder %v80, %v2257
    %vm2264 = vcmp.lt.s32.totalorder %v81, %v2257
    %vm2265 = vcmp.lt.s32.totalorder %v82, %v2257
    %v2266 = vsel %vm2258, 1, 0
    %v2267 = vsel %vm2259, 1, 0
    %v2268 = vsel %vm2260, 1, 0
    %v2269 = vsel %vm2261, 1, 0
    %v2270 = vsel %vm2262, 1, 0
    %v2271 = vsel %vm2263, 1, 0
    %v2272 = vsel %vm2264, 1, 0
    %v2273 = vsel %vm2265, 1, 0
    %v2274 = vsel %vm99, %v2266, 0
    %v2275 = vsel %vm99, %v2267, 0
    %v2276 = vsel %vm99, %v2268, 0
    %v2277 = vsel %vm99, %v2269, 0
    %v2278 = vsel %vm99, %v2270, 0
    %v2279 = vadd.s32 %v2274, %v2278
    %v2280 = vsel %vm99, %v2271, 0
    %v2281 = vadd.s32 %v2275, %v2280
    %v2282 = vsel %vm99, %v2272, 0
    %v2283 = vadd.s32 %v2276, %v2282
    %v2284 = vsel %vm99, %v2273, 0
    %v2285 = vadd.s32 %v2277, %v2284
    %v2286 = vadd.s32 %v2279, %v2281
    %v2287 = vadd.s32 %v2283, %v2285
    %v2288 = vadd.s32 %v2286, %v2287
    %v2289 = vand.u32 %v2288, 65535
    %v2290 = vshrl.u32 %v2288, 16
    %v2291 = vcvt.s32.f32 %v2289
    %v2292 = vcvt.s32.f32 %v2290
    %2293 = vadd.xlane.f32.xlu0 %v2291
    %v2294 = vpop.xlane.xlu0 %2293
    %2295 = vadd.xlane.f32.xlu0 %v2292
    %v2296 = vpop.xlane.xlu0 %2295
    %v2297 = vcvt.f32.s32 %v2294
    %v2298 = vcvt.f32.s32 %v2296
    %v2299 = vshll.u32 %v2298, 16
    %v2300 = vadd.s32 %v2299, %v2297
    %vm2301 = vcmp.lt.s32.totalorder %v2300, 410
    %v2302 = vsel %vm2301, 1, 0
    %v2303 = vadd.s32 %v2256, %v2302
    %v2304 = vadd.s32 %v2210, 3
    %vm2305 = vcmp.lt.s32.totalorder %v75, %v2304
    %vm2306 = vcmp.lt.s32.totalorder %v76, %v2304
    %vm2307 = vcmp.lt.s32.totalorder %v77, %v2304
    %vm2308 = vcmp.lt.s32.totalorder %v78, %v2304
    %vm2309 = vcmp.lt.s32.totalorder %v79, %v2304
    %vm2310 = vcmp.lt.s32.totalorder %v80, %v2304
    %vm2311 = vcmp.lt.s32.totalorder %v81, %v2304
    %vm2312 = vcmp.lt.s32.totalorder %v82, %v2304
    %v2313 = vsel %vm2305, 1, 0
    %v2314 = vsel %vm2306, 1, 0
    %v2315 = vsel %vm2307, 1, 0
    %v2316 = vsel %vm2308, 1, 0
    %v2317 = vsel %vm2309, 1, 0
    %v2318 = vsel %vm2310, 1, 0
    %v2319 = vsel %vm2311, 1, 0
    %v2320 = vsel %vm2312, 1, 0
    %v2321 = vsel %vm99, %v2313, 0
    %v2322 = vsel %vm99, %v2314, 0
    %v2323 = vsel %vm99, %v2315, 0
    %v2324 = vsel %vm99, %v2316, 0
    %v2325 = vsel %vm99, %v2317, 0
    %v2326 = vadd.s32 %v2321, %v2325
    %v2327 = vsel %vm99, %v2318, 0
    %v2328 = vadd.s32 %v2322, %v2327
    %v2329 = vsel %vm99, %v2319, 0
    %v2330 = vadd.s32 %v2323, %v2329
    %v2331 = vsel %vm99, %v2320, 0
    %v2332 = vadd.s32 %v2324, %v2331
    %v2333 = vadd.s32 %v2326, %v2328
    %v2334 = vadd.s32 %v2330, %v2332
    %v2335 = vadd.s32 %v2333, %v2334
    %v2336 = vand.u32 %v2335, 65535
    %v2337 = vshrl.u32 %v2335, 16
    %v2338 = vcvt.s32.f32 %v2336
    %v2339 = vcvt.s32.f32 %v2337
    %2340 = vadd.xlane.f32.xlu0 %v2338
    %v2341 = vpop.xlane.xlu0 %2340
    %2342 = vadd.xlane.f32.xlu0 %v2339
    %v2343 = vpop.xlane.xlu0 %2342
    %v2344 = vcvt.f32.s32 %v2341
    %v2345 = vcvt.f32.s32 %v2343
    %v2346 = vshll.u32 %v2345, 16
    %v2347 = vadd.s32 %v2346, %v2344
    %vm2348 = vcmp.lt.s32.totalorder %v2347, 410
    %v2349 = vsel %vm2348, 1, 0
    %v2350 = vadd.s32 %v2303, %v2349
    %v2351 = vadd.s32 %v2210, %v2350
    %vm2352 = vcmp.lt.s32.totalorder %v2351, 0
    %v2353 = vxor.u32 %v2351, 2147483647
    %v2354 = vsel %vm2352, %v2353, %v2351
    %v2356 = vmin.f32 %v2354, 1.0
    %v2359 = vunpack.c.l.s4 269488144
    %v2360 = vunpack.c.0.s8 %v2359
    %v2361 = vlaneseq
    %v2362 = vshrl.u32 %v2361, 7
    %v2363 = vsub.s32 %v2360, %v2362
    %v2364 = vrot.slane %v2356, %v2363
    %vm2366 = vcmp.gt.f32.partialorder %v21, %v2364
    %vm2367 = vcmp.gt.f32.partialorder %v22, %v2364
    %v2368 = vsub.f32 1.0, %v21
    %v2369 = vsub.f32 1.0, %v22
    %v2370 = vsel %vm2366, 0.0, %v2368
    %v2371 = vsel %vm2367, 0.0, %v2369
    %2372 = vst [vmem:[#allocation5] sm:$0xff] %v2370
    %2373 = vst [vmem:[#allocation5 + $0x8] sm:$0xff] %v2371
    // Predicated region
    $region10: #{tpu_custom_call.1} parent=1 // pred_check
      _
    $region11: #{tpu_custom_call.1} parent=1 // pred_check_branch
      %2375 = sbr.rel (0) target = $region13
    $region12: #{tpu_custom_call.1} parent=1 // pred_region
      %s2377 = ssub.s32 256, 256
      %2378 = vsyncadd [#allocation4], %s2377
      %s2380 = sshll.u32 [#allocation5], 4
      %s2381 = int_to_ptr.vmem [resolvable:$true] %s2380
      %2383 = dma.vmem_to_hbm [thread:$0]  %s2381, 256, %s1, [#allocation4]
    $region13: #{tpu_custom_call.1} parent=1 // pred_fallthru
      _
    // Predicated region
    $region14: #{tpu_custom_call.1} parent=1 // pred_check
      _
    $region15: #{tpu_custom_call.1} parent=1 // pred_check_branch
      %2385 = sbr.rel (0) target = $region17
    $region16: #{tpu_custom_call.1} parent=1 // pred_region
      %2386 = dma.done [#allocation4], 256
    $region17: #{tpu_custom_call.1} parent=1 // pred_fallthru
      _
    %2387 = vsyncpa [#allocation3], 1
    %2388 = vsyncpa [#allocation4], 1

</llo_original>
